<compile_context>
chip_gen: v7x
topology: tpu7x:2x2x1
jax: 0.10.0
libtpu: 0.0.40
codegen_flags: <defaults>
</compile_context>

<pallas_src>
import jax
import jax.numpy as jnp
from jax.experimental import pallas as pl
from jax.experimental.pallas import tpu as pltpu  # noqa: F401  (TPU backend)


INPUT_DIM = 784
HIDDEN_DIM = 500
LATENT_DIM = 20


def _round_up(n, m):
    return ((n + m - 1) // m) * m


DIN_P = _round_up(INPUT_DIM, 128)    # 896
HID_P = _round_up(HIDDEN_DIM, 128)   # 512
LAT_P = _round_up(LATENT_DIM, 128)   # 128


# ---------------------------------------------------------------------------
# Fused forward kernel: encoder -> reparameterize -> decoder, all in VMEM.
# ---------------------------------------------------------------------------

def _vae_fused_kernel(x_ref, eps_ref,
                      w_e1, b_e1, w_e2, b_e2,
                      w_mu, b_mu, w_lv, b_lv,
                      w_d1, b_d1, w_d2, b_d2, w_d3, b_d3,
                      xout_ref, mean_ref, logvar_ref):
    f32 = jnp.float32
    bf16 = jnp.bfloat16

    def linear(a_f32, w_bf16_ref, b_f32_ref):
        # bf16 operands on the MXU, f32 accumulate, f32 bias add on the VPU.
        return (jnp.dot(a_f32.astype(bf16), w_bf16_ref[...],
                        preferred_element_type=f32)
                + b_f32_ref[...])

    # ---- encoder ----
    x = x_ref[...]
    h = jnp.maximum(linear(x, w_e1, b_e1), 0.0)
    h = jnp.maximum(linear(h, w_e2, b_e2), 0.0)
    mean = linear(h, w_mu, b_mu)
    lv_pre = linear(h, w_lv, b_lv)
    # softplus (numerically stable), in f32: exp goes to the EUP slot.
    logvar = jnp.maximum(lv_pre, 0.0) + jnp.log(1.0 + jnp.exp(-jnp.abs(lv_pre)))

    mean_ref[...] = mean
    logvar_ref[...] = logvar

    # ---- reparameterization: z = eps * exp(0.5 * logvar) + mean ----
    z = eps_ref[...] * jnp.exp(0.5 * logvar) + mean

    # ---- decoder ----
    d = jnp.maximum(linear(z, w_d1, b_d1), 0.0)
    d = jnp.maximum(linear(d, w_d2, b_d2), 0.0)
    logits = linear(d, w_d3, b_d3)
    xout_ref[...] = 1.0 / (1.0 + jnp.exp(-logits))     # sigmoid, f32


# ---------------------------------------------------------------------------
# Host-side glue: parameter init / one-time prep / jitted forward wrapper.
# ---------------------------------------------------------------------------

def init_params(key, input_dim=INPUT_DIM, hidden_dim=HIDDEN_DIM,
                latent_dim=LATENT_DIM):
    """PyTorch-style nn.Linear init: U(-1/sqrt(fan_in), +1/sqrt(fan_in))."""
    dims = [(input_dim, hidden_dim), (hidden_dim, hidden_dim),
            (hidden_dim, latent_dim), (hidden_dim, latent_dim),
            (latent_dim, hidden_dim), (hidden_dim, hidden_dim),
            (hidden_dim, input_dim)]
    keys = jax.random.split(key, 2 * len(dims))
    params = []
    for i, (fan_in, fan_out) in enumerate(dims):
        bound = 1.0 / (fan_in ** 0.5)
        w = jax.random.uniform(keys[2 * i], (fan_out, fan_in), jnp.float32,
                               -bound, bound)          # torch layout (out, in)
        b = jax.random.uniform(keys[2 * i + 1], (fan_out,), jnp.float32,
                               -bound, bound)
        params.append((w, b))
    return tuple(params)


def prepare_params(params):
    """Transpose to (in, out), zero-pad to lane-dense dims, cast W to bf16."""
    pads = [(DIN_P, HID_P), (HID_P, HID_P), (HID_P, LAT_P), (HID_P, LAT_P),
            (LAT_P, HID_P), (HID_P, HID_P), (HID_P, DIN_P)]
    prepped = []
    for (w, b), (in_p, out_p) in zip(params, pads):
        wt = w.T                                        # (in, out)
        wt = jnp.pad(wt, ((0, in_p - wt.shape[0]), (0, out_p - wt.shape[1])))
        bt = jnp.pad(b, (0, out_p - b.shape[0])).reshape(1, out_p)
        prepped.append(wt.astype(jnp.bfloat16))
        prepped.append(bt.astype(jnp.float32))
    return tuple(prepped)


@jax.jit
def vae_forward(x, eps, prepped):
    """Returns (x_out, z_mean, z_logvar) like VAE.forward."""
    B = x.shape[0]
    x2 = x.reshape(B, INPUT_DIM)
    Bp = _round_up(max(B, 8), 8)
    x_p = jnp.pad(x2, ((0, Bp - B), (0, DIN_P - INPUT_DIM)))
    eps_p = jnp.pad(eps, ((0, Bp - B), (0, LAT_P - LATENT_DIM)))

    flops = 2 * Bp * (DIN_P * HID_P + HID_P * HID_P + 2 * HID_P * LAT_P
                      + LAT_P * HID_P + HID_P * HID_P + HID_P * DIN_P)
    transcendentals = Bp * (3 * LAT_P + DIN_P)
    bytes_accessed = (x_p.size * 4 + eps_p.size * 4
                      + sum(int(p.size) * p.dtype.itemsize for p in prepped)
                      + Bp * (DIN_P + 2 * LAT_P) * 4)

    xout_p, mean_p, logvar_p = pl.pallas_call(
        _vae_fused_kernel,
        out_shape=(
            jax.ShapeDtypeStruct((Bp, DIN_P), jnp.float32),
            jax.ShapeDtypeStruct((Bp, LAT_P), jnp.float32),
            jax.ShapeDtypeStruct((Bp, LAT_P), jnp.float32),
        ),
        cost_estimate=pl.CostEstimate(
            flops=flops, transcendentals=transcendentals,
            bytes_accessed=bytes_accessed),
    )(x_p, eps_p, *prepped)

    return (xout_p[:B, :INPUT_DIM],
            mean_p[:B, :LATENT_DIM],
            logvar_p[:B, :LATENT_DIM])


def vae_forward_ref(x, eps, params):
    """Pure-JAX f32 reference of the PyTorch forward."""
    (we1, be1), (we2, be2), (wmu, bmu), (wlv, blv), \
        (wd1, bd1), (wd2, bd2), (wd3, bd3) = params
    h = jax.nn.relu(x.reshape(-1, INPUT_DIM) @ we1.T + be1)
    h = jax.nn.relu(h @ we2.T + be2)
    mean = h @ wmu.T + bmu
    logvar = jax.nn.softplus(h @ wlv.T + blv)
    z = eps * jnp.exp(0.5 * logvar) + mean
    d = jax.nn.relu(z @ wd1.T + bd1)
    d = jax.nn.relu(d @ wd2.T + bd2)
    x_out = jax.nn.sigmoid(d @ wd3.T + bd3)
    return x_out, mean, logvar


if __name__ == "__main__":
    key = jax.random.PRNGKey(0)
    pkey, xkey, ekey = jax.random.split(key, 3)

    params = init_params(pkey)
    prepped = prepare_params(params)

    B = 2
    x = jax.random.uniform(xkey, (B, INPUT_DIM), jnp.float32)   # MNIST-like [0,1)
    # TODO(synk): the module draws torch.randn inside sample_normal; here the
    # Gaussian noise is generated with jax.random and passed in explicitly
    # (reparameterization input) instead of in-kernel pltpu.stateful_normal.
    eps = jax.random.normal(ekey, (B, LATENT_DIM), jnp.float32)

    x_out, z_mean, z_logvar = jax.block_until_ready(vae_forward(x, eps, prepped))

    assert x_out.shape == (B, INPUT_DIM)
    assert z_mean.shape == (B, LATENT_DIM)
    assert z_logvar.shape == (B, LATENT_DIM)
    for a in (x_out, z_mean, z_logvar):
        assert bool(jnp.all(jnp.isfinite(a)))
    assert bool(jnp.all((x_out >= 0.0) & (x_out <= 1.0)))
    assert bool(jnp.all(z_logvar >= 0.0))                       # softplus >= 0

    # Loose check vs the f32 reference (kernel matmuls use bf16 operands).
    r_out, r_mean, r_logvar = vae_forward_ref(x, eps, params)
    assert bool(jnp.max(jnp.abs(x_out - r_out)) < 0.1)
    assert bool(jnp.max(jnp.abs(z_mean - r_mean)) < 0.1)
    assert bool(jnp.max(jnp.abs(z_logvar - r_logvar)) < 0.1)

    print("KERNEL_OK")
</pallas_src>

<mosaic_0001>
module attributes {stable_mosaic.version = 11 : i64} {
  func.func @_vae_fused_kernel(%arg0: memref<8x896xf32, #tpu.memory_space<vmem>>, %arg1: memref<8x128xf32, #tpu.memory_space<vmem>>, %arg2: memref<896x512xbf16, #tpu.memory_space<vmem>>, %arg3: memref<1x512xf32, #tpu.memory_space<vmem>>, %arg4: memref<512x512xbf16, #tpu.memory_space<vmem>>, %arg5: memref<1x512xf32, #tpu.memory_space<vmem>>, %arg6: memref<512x128xbf16, #tpu.memory_space<vmem>>, %arg7: memref<1x128xf32, #tpu.memory_space<vmem>>, %arg8: memref<512x128xbf16, #tpu.memory_space<vmem>>, %arg9: memref<1x128xf32, #tpu.memory_space<vmem>>, %arg10: memref<128x512xbf16, #tpu.memory_space<vmem>>, %arg11: memref<1x512xf32, #tpu.memory_space<vmem>>, %arg12: memref<512x512xbf16, #tpu.memory_space<vmem>>, %arg13: memref<1x512xf32, #tpu.memory_space<vmem>>, %arg14: memref<512x896xbf16, #tpu.memory_space<vmem>>, %arg15: memref<1x896xf32, #tpu.memory_space<vmem>>, %arg16: memref<8x896xf32, #tpu.memory_space<vmem>>, %arg17: memref<8x128xf32, #tpu.memory_space<vmem>>, %arg18: memref<8x128xf32, #tpu.memory_space<vmem>>) attributes {dimension_semantics = [], scalar_prefetch = 0 : i64, scratch_operands = 0 : i64, tpu.core_type = #tpu.core_type<tc>} {
    %c0 = arith.constant 0 : index
    %c0_0 = arith.constant 0 : index
    %0 = vector.load %arg0[%c0, %c0_0] : memref<8x896xf32, #tpu.memory_space<vmem>>, vector<8x896xf32>
    %1 = arith.truncf %0 : vector<8x896xf32> to vector<8x896xbf16>
    %c0_1 = arith.constant 0 : index
    %c0_2 = arith.constant 0 : index
    %2 = vector.load %arg2[%c0_1, %c0_2] : memref<896x512xbf16, #tpu.memory_space<vmem>>, vector<896x512xbf16>
    %cst = arith.constant dense<0.000000e+00> : vector<8x512xf32>
    %3 = tpu.matmul %1, %2, %cst {dimension_numbers = #tpu.dot_dimension_numbers<[1], [0], [0], [1], [0, 0, 1, 1], [], []>} : vector<8x896xbf16>, vector<896x512xbf16>, vector<8x512xf32> -> vector<8x512xf32>
    %c0_3 = arith.constant 0 : index
    %c0_4 = arith.constant 0 : index
    %4 = vector.load %arg3[%c0_3, %c0_4] : memref<1x512xf32, #tpu.memory_space<vmem>>, vector<1x512xf32>
    %5 = vector.broadcast %4 : vector<1x512xf32> to vector<8x512xf32>
    %6 = arith.addf %3, %5 : vector<8x512xf32>
    %cst_5 = arith.constant 0.000000e+00 : f32
    %7 = vector.broadcast %cst_5 : f32 to vector<8x512xf32>
    %8 = arith.maximumf %6, %7 : vector<8x512xf32>
    %9 = arith.truncf %8 : vector<8x512xf32> to vector<8x512xbf16>
    %c0_6 = arith.constant 0 : index
    %c0_7 = arith.constant 0 : index
    %10 = vector.load %arg4[%c0_6, %c0_7] : memref<512x512xbf16, #tpu.memory_space<vmem>>, vector<512x512xbf16>
    %cst_8 = arith.constant dense<0.000000e+00> : vector<8x512xf32>
    %11 = tpu.matmul %9, %10, %cst_8 {dimension_numbers = #tpu.dot_dimension_numbers<[1], [0], [0], [1], [0, 0, 1, 1], [], []>} : vector<8x512xbf16>, vector<512x512xbf16>, vector<8x512xf32> -> vector<8x512xf32>
    %c0_9 = arith.constant 0 : index
    %c0_10 = arith.constant 0 : index
    %12 = vector.load %arg5[%c0_9, %c0_10] : memref<1x512xf32, #tpu.memory_space<vmem>>, vector<1x512xf32>
    %13 = vector.broadcast %12 : vector<1x512xf32> to vector<8x512xf32>
    %14 = arith.addf %11, %13 : vector<8x512xf32>
    %cst_11 = arith.constant 0.000000e+00 : f32
    %15 = vector.broadcast %cst_11 : f32 to vector<8x512xf32>
    %16 = arith.maximumf %14, %15 : vector<8x512xf32>
    %17 = arith.truncf %16 : vector<8x512xf32> to vector<8x512xbf16>
    %c0_12 = arith.constant 0 : index
    %c0_13 = arith.constant 0 : index
    %18 = vector.load %arg6[%c0_12, %c0_13] : memref<512x128xbf16, #tpu.memory_space<vmem>>, vector<512x128xbf16>
    %cst_14 = arith.constant dense<0.000000e+00> : vector<8x128xf32>
    %19 = tpu.matmul %17, %18, %cst_14 {dimension_numbers = #tpu.dot_dimension_numbers<[1], [0], [0], [1], [0, 0, 1, 1], [], []>} : vector<8x512xbf16>, vector<512x128xbf16>, vector<8x128xf32> -> vector<8x128xf32>
    %c0_15 = arith.constant 0 : index
    %c0_16 = arith.constant 0 : index
    %20 = vector.load %arg7[%c0_15, %c0_16] : memref<1x128xf32, #tpu.memory_space<vmem>>, vector<1x128xf32>
    %21 = vector.broadcast %20 : vector<1x128xf32> to vector<8x128xf32>
    %22 = arith.addf %19, %21 : vector<8x128xf32>
    %23 = arith.truncf %16 : vector<8x512xf32> to vector<8x512xbf16>
    %c0_17 = arith.constant 0 : index
    %c0_18 = arith.constant 0 : index
    %24 = vector.load %arg8[%c0_17, %c0_18] : memref<512x128xbf16, #tpu.memory_space<vmem>>, vector<512x128xbf16>
    %cst_19 = arith.constant dense<0.000000e+00> : vector<8x128xf32>
    %25 = tpu.matmul %23, %24, %cst_19 {dimension_numbers = #tpu.dot_dimension_numbers<[1], [0], [0], [1], [0, 0, 1, 1], [], []>} : vector<8x512xbf16>, vector<512x128xbf16>, vector<8x128xf32> -> vector<8x128xf32>
    %c0_20 = arith.constant 0 : index
    %c0_21 = arith.constant 0 : index
    %26 = vector.load %arg9[%c0_20, %c0_21] : memref<1x128xf32, #tpu.memory_space<vmem>>, vector<1x128xf32>
    %27 = vector.broadcast %26 : vector<1x128xf32> to vector<8x128xf32>
    %28 = arith.addf %25, %27 : vector<8x128xf32>
    %cst_22 = arith.constant 0.000000e+00 : f32
    %29 = vector.broadcast %cst_22 : f32 to vector<8x128xf32>
    %30 = arith.maximumf %28, %29 : vector<8x128xf32>
    %31 = math.absf %28 : vector<8x128xf32>
    %cst_23 = arith.constant 0.000000e+00 : f32
    %32 = vector.broadcast %cst_23 : f32 to vector<8x128xf32>
    %33 = arith.subf %32, %31 : vector<8x128xf32>
    %34 = math.exp %33 : vector<8x128xf32>
    %cst_24 = arith.constant 1.000000e+00 : f32
    %35 = vector.broadcast %cst_24 : f32 to vector<8x128xf32>
    %36 = arith.addf %35, %34 : vector<8x128xf32>
    %37 = math.log %36 : vector<8x128xf32>
    %38 = arith.addf %30, %37 : vector<8x128xf32>
    %c0_25 = arith.constant 0 : index
    %c0_26 = arith.constant 0 : index
    %39 = vector.load %arg17[%c0_25, %c0_26] : memref<8x128xf32, #tpu.memory_space<vmem>>, vector<8x128xf32>
    tpu.vector_store %arg17[%c0_25, %c0_26], %22 {strides = array<i32>} : memref<8x128xf32, #tpu.memory_space<vmem>>, vector<8x128xf32>,
    %c0_27 = arith.constant 0 : index
    %c0_28 = arith.constant 0 : index
    %40 = vector.load %arg18[%c0_27, %c0_28] : memref<8x128xf32, #tpu.memory_space<vmem>>, vector<8x128xf32>
    tpu.vector_store %arg18[%c0_27, %c0_28], %38 {strides = array<i32>} : memref<8x128xf32, #tpu.memory_space<vmem>>, vector<8x128xf32>,
    %c0_29 = arith.constant 0 : index
    %c0_30 = arith.constant 0 : index
    %41 = vector.load %arg1[%c0_29, %c0_30] : memref<8x128xf32, #tpu.memory_space<vmem>>, vector<8x128xf32>
    %cst_31 = arith.constant 5.000000e-01 : f32
    %42 = vector.broadcast %cst_31 : f32 to vector<8x128xf32>
    %43 = arith.mulf %42, %38 : vector<8x128xf32>
    %44 = math.exp %43 : vector<8x128xf32>
    %45 = arith.mulf %41, %44 : vector<8x128xf32>
    %46 = arith.addf %45, %22 : vector<8x128xf32>
    %47 = arith.truncf %46 : vector<8x128xf32> to vector<8x128xbf16>
    %c0_32 = arith.constant 0 : index
    %c0_33 = arith.constant 0 : index
    %48 = vector.load %arg10[%c0_32, %c0_33] : memref<128x512xbf16, #tpu.memory_space<vmem>>, vector<128x512xbf16>
    %cst_34 = arith.constant dense<0.000000e+00> : vector<8x512xf32>
    %49 = tpu.matmul %47, %48, %cst_34 {dimension_numbers = #tpu.dot_dimension_numbers<[1], [0], [0], [1], [0, 0, 1, 1], [], []>} : vector<8x128xbf16>, vector<128x512xbf16>, vector<8x512xf32> -> vector<8x512xf32>
    %c0_35 = arith.constant 0 : index
    %c0_36 = arith.constant 0 : index
    %50 = vector.load %arg11[%c0_35, %c0_36] : memref<1x512xf32, #tpu.memory_space<vmem>>, vector<1x512xf32>
    %51 = vector.broadcast %50 : vector<1x512xf32> to vector<8x512xf32>
    %52 = arith.addf %49, %51 : vector<8x512xf32>
    %cst_37 = arith.constant 0.000000e+00 : f32
    %53 = vector.broadcast %cst_37 : f32 to vector<8x512xf32>
    %54 = arith.maximumf %52, %53 : vector<8x512xf32>
    %55 = arith.truncf %54 : vector<8x512xf32> to vector<8x512xbf16>
    %c0_38 = arith.constant 0 : index
    %c0_39 = arith.constant 0 : index
    %56 = vector.load %arg12[%c0_38, %c0_39] : memref<512x512xbf16, #tpu.memory_space<vmem>>, vector<512x512xbf16>
    %cst_40 = arith.constant dense<0.000000e+00> : vector<8x512xf32>
    %57 = tpu.matmul %55, %56, %cst_40 {dimension_numbers = #tpu.dot_dimension_numbers<[1], [0], [0], [1], [0, 0, 1, 1], [], []>} : vector<8x512xbf16>, vector<512x512xbf16>, vector<8x512xf32> -> vector<8x512xf32>
    %c0_41 = arith.constant 0 : index
    %c0_42 = arith.constant 0 : index
    %58 = vector.load %arg13[%c0_41, %c0_42] : memref<1x512xf32, #tpu.memory_space<vmem>>, vector<1x512xf32>
    %59 = vector.broadcast %58 : vector<1x512xf32> to vector<8x512xf32>
    %60 = arith.addf %57, %59 : vector<8x512xf32>
    %cst_43 = arith.constant 0.000000e+00 : f32
    %61 = vector.broadcast %cst_43 : f32 to vector<8x512xf32>
    %62 = arith.maximumf %60, %61 : vector<8x512xf32>
    %63 = arith.truncf %62 : vector<8x512xf32> to vector<8x512xbf16>
    %c0_44 = arith.constant 0 : index
    %c0_45 = arith.constant 0 : index
    %64 = vector.load %arg14[%c0_44, %c0_45] : memref<512x896xbf16, #tpu.memory_space<vmem>>, vector<512x896xbf16>
    %cst_46 = arith.constant dense<0.000000e+00> : vector<8x896xf32>
    %65 = tpu.matmul %63, %64, %cst_46 {dimension_numbers = #tpu.dot_dimension_numbers<[1], [0], [0], [1], [0, 0, 1, 1], [], []>} : vector<8x512xbf16>, vector<512x896xbf16>, vector<8x896xf32> -> vector<8x896xf32>
    %c0_47 = arith.constant 0 : index
    %c0_48 = arith.constant 0 : index
    %66 = vector.load %arg15[%c0_47, %c0_48] : memref<1x896xf32, #tpu.memory_space<vmem>>, vector<1x896xf32>
    %67 = vector.broadcast %66 : vector<1x896xf32> to vector<8x896xf32>
    %68 = arith.addf %65, %67 : vector<8x896xf32>
    %cst_49 = arith.constant 0.000000e+00 : f32
    %69 = vector.broadcast %cst_49 : f32 to vector<8x896xf32>
    %70 = arith.subf %69, %68 : vector<8x896xf32>
    %71 = math.exp %70 : vector<8x896xf32>
    %cst_50 = arith.constant 1.000000e+00 : f32
    %72 = vector.broadcast %cst_50 : f32 to vector<8x896xf32>
    %73 = arith.addf %72, %71 : vector<8x896xf32>
    %cst_51 = arith.constant 1.000000e+00 : f32
    %74 = vector.broadcast %cst_51 : f32 to vector<8x896xf32>
    %75 = arith.divf %74, %73 : vector<8x896xf32>
    %c0_52 = arith.constant 0 : index
    %c0_53 = arith.constant 0 : index
    %76 = vector.load %arg16[%c0_52, %c0_53] : memref<8x896xf32, #tpu.memory_space<vmem>>, vector<8x896xf32>
    tpu.vector_store %arg16[%c0_52, %c0_53], %75 {strides = array<i32>} : memref<8x896xf32, #tpu.memory_space<vmem>>, vector<8x896xf32>,
    return
  }
}

</mosaic_0001>

<llo_original>
// kernel: vae_forward.1
$region0: #{vae_forward.1}
  #allocation0 [shape = 'u32[]', space=smem, size = 0x4, offset = 0x4, fixed_abs, tag = 'smem constant byte address 0x4 - core index']
  #allocation1 [shape = 'u32[144,128]{1,0:T(1,128)}', space=vmem, size = 0x12000, scoped, tag = 'internal scratch']
  %s0 = inlined_call_operand.vmem [shape: f32[8,896], index: 0, kind: input, shape index: {}]
  %s1 = inlined_call_operand.vmem [shape: f32[8,128], index: 1, kind: input, shape index: {}]
  %s2 = inlined_call_operand.hbm [shape: bf16[896,512], index: 2, kind: input, shape index: {}]
  %s3 = inlined_call_operand.vmem [shape: f32[1,512], index: 3, kind: input, shape index: {}]
  %s4 = inlined_call_operand.hbm [shape: bf16[512,512], index: 4, kind: input, shape index: {}]
  %s5 = inlined_call_operand.vmem [shape: f32[1,512], index: 5, kind: input, shape index: {}]
  %s6 = inlined_call_operand.hbm [shape: bf16[512,128], index: 6, kind: input, shape index: {}]
  %s7 = inlined_call_operand.vmem [shape: f32[1,128], index: 7, kind: input, shape index: {}]
  %s8 = inlined_call_operand.hbm [shape: bf16[512,128], index: 8, kind: input, shape index: {}]
  %s9 = inlined_call_operand.vmem [shape: f32[1,128], index: 9, kind: input, shape index: {}]
  %s10 = inlined_call_operand.hbm [shape: bf16[128,512], index: 10, kind: input, shape index: {}]
  %s11 = inlined_call_operand.vmem [shape: f32[1,512], index: 11, kind: input, shape index: {}]
  %s12 = inlined_call_operand.hbm [shape: bf16[512,512], index: 12, kind: input, shape index: {}]
  %s13 = inlined_call_operand.vmem [shape: f32[1,512], index: 13, kind: input, shape index: {}]
  %s14 = inlined_call_operand.hbm [shape: bf16[512,896], index: 14, kind: input, shape index: {}]
  %s15 = inlined_call_operand.vmem [shape: f32[1,896], index: 15, kind: input, shape index: {}]
  %s16 = inlined_call_operand.vmem [shape: f32[8,896], index: 16, kind: output, shape index: {0}]
  %s17 = inlined_call_operand.vmem [shape: f32[8,128], index: 17, kind: output, shape index: {1}]
  %s18 = inlined_call_operand.vmem [shape: f32[8,128], index: 18, kind: output, shape index: {2}]
  %19 = xla_tuple %s16, %s17, %s18
  %s20 = sld [smem:[#allocation0]]
  $region118: #{vae_forward.1} parent=0
    _
  %s22 = ssub.s32 1, %s20
  %s23 = scalar_select 0, %s22, %s20
  $region1: #{vae_forward.1} parent=0
    #allocation2 [shape = 'u8[917504]{0}', space=vmem, size = 0xe0000, scoped, tag = 'input window, operand 2, single buffered']
    #allocation3 [shape = 's32[1]{0}', space=sflag, size = 0x4, scoped, tag = 'scoped memory for vae_forward.1']
    #allocation4 [shape = 'u8[524288]{0}', space=vmem, size = 0x80000, scoped, tag = 'input window, operand 4, single buffered']
    #allocation5 [shape = 's32[1]{0}', space=sflag, size = 0x4, scoped, tag = 'scoped memory for vae_forward.1']
    #allocation6 [shape = 'u8[131072]{0}', space=vmem, size = 0x20000, scoped, tag = 'input window, operand 6, single buffered']
    #allocation7 [shape = 'u8[131072]{0}', space=vmem, size = 0x20000, scoped, tag = 'input window, operand 8, single buffered']
    #allocation8 [shape = 's32[1]{0}', space=sflag, size = 0x4, scoped, tag = 'scoped memory for vae_forward.1']
    #allocation9 [shape = 'u8[131072]{0}', space=vmem, size = 0x20000, scoped, tag = 'input window, operand 10, single buffered']
    #allocation10 [shape = 'u8[524288]{0}', space=vmem, size = 0x80000, scoped, tag = 'input window, operand 12, single buffered']
    #allocation11 [shape = 's32[1]{0}', space=sflag, size = 0x4, scoped, tag = 'scoped memory for vae_forward.1']
    #allocation12 [shape = 'u8[917504]{0}', space=vmem, size = 0xe0000, scoped, tag = 'input window, operand 14, single buffered']
    %24 = vsyncpa [#allocation3], 0
    %25 = vsyncpa [#allocation5], 0
    %26 = vsyncpa [#allocation8], 0
    %27 = vsyncpa [#allocation11], 0
    // Predicated region
    $region2: #{vae_forward.1} parent=1 // pred_check
      _
    $region3: #{vae_forward.1} parent=1 // pred_check_branch
      %29 = sbr.rel (0) target = $region5
    $region4: #{vae_forward.1} parent=1 // pred_region
      _
    $region5: #{vae_forward.1} parent=1 // pred_fallthru
      _
    // Predicated region
    $region6: #{vae_forward.1} parent=1 // pred_check
      _
    $region7: #{vae_forward.1} parent=1 // pred_check_branch
      %31 = sbr.rel (0) target = $region9
    $region8: #{vae_forward.1} parent=1 // pred_region
      _
    $region9: #{vae_forward.1} parent=1 // pred_fallthru
      _
    // Predicated region
    $region10: #{vae_forward.1} parent=1 // pred_check
      _
    $region11: #{vae_forward.1} parent=1 // pred_check_branch
      %33 = sbr.rel (0) target = $region13
    $region12: #{vae_forward.1} parent=1 // pred_region
      %s35 = ssub.s32 28672, 28672
      %36 = vsyncadd [#allocation3], %s35
      %s37 = sshll.u32 [#allocation2], 4
      %s38 = int_to_ptr.vmem [resolvable:$true] %s37
      %43 = dma.hbm_to_vmem [thread:$0]  %s2, 28672, %s38, [#allocation3], 256, 256, 16
    $region13: #{vae_forward.1} parent=1 // pred_fallthru
      _
    // Predicated region
    $region14: #{vae_forward.1} parent=1 // pred_check
      _
    $region15: #{vae_forward.1} parent=1 // pred_check_branch
      %45 = sbr.rel (0) target = $region17
    $region16: #{vae_forward.1} parent=1 // pred_region
      _
    $region17: #{vae_forward.1} parent=1 // pred_fallthru
      _
    // Predicated region
    $region18: #{vae_forward.1} parent=1 // pred_check
      _
    $region19: #{vae_forward.1} parent=1 // pred_check_branch
      %47 = sbr.rel (0) target = $region21
    $region20: #{vae_forward.1} parent=1 // pred_region
      %s49 = ssub.s32 16384, 16384
      %50 = vsyncadd [#allocation5], %s49
      %s51 = sshll.u32 [#allocation4], 4
      %s52 = int_to_ptr.vmem [resolvable:$true] %s51
      %57 = dma.hbm_to_vmem [thread:$0]  %s4, 16384, %s52, [#allocation5], 256, 256, 16
    $region21: #{vae_forward.1} parent=1 // pred_fallthru
      _
    // Predicated region
    $region22: #{vae_forward.1} parent=1 // pred_check
      _
    $region23: #{vae_forward.1} parent=1 // pred_check_branch
      %59 = sbr.rel (0) target = $region25
    $region24: #{vae_forward.1} parent=1 // pred_region
      _
    $region25: #{vae_forward.1} parent=1 // pred_fallthru
      _
    // Predicated region
    $region26: #{vae_forward.1} parent=1 // pred_check
      _
    $region27: #{vae_forward.1} parent=1 // pred_check_branch
      %61 = sbr.rel (0) target = $region29
    $region28: #{vae_forward.1} parent=1 // pred_region
      %s63 = ssub.s32 4096, 4096
      %64 = vsyncadd [#allocation5], %s63
      %s65 = sshll.u32 [#allocation6], 4
      %s66 = int_to_ptr.vmem [resolvable:$true] %s65
      %71 = dma.hbm_to_vmem [thread:$0]  %s6, 4096, %s66, [#allocation5], 64, 64, 4
    $region29: #{vae_forward.1} parent=1 // pred_fallthru
      _
    // Predicated region
    $region30: #{vae_forward.1} parent=1 // pred_check
      _
    $region31: #{vae_forward.1} parent=1 // pred_check_branch
      %73 = sbr.rel (0) target = $region33
    $region32: #{vae_forward.1} parent=1 // pred_region
      _
    $region33: #{vae_forward.1} parent=1 // pred_fallthru
      _
    // Predicated region
    $region34: #{vae_forward.1} parent=1 // pred_check
      _
    $region35: #{vae_forward.1} parent=1 // pred_check_branch
      %75 = sbr.rel (0) target = $region37
    $region36: #{vae_forward.1} parent=1 // pred_region
      %s77 = ssub.s32 4096, 4096
      %78 = vsyncadd [#allocation8], %s77
      %s79 = sshll.u32 [#allocation7], 4
      %s80 = int_to_ptr.vmem [resolvable:$true] %s79
      %85 = dma.hbm_to_vmem [thread:$0]  %s8, 4096, %s80, [#allocation8], 64, 64, 4
    $region37: #{vae_forward.1} parent=1 // pred_fallthru
      _
    // Predicated region
    $region38: #{vae_forward.1} parent=1 // pred_check
      _
    $region39: #{vae_forward.1} parent=1 // pred_check_branch
      %87 = sbr.rel (0) target = $region41
    $region40: #{vae_forward.1} parent=1 // pred_region
      _
    $region41: #{vae_forward.1} parent=1 // pred_fallthru
      _
    // Predicated region
    $region42: #{vae_forward.1} parent=1 // pred_check
      _
    $region43: #{vae_forward.1} parent=1 // pred_check_branch
      %89 = sbr.rel (0) target = $region45
    $region44: #{vae_forward.1} parent=1 // pred_region
      %s91 = ssub.s32 4096, 4096
      %92 = vsyncadd [#allocation8], %s91
      %s93 = sshll.u32 [#allocation9], 4
      %s94 = int_to_ptr.vmem [resolvable:$true] %s93
      %99 = dma.hbm_to_vmem [thread:$0]  %s10, 4096, %s94, [#allocation8], 256, 256, 16
    $region45: #{vae_forward.1} parent=1 // pred_fallthru
      _
    // Predicated region
    $region46: #{vae_forward.1} parent=1 // pred_check
      _
    $region47: #{vae_forward.1} parent=1 // pred_check_branch
      %101 = sbr.rel (0) target = $region49
    $region48: #{vae_forward.1} parent=1 // pred_region
      _
    $region49: #{vae_forward.1} parent=1 // pred_fallthru
      _
    // Predicated region
    $region50: #{vae_forward.1} parent=1 // pred_check
      _
    $region51: #{vae_forward.1} parent=1 // pred_check_branch
      %103 = sbr.rel (0) target = $region53
    $region52: #{vae_forward.1} parent=1 // pred_region
      %s105 = ssub.s32 16384, 16384
      %106 = vsyncadd [#allocation11], %s105
      %s107 = sshll.u32 [#allocation10], 4
      %s108 = int_to_ptr.vmem [resolvable:$true] %s107
      %113 = dma.hbm_to_vmem [thread:$0]  %s12, 16384, %s108, [#allocation11], 256, 256, 16
    $region53: #{vae_forward.1} parent=1 // pred_fallthru
      _
    // Predicated region
    $region54: #{vae_forward.1} parent=1 // pred_check
      _
    $region55: #{vae_forward.1} parent=1 // pred_check_branch
      %115 = sbr.rel (0) target = $region57
    $region56: #{vae_forward.1} parent=1 // pred_region
      _
    $region57: #{vae_forward.1} parent=1 // pred_fallthru
      _
    // Predicated region
    $region58: #{vae_forward.1} parent=1 // pred_check
      _
    $region59: #{vae_forward.1} parent=1 // pred_check_branch
      %117 = sbr.rel (0) target = $region61
    $region60: #{vae_forward.1} parent=1 // pred_region
      %s119 = ssub.s32 28672, 28672
      %120 = vsyncadd [#allocation11], %s119
      %s121 = sshll.u32 [#allocation12], 4
      %s122 = int_to_ptr.vmem [resolvable:$true] %s121
      %127 = dma.hbm_to_vmem [thread:$0]  %s14, 28672, %s122, [#allocation11], 448, 448, 28
    $region61: #{vae_forward.1} parent=1 // pred_fallthru
      _
    // Predicated region
    $region62: #{vae_forward.1} parent=1 // pred_check
      _
    $region63: #{vae_forward.1} parent=1 // pred_check_branch
      %129 = sbr.rel (0) target = $region65
    $region64: #{vae_forward.1} parent=1 // pred_region
      _
    $region65: #{vae_forward.1} parent=1 // pred_fallthru
      _
    // Predicated region
    $region66: #{vae_forward.1} parent=1 // pred_check
      _
    $region67: #{vae_forward.1} parent=1 // pred_check_branch
      %131 = sbr.rel (0) target = $region69
    $region68: #{vae_forward.1} parent=1 // pred_region
      %132 = dma.done [#allocation3], 28672
    $region69: #{vae_forward.1} parent=1 // pred_fallthru
      _
    // Predicated region
    $region70: #{vae_forward.1} parent=1 // pred_check
      _
    $region71: #{vae_forward.1} parent=1 // pred_check_branch
      %134 = sbr.rel (0) target = $region73
    $region72: #{vae_forward.1} parent=1 // pred_region
      %135 = dma.done [#allocation5], 16384
    $region73: #{vae_forward.1} parent=1 // pred_fallthru
      _
    // Predicated region
    $region74: #{vae_forward.1} parent=1 // pred_check
      _
    $region75: #{vae_forward.1} parent=1 // pred_check_branch
      %137 = sbr.rel (0) target = $region77
    $region76: #{vae_forward.1} parent=1 // pred_region
      %138 = dma.done [#allocation5], 4096
    $region77: #{vae_forward.1} parent=1 // pred_fallthru
      _
    // Predicated region
    $region78: #{vae_forward.1} parent=1 // pred_check
      _
    $region79: #{vae_forward.1} parent=1 // pred_check_branch
      %140 = sbr.rel (0) target = $region81
    $region80: #{vae_forward.1} parent=1 // pred_region
      %141 = dma.done [#allocation8], 4096
    $region81: #{vae_forward.1} parent=1 // pred_fallthru
      _
    // Predicated region
    $region82: #{vae_forward.1} parent=1 // pred_check
      _
    $region83: #{vae_forward.1} parent=1 // pred_check_branch
      %143 = sbr.rel (0) target = $region85
    $region84: #{vae_forward.1} parent=1 // pred_region
      %144 = dma.done [#allocation8], 4096
    $region85: #{vae_forward.1} parent=1 // pred_fallthru
      _
    // Predicated region
    $region86: #{vae_forward.1} parent=1 // pred_check
      _
    $region87: #{vae_forward.1} parent=1 // pred_check_branch
      %146 = sbr.rel (0) target = $region89
    $region88: #{vae_forward.1} parent=1 // pred_region
      %147 = dma.done [#allocation11], 16384
    $region89: #{vae_forward.1} parent=1 // pred_fallthru
      _
    // Predicated region
    $region90: #{vae_forward.1} parent=1 // pred_check
      _
    $region91: #{vae_forward.1} parent=1 // pred_check_branch
      %149 = sbr.rel (0) target = $region93
    $region92: #{vae_forward.1} parent=1 // pred_region
      %150 = dma.done [#allocation11], 28672
    $region93: #{vae_forward.1} parent=1 // pred_fallthru
      _
    %v152 = vld [vmem:[%s0] sm:$0xff]
    %v153 = vld [vmem:[%s0 + $0x8] sm:$0xff]
    %v154 = vld [vmem:[%s0 + $0x10] sm:$0xff]
    %v155 = vld [vmem:[%s0 + $0x18] sm:$0xff]
    %v156 = vld [vmem:[%s0 + $0x20] sm:$0xff]
    %v157 = vld [vmem:[%s0 + $0x28] sm:$0xff]
    %v158 = vld [vmem:[%s0 + $0x30] sm:$0xff]
    %v159 = vpack.c.bf16 %v152, %v152
    %v160 = vpack.c.bf16 %v153, %v153
    %v161 = vpack.c.bf16 %v154, %v154
    %v162 = vpack.c.bf16 %v155, %v155
    %v163 = vpack.c.bf16 %v156, %v156
    %v164 = vpack.c.bf16 %v157, %v157
    %v165 = vpack.c.bf16 %v158, %v158
    %v166 = vld [vmem:[#allocation2] sm:$0xff]
    %v167 = vld [vmem:[#allocation2 + $0x8] sm:$0xff]
    %v168 = vld [vmem:[#allocation2 + $0x10] sm:$0xff]
    %v169 = vld [vmem:[#allocation2 + $0x18] sm:$0xff]
    %v170 = vld [vmem:[#allocation2 + $0x20] sm:$0xff]
    %v171 = vld [vmem:[#allocation2 + $0x28] sm:$0xff]
    %v172 = vld [vmem:[#allocation2 + $0x30] sm:$0xff]
    %v173 = vld [vmem:[#allocation2 + $0x38] sm:$0xff]
    %v174 = vld [vmem:[#allocation2 + $0x40] sm:$0xff]
    %v175 = vld [vmem:[#allocation2 + $0x48] sm:$0xff]
    %v176 = vld [vmem:[#allocation2 + $0x50] sm:$0xff]
    %v177 = vld [vmem:[#allocation2 + $0x58] sm:$0xff]
    %v178 = vld [vmem:[#allocation2 + $0x60] sm:$0xff]
    %v179 = vld [vmem:[#allocation2 + $0x68] sm:$0xff]
    %v180 = vld [vmem:[#allocation2 + $0x70] sm:$0xff]
    %v181 = vld [vmem:[#allocation2 + $0x78] sm:$0xff]
    %v182 = vld [vmem:[#allocation2 + $0x80] sm:$0xff]
    %v183 = vld [vmem:[#allocation2 + $0x88] sm:$0xff]
    %v184 = vld [vmem:[#allocation2 + $0x90] sm:$0xff]
    %v185 = vld [vmem:[#allocation2 + $0x98] sm:$0xff]
    %v186 = vld [vmem:[#allocation2 + $0xa0] sm:$0xff]
    %v187 = vld [vmem:[#allocation2 + $0xa8] sm:$0xff]
    %v188 = vld [vmem:[#allocation2 + $0xb0] sm:$0xff]
    %v189 = vld [vmem:[#allocation2 + $0xb8] sm:$0xff]
    %v190 = vld [vmem:[#allocation2 + $0xc0] sm:$0xff]
    %v191 = vld [vmem:[#allocation2 + $0xc8] sm:$0xff]
    %v192 = vld [vmem:[#allocation2 + $0xd0] sm:$0xff]
    %v193 = vld [vmem:[#allocation2 + $0xd8] sm:$0xff]
    %v194 = vld [vmem:[#allocation2 + $0xe0] sm:$0xff]
    %v195 = vld [vmem:[#allocation2 + $0xe8] sm:$0xff]
    %v196 = vld [vmem:[#allocation2 + $0xf0] sm:$0xff]
    %v197 = vld [vmem:[#allocation2 + $0xf8] sm:$0xff]
    %v198 = vld [vmem:[#allocation2 + $0x100] sm:$0xff]
    %v199 = vld [vmem:[#allocation2 + $0x108] sm:$0xff]
    %v200 = vld [vmem:[#allocation2 + $0x110] sm:$0xff]
    %v201 = vld [vmem:[#allocation2 + $0x118] sm:$0xff]
    %v202 = vld [vmem:[#allocation2 + $0x120] sm:$0xff]
    %v203 = vld [vmem:[#allocation2 + $0x128] sm:$0xff]
    %v204 = vld [vmem:[#allocation2 + $0x130] sm:$0xff]
    %v205 = vld [vmem:[#allocation2 + $0x138] sm:$0xff]
    %v206 = vld [vmem:[#allocation2 + $0x140] sm:$0xff]
    %v207 = vld [vmem:[#allocation2 + $0x148] sm:$0xff]
    %v208 = vld [vmem:[#allocation2 + $0x150] sm:$0xff]
    %v209 = vld [vmem:[#allocation2 + $0x158] sm:$0xff]
    %v210 = vld [vmem:[#allocation2 + $0x160] sm:$0xff]
    %v211 = vld [vmem:[#allocation2 + $0x168] sm:$0xff]
    %v212 = vld [vmem:[#allocation2 + $0x170] sm:$0xff]
    %v213 = vld [vmem:[#allocation2 + $0x178] sm:$0xff]
    %v214 = vld [vmem:[#allocation2 + $0x180] sm:$0xff]
    %v215 = vld [vmem:[#allocation2 + $0x188] sm:$0xff]
    %v216 = vld [vmem:[#allocation2 + $0x190] sm:$0xff]
    %v217 = vld [vmem:[#allocation2 + $0x198] sm:$0xff]
    %v218 = vld [vmem:[#allocation2 + $0x1a0] sm:$0xff]
    %v219 = vld [vmem:[#allocation2 + $0x1a8] sm:$0xff]
    %v220 = vld [vmem:[#allocation2 + $0x1b0] sm:$0xff]
    %v221 = vld [vmem:[#allocation2 + $0x1b8] sm:$0xff]
    %v222 = vld [vmem:[#allocation2 + $0x1c0] sm:$0xff]
    %v223 = vld [vmem:[#allocation2 + $0x1c8] sm:$0xff]
    %v224 = vld [vmem:[#allocation2 + $0x1d0] sm:$0xff]
    %v225 = vld [vmem:[#allocation2 + $0x1d8] sm:$0xff]
    %v226 = vld [vmem:[#allocation2 + $0x1e0] sm:$0xff]
    %v227 = vld [vmem:[#allocation2 + $0x1e8] sm:$0xff]
    %v228 = vld [vmem:[#allocation2 + $0x1f0] sm:$0xff]
    %v229 = vld [vmem:[#allocation2 + $0x1f8] sm:$0xff]
    %v230 = vld [vmem:[#allocation2 + $0x200] sm:$0xff]
    %v231 = vld [vmem:[#allocation2 + $0x208] sm:$0xff]
    %v232 = vld [vmem:[#allocation2 + $0x210] sm:$0xff]
    %v233 = vld [vmem:[#allocation2 + $0x218] sm:$0xff]
    %v234 = vld [vmem:[#allocation2 + $0x220] sm:$0xff]
    %v235 = vld [vmem:[#allocation2 + $0x228] sm:$0xff]
    %v236 = vld [vmem:[#allocation2 + $0x230] sm:$0xff]
    %v237 = vld [vmem:[#allocation2 + $0x238] sm:$0xff]
    %v238 = vld [vmem:[#allocation2 + $0x240] sm:$0xff]
    %v239 = vld [vmem:[#allocation2 + $0x248] sm:$0xff]
    %v240 = vld [vmem:[#allocation2 + $0x250] sm:$0xff]
    %v241 = vld [vmem:[#allocation2 + $0x258] sm:$0xff]
    %v242 = vld [vmem:[#allocation2 + $0x260] sm:$0xff]
    %v243 = vld [vmem:[#allocation2 + $0x268] sm:$0xff]
    %v244 = vld [vmem:[#allocation2 + $0x270] sm:$0xff]
    %v245 = vld [vmem:[#allocation2 + $0x278] sm:$0xff]
    %v246 = vld [vmem:[#allocation2 + $0x280] sm:$0xff]
    %v247 = vld [vmem:[#allocation2 + $0x288] sm:$0xff]
    %v248 = vld [vmem:[#allocation2 + $0x290] sm:$0xff]
    %v249 = vld [vmem:[#allocation2 + $0x298] sm:$0xff]
    %v250 = vld [vmem:[#allocation2 + $0x2a0] sm:$0xff]
    %v251 = vld [vmem:[#allocation2 + $0x2a8] sm:$0xff]
    %v252 = vld [vmem:[#allocation2 + $0x2b0] sm:$0xff]
    %v253 = vld [vmem:[#allocation2 + $0x2b8] sm:$0xff]
    %v254 = vld [vmem:[#allocation2 + $0x2c0] sm:$0xff]
    %v255 = vld [vmem:[#allocation2 + $0x2c8] sm:$0xff]
    %v256 = vld [vmem:[#allocation2 + $0x2d0] sm:$0xff]
    %v257 = vld [vmem:[#allocation2 + $0x2d8] sm:$0xff]
    %v258 = vld [vmem:[#allocation2 + $0x2e0] sm:$0xff]
    %v259 = vld [vmem:[#allocation2 + $0x2e8] sm:$0xff]
    %v260 = vld [vmem:[#allocation2 + $0x2f0] sm:$0xff]
    %v261 = vld [vmem:[#allocation2 + $0x2f8] sm:$0xff]
    %v262 = vld [vmem:[#allocation2 + $0x300] sm:$0xff]
    %v263 = vld [vmem:[#allocation2 + $0x308] sm:$0xff]
    %v264 = vld [vmem:[#allocation2 + $0x310] sm:$0xff]
    %v265 = vld [vmem:[#allocation2 + $0x318] sm:$0xff]
    %v266 = vld [vmem:[#allocation2 + $0x320] sm:$0xff]
    %v267 = vld [vmem:[#allocation2 + $0x328] sm:$0xff]
    %v268 = vld [vmem:[#allocation2 + $0x330] sm:$0xff]
    %v269 = vld [vmem:[#allocation2 + $0x338] sm:$0xff]
    %v270 = vld [vmem:[#allocation2 + $0x340] sm:$0xff]
    %v271 = vld [vmem:[#allocation2 + $0x348] sm:$0xff]
    %v272 = vld [vmem:[#allocation2 + $0x350] sm:$0xff]
    %v273 = vld [vmem:[#allocation2 + $0x358] sm:$0xff]
    %v274 = vld [vmem:[#allocation2 + $0x360] sm:$0xff]
    %v275 = vld [vmem:[#allocation2 + $0x368] sm:$0xff]
    %v276 = vld [vmem:[#allocation2 + $0x370] sm:$0xff]
    %v277 = vld [vmem:[#allocation2 + $0x378] sm:$0xff]
    %v278 = vld [vmem:[#allocation2 + $0x380] sm:$0xff]
    %v279 = vld [vmem:[#allocation2 + $0x388] sm:$0xff]
    %v280 = vld [vmem:[#allocation2 + $0x390] sm:$0xff]
    %v281 = vld [vmem:[#allocation2 + $0x398] sm:$0xff]
    %v282 = vld [vmem:[#allocation2 + $0x3a0] sm:$0xff]
    %v283 = vld [vmem:[#allocation2 + $0x3a8] sm:$0xff]
    %v284 = vld [vmem:[#allocation2 + $0x3b0] sm:$0xff]
    %v285 = vld [vmem:[#allocation2 + $0x3b8] sm:$0xff]
    %v286 = vld [vmem:[#allocation2 + $0x3c0] sm:$0xff]
    %v287 = vld [vmem:[#allocation2 + $0x3c8] sm:$0xff]
    %v288 = vld [vmem:[#allocation2 + $0x3d0] sm:$0xff]
    %v289 = vld [vmem:[#allocation2 + $0x3d8] sm:$0xff]
    %v290 = vld [vmem:[#allocation2 + $0x3e0] sm:$0xff]
    %v291 = vld [vmem:[#allocation2 + $0x3e8] sm:$0xff]
    %v292 = vld [vmem:[#allocation2 + $0x3f0] sm:$0xff]
    %v293 = vld [vmem:[#allocation2 + $0x3f8] sm:$0xff]
    %v294 = vld [vmem:[#allocation2 + $0x400] sm:$0xff]
    %v295 = vld [vmem:[#allocation2 + $0x408] sm:$0xff]
    %v296 = vld [vmem:[#allocation2 + $0x410] sm:$0xff]
    %v297 = vld [vmem:[#allocation2 + $0x418] sm:$0xff]
    %v298 = vld [vmem:[#allocation2 + $0x420] sm:$0xff]
    %v299 = vld [vmem:[#allocation2 + $0x428] sm:$0xff]
    %v300 = vld [vmem:[#allocation2 + $0x430] sm:$0xff]
    %v301 = vld [vmem:[#allocation2 + $0x438] sm:$0xff]
    %v302 = vld [vmem:[#allocation2 + $0x440] sm:$0xff]
    %v303 = vld [vmem:[#allocation2 + $0x448] sm:$0xff]
    %v304 = vld [vmem:[#allocation2 + $0x450] sm:$0xff]
    %v305 = vld [vmem:[#allocation2 + $0x458] sm:$0xff]
    %v306 = vld [vmem:[#allocation2 + $0x460] sm:$0xff]
    %v307 = vld [vmem:[#allocation2 + $0x468] sm:$0xff]
    %v308 = vld [vmem:[#allocation2 + $0x470] sm:$0xff]
    %v309 = vld [vmem:[#allocation2 + $0x478] sm:$0xff]
    %v310 = vld [vmem:[#allocation2 + $0x480] sm:$0xff]
    %v311 = vld [vmem:[#allocation2 + $0x488] sm:$0xff]
    %v312 = vld [vmem:[#allocation2 + $0x490] sm:$0xff]
    %v313 = vld [vmem:[#allocation2 + $0x498] sm:$0xff]
    %v314 = vld [vmem:[#allocation2 + $0x4a0] sm:$0xff]
    %v315 = vld [vmem:[#allocation2 + $0x4a8] sm:$0xff]
    %v316 = vld [vmem:[#allocation2 + $0x4b0] sm:$0xff]
    %v317 = vld [vmem:[#allocation2 + $0x4b8] sm:$0xff]
    %v318 = vld [vmem:[#allocation2 + $0x4c0] sm:$0xff]
    %v319 = vld [vmem:[#allocation2 + $0x4c8] sm:$0xff]
    %v320 = vld [vmem:[#allocation2 + $0x4d0] sm:$0xff]
    %v321 = vld [vmem:[#allocation2 + $0x4d8] sm:$0xff]
    %v322 = vld [vmem:[#allocation2 + $0x4e0] sm:$0xff]
    %v323 = vld [vmem:[#allocation2 + $0x4e8] sm:$0xff]
    %v324 = vld [vmem:[#allocation2 + $0x4f0] sm:$0xff]
    %v325 = vld [vmem:[#allocation2 + $0x4f8] sm:$0xff]
    %v326 = vld [vmem:[#allocation2 + $0x500] sm:$0xff]
    %v327 = vld [vmem:[#allocation2 + $0x508] sm:$0xff]
    %v328 = vld [vmem:[#allocation2 + $0x510] sm:$0xff]
    %v329 = vld [vmem:[#allocation2 + $0x518] sm:$0xff]
    %v330 = vld [vmem:[#allocation2 + $0x520] sm:$0xff]
    %v331 = vld [vmem:[#allocation2 + $0x528] sm:$0xff]
    %v332 = vld [vmem:[#allocation2 + $0x530] sm:$0xff]
    %v333 = vld [vmem:[#allocation2 + $0x538] sm:$0xff]
    %v334 = vld [vmem:[#allocation2 + $0x540] sm:$0xff]
    %v335 = vld [vmem:[#allocation2 + $0x548] sm:$0xff]
    %v336 = vld [vmem:[#allocation2 + $0x550] sm:$0xff]
    %v337 = vld [vmem:[#allocation2 + $0x558] sm:$0xff]
    %v338 = vld [vmem:[#allocation2 + $0x560] sm:$0xff]
    %v339 = vld [vmem:[#allocation2 + $0x568] sm:$0xff]
    %v340 = vld [vmem:[#allocation2 + $0x570] sm:$0xff]
    %v341 = vld [vmem:[#allocation2 + $0x578] sm:$0xff]
    %v342 = vld [vmem:[#allocation2 + $0x580] sm:$0xff]
    %v343 = vld [vmem:[#allocation2 + $0x588] sm:$0xff]
    %v344 = vld [vmem:[#allocation2 + $0x590] sm:$0xff]
    %v345 = vld [vmem:[#allocation2 + $0x598] sm:$0xff]
    %v346 = vld [vmem:[#allocation2 + $0x5a0] sm:$0xff]
    %v347 = vld [vmem:[#allocation2 + $0x5a8] sm:$0xff]
    %v348 = vld [vmem:[#allocation2 + $0x5b0] sm:$0xff]
    %v349 = vld [vmem:[#allocation2 + $0x5b8] sm:$0xff]
    %v350 = vld [vmem:[#allocation2 + $0x5c0] sm:$0xff]
    %v351 = vld [vmem:[#allocation2 + $0x5c8] sm:$0xff]
    %v352 = vld [vmem:[#allocation2 + $0x5d0] sm:$0xff]
    %v353 = vld [vmem:[#allocation2 + $0x5d8] sm:$0xff]
    %v354 = vld [vmem:[#allocation2 + $0x5e0] sm:$0xff]
    %v355 = vld [vmem:[#allocation2 + $0x5e8] sm:$0xff]
    %v356 = vld [vmem:[#allocation2 + $0x5f0] sm:$0xff]
    %v357 = vld [vmem:[#allocation2 + $0x5f8] sm:$0xff]
    %v358 = vld [vmem:[#allocation2 + $0x600] sm:$0xff]
    %v359 = vld [vmem:[#allocation2 + $0x608] sm:$0xff]
    %v360 = vld [vmem:[#allocation2 + $0x610] sm:$0xff]
    %v361 = vld [vmem:[#allocation2 + $0x618] sm:$0xff]
    %v362 = vld [vmem:[#allocation2 + $0x620] sm:$0xff]
    %v363 = vld [vmem:[#allocation2 + $0x628] sm:$0xff]
    %v364 = vld [vmem:[#allocation2 + $0x630] sm:$0xff]
    %v365 = vld [vmem:[#allocation2 + $0x638] sm:$0xff]
    %v366 = vld [vmem:[#allocation2 + $0x640] sm:$0xff]
    %v367 = vld [vmem:[#allocation2 + $0x648] sm:$0xff]
    %v368 = vld [vmem:[#allocation2 + $0x650] sm:$0xff]
    %v369 = vld [vmem:[#allocation2 + $0x658] sm:$0xff]
    %v370 = vld [vmem:[#allocation2 + $0x660] sm:$0xff]
    %v371 = vld [vmem:[#allocation2 + $0x668] sm:$0xff]
    %v372 = vld [vmem:[#allocation2 + $0x670] sm:$0xff]
    %v373 = vld [vmem:[#allocation2 + $0x678] sm:$0xff]
    %v374 = vld [vmem:[#allocation2 + $0x680] sm:$0xff]
    %v375 = vld [vmem:[#allocation2 + $0x688] sm:$0xff]
    %v376 = vld [vmem:[#allocation2 + $0x690] sm:$0xff]
    %v377 = vld [vmem:[#allocation2 + $0x698] sm:$0xff]
    %v378 = vld [vmem:[#allocation2 + $0x6a0] sm:$0xff]
    %v379 = vld [vmem:[#allocation2 + $0x6a8] sm:$0xff]
    %v380 = vld [vmem:[#allocation2 + $0x6b0] sm:$0xff]
    %v381 = vld [vmem:[#allocation2 + $0x6b8] sm:$0xff]
    %v382 = vld [vmem:[#allocation2 + $0x6c0] sm:$0xff]
    %v383 = vld [vmem:[#allocation2 + $0x6c8] sm:$0xff]
    %v384 = vld [vmem:[#allocation2 + $0x6d0] sm:$0xff]
    %v385 = vld [vmem:[#allocation2 + $0x6d8] sm:$0xff]
    %v386 = vld [vmem:[#allocation2 + $0x6e0] sm:$0xff]
    %v387 = vld [vmem:[#allocation2 + $0x6e8] sm:$0xff]
    %v388 = vld [vmem:[#allocation2 + $0x6f0] sm:$0xff]
    %v389 = vld [vmem:[#allocation2 + $0x6f8] sm:$0xff]
    %v390 = vld [vmem:[%s3] sm:$0xf]
    %v392 = vlaneseq
    %v393 = vshrl.u32 %v392, 7
    %v394 = vsub.s32 0, %v393
    %v395 = vrot.slane %v390, %v394
    %v396 = vlaneseq
    %v397 = vshrl.u32 %v396, 7
    %v398 = vsub.s32 1, %v397
    %v399 = vrot.slane %v390, %v398
    %v400 = vlaneseq
    %v401 = vshrl.u32 %v400, 7
    %v402 = vsub.s32 2, %v401
    %v403 = vrot.slane %v390, %v402
    %v404 = vlaneseq
    %v405 = vshrl.u32 %v404, 7
    %v406 = vsub.s32 3, %v405
    %v407 = vrot.slane %v390, %v406
    %v636 = vunpack.c.l.b16 %v166
    %v637 = vunpack.c.h.b16 %v166
    %v638 = vunpack.c.l.b16 %v167
    %v639 = vunpack.c.h.b16 %v167
    %v640 = vunpack.c.l.b16 %v168
    %v641 = vunpack.c.h.b16 %v168
    %v642 = vunpack.c.l.b16 %v169
    %v643 = vunpack.c.h.b16 %v169
    %v644 = vunpack.c.l.b16 %v170
    %v645 = vunpack.c.h.b16 %v170
    %v646 = vunpack.c.l.b16 %v171
    %v647 = vunpack.c.h.b16 %v171
    %v648 = vunpack.c.l.b16 %v172
    %v649 = vunpack.c.h.b16 %v172
    %v650 = vunpack.c.l.b16 %v173
    %v651 = vunpack.c.h.b16 %v173
    %v652 = vunpack.c.l.b16 %v174
    %v653 = vunpack.c.h.b16 %v174
    %v654 = vunpack.c.l.b16 %v175
    %v655 = vunpack.c.h.b16 %v175
    %v656 = vunpack.c.l.b16 %v176
    %v657 = vunpack.c.h.b16 %v176
    %v658 = vunpack.c.l.b16 %v177
    %v659 = vunpack.c.h.b16 %v177
    %v660 = vunpack.c.l.b16 %v178
    %v661 = vunpack.c.h.b16 %v178
    %v662 = vunpack.c.l.b16 %v179
    %v663 = vunpack.c.h.b16 %v179
    %v664 = vunpack.c.l.b16 %v180
    %v665 = vunpack.c.h.b16 %v180
    %v666 = vunpack.c.l.b16 %v181
    %v667 = vunpack.c.h.b16 %v181
    %v668 = vunpack.c.l.b16 %v182
    %v669 = vunpack.c.h.b16 %v182
    %v670 = vunpack.c.l.b16 %v183
    %v671 = vunpack.c.h.b16 %v183
    %v672 = vunpack.c.l.b16 %v184
    %v673 = vunpack.c.h.b16 %v184
    %v674 = vunpack.c.l.b16 %v185
    %v675 = vunpack.c.h.b16 %v185
    %v676 = vunpack.c.l.b16 %v186
    %v677 = vunpack.c.h.b16 %v186
    %v678 = vunpack.c.l.b16 %v187
    %v679 = vunpack.c.h.b16 %v187
    %v680 = vunpack.c.l.b16 %v188
    %v681 = vunpack.c.h.b16 %v188
    %v682 = vunpack.c.l.b16 %v189
    %v683 = vunpack.c.h.b16 %v189
    %v684 = vunpack.c.l.b16 %v190
    %v685 = vunpack.c.h.b16 %v190
    %v686 = vunpack.c.l.b16 %v191
    %v687 = vunpack.c.h.b16 %v191
    %v688 = vunpack.c.l.b16 %v192
    %v689 = vunpack.c.h.b16 %v192
    %v690 = vunpack.c.l.b16 %v193
    %v691 = vunpack.c.h.b16 %v193
    %v692 = vunpack.c.l.b16 %v194
    %v693 = vunpack.c.h.b16 %v194
    %v694 = vunpack.c.l.b16 %v195
    %v695 = vunpack.c.h.b16 %v195
    %v696 = vunpack.c.l.b16 %v196
    %v697 = vunpack.c.h.b16 %v196
    %v698 = vunpack.c.l.b16 %v197
    %v699 = vunpack.c.h.b16 %v197
    %v700 = vunpack.c.l.b16 %v198
    %v701 = vunpack.c.h.b16 %v198
    %v702 = vunpack.c.l.b16 %v199
    %v703 = vunpack.c.h.b16 %v199
    %v704 = vunpack.c.l.b16 %v200
    %v705 = vunpack.c.h.b16 %v200
    %v706 = vunpack.c.l.b16 %v201
    %v707 = vunpack.c.h.b16 %v201
    %v708 = vunpack.c.l.b16 %v202
    %v709 = vunpack.c.h.b16 %v202
    %v710 = vunpack.c.l.b16 %v203
    %v711 = vunpack.c.h.b16 %v203
    %v712 = vunpack.c.l.b16 %v204
    %v713 = vunpack.c.h.b16 %v204
    %v714 = vunpack.c.l.b16 %v205
    %v715 = vunpack.c.h.b16 %v205
    %v716 = vunpack.c.l.b16 %v206
    %v717 = vunpack.c.h.b16 %v206
    %v718 = vunpack.c.l.b16 %v207
    %v719 = vunpack.c.h.b16 %v207
    %v720 = vunpack.c.l.b16 %v208
    %v721 = vunpack.c.h.b16 %v208
    %v722 = vunpack.c.l.b16 %v209
    %v723 = vunpack.c.h.b16 %v209
    %v724 = vunpack.c.l.b16 %v210
    %v725 = vunpack.c.h.b16 %v210
    %v726 = vunpack.c.l.b16 %v211
    %v727 = vunpack.c.h.b16 %v211
    %v728 = vunpack.c.l.b16 %v212
    %v729 = vunpack.c.h.b16 %v212
    %v730 = vunpack.c.l.b16 %v213
    %v731 = vunpack.c.h.b16 %v213
    %v732 = vunpack.c.l.b16 %v214
    %v733 = vunpack.c.h.b16 %v214
    %v734 = vunpack.c.l.b16 %v215
    %v735 = vunpack.c.h.b16 %v215
    %v736 = vunpack.c.l.b16 %v216
    %v737 = vunpack.c.h.b16 %v216
    %v738 = vunpack.c.l.b16 %v217
    %v739 = vunpack.c.h.b16 %v217
    %v740 = vunpack.c.l.b16 %v218
    %v741 = vunpack.c.h.b16 %v218
    %v742 = vunpack.c.l.b16 %v219
    %v743 = vunpack.c.h.b16 %v219
    %v744 = vunpack.c.l.b16 %v220
    %v745 = vunpack.c.h.b16 %v220
    %v746 = vunpack.c.l.b16 %v221
    %v747 = vunpack.c.h.b16 %v221
    %v748 = vunpack.c.l.b16 %v222
    %v749 = vunpack.c.h.b16 %v222
    %v750 = vunpack.c.l.b16 %v223
    %v751 = vunpack.c.h.b16 %v223
    %v752 = vunpack.c.l.b16 %v224
    %v753 = vunpack.c.h.b16 %v224
    %v754 = vunpack.c.l.b16 %v225
    %v755 = vunpack.c.h.b16 %v225
    %v756 = vunpack.c.l.b16 %v226
    %v757 = vunpack.c.h.b16 %v226
    %v758 = vunpack.c.l.b16 %v227
    %v759 = vunpack.c.h.b16 %v227
    %v760 = vunpack.c.l.b16 %v228
    %v761 = vunpack.c.h.b16 %v228
    %v762 = vunpack.c.l.b16 %v229
    %v763 = vunpack.c.h.b16 %v229
    %v764 = vunpack.c.l.b16 %v230
    %v765 = vunpack.c.h.b16 %v230
    %v766 = vunpack.c.l.b16 %v231
    %v767 = vunpack.c.h.b16 %v231
    %v768 = vunpack.c.l.b16 %v232
    %v769 = vunpack.c.h.b16 %v232
    %v770 = vunpack.c.l.b16 %v233
    %v771 = vunpack.c.h.b16 %v233
    %v772 = vunpack.c.l.b16 %v234
    %v773 = vunpack.c.h.b16 %v234
    %v774 = vunpack.c.l.b16 %v235
    %v775 = vunpack.c.h.b16 %v235
    %v776 = vunpack.c.l.b16 %v236
    %v777 = vunpack.c.h.b16 %v236
    %v778 = vunpack.c.l.b16 %v237
    %v779 = vunpack.c.h.b16 %v237
    %v780 = vunpack.c.l.b16 %v238
    %v781 = vunpack.c.h.b16 %v238
    %v782 = vunpack.c.l.b16 %v239
    %v783 = vunpack.c.h.b16 %v239
    %v784 = vunpack.c.l.b16 %v240
    %v785 = vunpack.c.h.b16 %v240
    %v786 = vunpack.c.l.b16 %v241
    %v787 = vunpack.c.h.b16 %v241
    %v788 = vunpack.c.l.b16 %v242
    %v789 = vunpack.c.h.b16 %v242
    %v790 = vunpack.c.l.b16 %v243
    %v791 = vunpack.c.h.b16 %v243
    %v792 = vunpack.c.l.b16 %v244
    %v793 = vunpack.c.h.b16 %v244
    %v794 = vunpack.c.l.b16 %v245
    %v795 = vunpack.c.h.b16 %v245
    %v796 = vunpack.c.l.b16 %v246
    %v797 = vunpack.c.h.b16 %v246
    %v798 = vunpack.c.l.b16 %v247
    %v799 = vunpack.c.h.b16 %v247
    %v800 = vunpack.c.l.b16 %v248
    %v801 = vunpack.c.h.b16 %v248
    %v802 = vunpack.c.l.b16 %v249
    %v803 = vunpack.c.h.b16 %v249
    %v804 = vunpack.c.l.b16 %v250
    %v805 = vunpack.c.h.b16 %v250
    %v806 = vunpack.c.l.b16 %v251
    %v807 = vunpack.c.h.b16 %v251
    %v808 = vunpack.c.l.b16 %v252
    %v809 = vunpack.c.h.b16 %v252
    %v810 = vunpack.c.l.b16 %v253
    %v811 = vunpack.c.h.b16 %v253
    %v812 = vunpack.c.l.b16 %v254
    %v813 = vunpack.c.h.b16 %v254
    %v814 = vunpack.c.l.b16 %v255
    %v815 = vunpack.c.h.b16 %v255
    %v816 = vunpack.c.l.b16 %v256
    %v817 = vunpack.c.h.b16 %v256
    %v818 = vunpack.c.l.b16 %v257
    %v819 = vunpack.c.h.b16 %v257
    %v820 = vunpack.c.l.b16 %v258
    %v821 = vunpack.c.h.b16 %v258
    %v822 = vunpack.c.l.b16 %v259
    %v823 = vunpack.c.h.b16 %v259
    %v824 = vunpack.c.l.b16 %v260
    %v825 = vunpack.c.h.b16 %v260
    %v826 = vunpack.c.l.b16 %v261
    %v827 = vunpack.c.h.b16 %v261
    %v828 = vunpack.c.l.b16 %v262
    %v829 = vunpack.c.h.b16 %v262
    %v830 = vunpack.c.l.b16 %v263
    %v831 = vunpack.c.h.b16 %v263
    %v832 = vunpack.c.l.b16 %v264
    %v833 = vunpack.c.h.b16 %v264
    %v834 = vunpack.c.l.b16 %v265
    %v835 = vunpack.c.h.b16 %v265
    %v836 = vunpack.c.l.b16 %v266
    %v837 = vunpack.c.h.b16 %v266
    %v838 = vunpack.c.l.b16 %v267
    %v839 = vunpack.c.h.b16 %v267
    %v840 = vunpack.c.l.b16 %v268
    %v841 = vunpack.c.h.b16 %v268
    %v842 = vunpack.c.l.b16 %v269
    %v843 = vunpack.c.h.b16 %v269
    %v844 = vunpack.c.l.b16 %v270
    %v845 = vunpack.c.h.b16 %v270
    %v846 = vunpack.c.l.b16 %v271
    %v847 = vunpack.c.h.b16 %v271
    %v848 = vunpack.c.l.b16 %v272
    %v849 = vunpack.c.h.b16 %v272
    %v850 = vunpack.c.l.b16 %v273
    %v851 = vunpack.c.h.b16 %v273
    %v852 = vunpack.c.l.b16 %v274
    %v853 = vunpack.c.h.b16 %v274
    %v854 = vunpack.c.l.b16 %v275
    %v855 = vunpack.c.h.b16 %v275
    %v856 = vunpack.c.l.b16 %v276
    %v857 = vunpack.c.h.b16 %v276
    %v858 = vunpack.c.l.b16 %v277
    %v859 = vunpack.c.h.b16 %v277
    %v860 = vunpack.c.l.b16 %v278
    %v861 = vunpack.c.h.b16 %v278
    %v862 = vunpack.c.l.b16 %v279
    %v863 = vunpack.c.h.b16 %v279
    %v864 = vunpack.c.l.b16 %v280
    %v865 = vunpack.c.h.b16 %v280
    %v866 = vunpack.c.l.b16 %v281
    %v867 = vunpack.c.h.b16 %v281
    %v868 = vunpack.c.l.b16 %v282
    %v869 = vunpack.c.h.b16 %v282
    %v870 = vunpack.c.l.b16 %v283
    %v871 = vunpack.c.h.b16 %v283
    %v872 = vunpack.c.l.b16 %v284
    %v873 = vunpack.c.h.b16 %v284
    %v874 = vunpack.c.l.b16 %v285
    %v875 = vunpack.c.h.b16 %v285
    %v876 = vunpack.c.l.b16 %v286
    %v877 = vunpack.c.h.b16 %v286
    %v878 = vunpack.c.l.b16 %v287
    %v879 = vunpack.c.h.b16 %v287
    %v880 = vunpack.c.l.b16 %v288
    %v881 = vunpack.c.h.b16 %v288
    %v882 = vunpack.c.l.b16 %v289
    %v883 = vunpack.c.h.b16 %v289
    %v884 = vunpack.c.l.b16 %v290
    %v885 = vunpack.c.h.b16 %v290
    %v886 = vunpack.c.l.b16 %v291
    %v887 = vunpack.c.h.b16 %v291
    %v888 = vunpack.c.l.b16 %v292
    %v889 = vunpack.c.h.b16 %v292
    %v890 = vunpack.c.l.b16 %v293
    %v891 = vunpack.c.h.b16 %v293
    %v892 = vunpack.c.l.b16 %v294
    %v893 = vunpack.c.h.b16 %v294
    %v894 = vunpack.c.l.b16 %v295
    %v895 = vunpack.c.h.b16 %v295
    %v896 = vunpack.c.l.b16 %v296
    %v897 = vunpack.c.h.b16 %v296
    %v898 = vunpack.c.l.b16 %v297
    %v899 = vunpack.c.h.b16 %v297
    %v900 = vunpack.c.l.b16 %v298
    %v901 = vunpack.c.h.b16 %v298
    %v902 = vunpack.c.l.b16 %v299
    %v903 = vunpack.c.h.b16 %v299
    %v904 = vunpack.c.l.b16 %v300
    %v905 = vunpack.c.h.b16 %v300
    %v906 = vunpack.c.l.b16 %v301
    %v907 = vunpack.c.h.b16 %v301
    %v908 = vunpack.c.l.b16 %v302
    %v909 = vunpack.c.h.b16 %v302
    %v910 = vunpack.c.l.b16 %v303
    %v911 = vunpack.c.h.b16 %v303
    %v912 = vunpack.c.l.b16 %v304
    %v913 = vunpack.c.h.b16 %v304
    %v914 = vunpack.c.l.b16 %v305
    %v915 = vunpack.c.h.b16 %v305
    %v916 = vunpack.c.l.b16 %v306
    %v917 = vunpack.c.h.b16 %v306
    %v918 = vunpack.c.l.b16 %v307
    %v919 = vunpack.c.h.b16 %v307
    %v920 = vunpack.c.l.b16 %v308
    %v921 = vunpack.c.h.b16 %v308
    %v922 = vunpack.c.l.b16 %v309
    %v923 = vunpack.c.h.b16 %v309
    %v924 = vunpack.c.l.b16 %v310
    %v925 = vunpack.c.h.b16 %v310
    %v926 = vunpack.c.l.b16 %v311
    %v927 = vunpack.c.h.b16 %v311
    %v928 = vunpack.c.l.b16 %v312
    %v929 = vunpack.c.h.b16 %v312
    %v930 = vunpack.c.l.b16 %v313
    %v931 = vunpack.c.h.b16 %v313
    %v932 = vunpack.c.l.b16 %v314
    %v933 = vunpack.c.h.b16 %v314
    %v934 = vunpack.c.l.b16 %v315
    %v935 = vunpack.c.h.b16 %v315
    %v936 = vunpack.c.l.b16 %v316
    %v937 = vunpack.c.h.b16 %v316
    %v938 = vunpack.c.l.b16 %v317
    %v939 = vunpack.c.h.b16 %v317
    %v940 = vunpack.c.l.b16 %v318
    %v941 = vunpack.c.h.b16 %v318
    %v942 = vunpack.c.l.b16 %v319
    %v943 = vunpack.c.h.b16 %v319
    %v944 = vunpack.c.l.b16 %v320
    %v945 = vunpack.c.h.b16 %v320
    %v946 = vunpack.c.l.b16 %v321
    %v947 = vunpack.c.h.b16 %v321
    %v948 = vunpack.c.l.b16 %v322
    %v949 = vunpack.c.h.b16 %v322
    %v950 = vunpack.c.l.b16 %v323
    %v951 = vunpack.c.h.b16 %v323
    %v952 = vunpack.c.l.b16 %v324
    %v953 = vunpack.c.h.b16 %v324
    %v954 = vunpack.c.l.b16 %v325
    %v955 = vunpack.c.h.b16 %v325
    %v956 = vunpack.c.l.b16 %v326
    %v957 = vunpack.c.h.b16 %v326
    %v958 = vunpack.c.l.b16 %v327
    %v959 = vunpack.c.h.b16 %v327
    %v960 = vunpack.c.l.b16 %v328
    %v961 = vunpack.c.h.b16 %v328
    %v962 = vunpack.c.l.b16 %v329
    %v963 = vunpack.c.h.b16 %v329
    %v964 = vunpack.c.l.b16 %v330
    %v965 = vunpack.c.h.b16 %v330
    %v966 = vunpack.c.l.b16 %v331
    %v967 = vunpack.c.h.b16 %v331
    %v968 = vunpack.c.l.b16 %v332
    %v969 = vunpack.c.h.b16 %v332
    %v970 = vunpack.c.l.b16 %v333
    %v971 = vunpack.c.h.b16 %v333
    %v972 = vunpack.c.l.b16 %v334
    %v973 = vunpack.c.h.b16 %v334
    %v974 = vunpack.c.l.b16 %v335
    %v975 = vunpack.c.h.b16 %v335
    %v976 = vunpack.c.l.b16 %v336
    %v977 = vunpack.c.h.b16 %v336
    %v978 = vunpack.c.l.b16 %v337
    %v979 = vunpack.c.h.b16 %v337
    %v980 = vunpack.c.l.b16 %v338
    %v981 = vunpack.c.h.b16 %v338
    %v982 = vunpack.c.l.b16 %v339
    %v983 = vunpack.c.h.b16 %v339
    %v984 = vunpack.c.l.b16 %v340
    %v985 = vunpack.c.h.b16 %v340
    %v986 = vunpack.c.l.b16 %v341
    %v987 = vunpack.c.h.b16 %v341
    %v988 = vunpack.c.l.b16 %v342
    %v989 = vunpack.c.h.b16 %v342
    %v990 = vunpack.c.l.b16 %v343
    %v991 = vunpack.c.h.b16 %v343
    %v992 = vunpack.c.l.b16 %v344
    %v993 = vunpack.c.h.b16 %v344
    %v994 = vunpack.c.l.b16 %v345
    %v995 = vunpack.c.h.b16 %v345
    %v996 = vunpack.c.l.b16 %v346
    %v997 = vunpack.c.h.b16 %v346
    %v998 = vunpack.c.l.b16 %v347
    %v999 = vunpack.c.h.b16 %v347
    %v1000 = vunpack.c.l.b16 %v348
    %v1001 = vunpack.c.h.b16 %v348
    %v1002 = vunpack.c.l.b16 %v349
    %v1003 = vunpack.c.h.b16 %v349
    %v1004 = vunpack.c.l.b16 %v350
    %v1005 = vunpack.c.h.b16 %v350
    %v1006 = vunpack.c.l.b16 %v351
    %v1007 = vunpack.c.h.b16 %v351
    %v1008 = vunpack.c.l.b16 %v352
    %v1009 = vunpack.c.h.b16 %v352
    %v1010 = vunpack.c.l.b16 %v353
    %v1011 = vunpack.c.h.b16 %v353
    %v1012 = vunpack.c.l.b16 %v354
    %v1013 = vunpack.c.h.b16 %v354
    %v1014 = vunpack.c.l.b16 %v355
    %v1015 = vunpack.c.h.b16 %v355
    %v1016 = vunpack.c.l.b16 %v356
    %v1017 = vunpack.c.h.b16 %v356
    %v1018 = vunpack.c.l.b16 %v357
    %v1019 = vunpack.c.h.b16 %v357
    %v1020 = vunpack.c.l.b16 %v358
    %v1021 = vunpack.c.h.b16 %v358
    %v1022 = vunpack.c.l.b16 %v359
    %v1023 = vunpack.c.h.b16 %v359
    %v1024 = vunpack.c.l.b16 %v360
    %v1025 = vunpack.c.h.b16 %v360
    %v1026 = vunpack.c.l.b16 %v361
    %v1027 = vunpack.c.h.b16 %v361
    %v1028 = vunpack.c.l.b16 %v362
    %v1029 = vunpack.c.h.b16 %v362
    %v1030 = vunpack.c.l.b16 %v363
    %v1031 = vunpack.c.h.b16 %v363
    %v1032 = vunpack.c.l.b16 %v364
    %v1033 = vunpack.c.h.b16 %v364
    %v1034 = vunpack.c.l.b16 %v365
    %v1035 = vunpack.c.h.b16 %v365
    %v1036 = vunpack.c.l.b16 %v366
    %v1037 = vunpack.c.h.b16 %v366
    %v1038 = vunpack.c.l.b16 %v367
    %v1039 = vunpack.c.h.b16 %v367
    %v1040 = vunpack.c.l.b16 %v368
    %v1041 = vunpack.c.h.b16 %v368
    %v1042 = vunpack.c.l.b16 %v369
    %v1043 = vunpack.c.h.b16 %v369
    %v1044 = vunpack.c.l.b16 %v370
    %v1045 = vunpack.c.h.b16 %v370
    %v1046 = vunpack.c.l.b16 %v371
    %v1047 = vunpack.c.h.b16 %v371
    %v1048 = vunpack.c.l.b16 %v372
    %v1049 = vunpack.c.h.b16 %v372
    %v1050 = vunpack.c.l.b16 %v373
    %v1051 = vunpack.c.h.b16 %v373
    %v1052 = vunpack.c.l.b16 %v374
    %v1053 = vunpack.c.h.b16 %v374
    %v1054 = vunpack.c.l.b16 %v375
    %v1055 = vunpack.c.h.b16 %v375
    %v1056 = vunpack.c.l.b16 %v376
    %v1057 = vunpack.c.h.b16 %v376
    %v1058 = vunpack.c.l.b16 %v377
    %v1059 = vunpack.c.h.b16 %v377
    %v1060 = vunpack.c.l.b16 %v378
    %v1061 = vunpack.c.h.b16 %v378
    %v1062 = vunpack.c.l.b16 %v379
    %v1063 = vunpack.c.h.b16 %v379
    %v1064 = vunpack.c.l.b16 %v380
    %v1065 = vunpack.c.h.b16 %v380
    %v1066 = vunpack.c.l.b16 %v381
    %v1067 = vunpack.c.h.b16 %v381
    %v1068 = vunpack.c.l.b16 %v382
    %v1069 = vunpack.c.h.b16 %v382
    %v1070 = vunpack.c.l.b16 %v383
    %v1071 = vunpack.c.h.b16 %v383
    %v1072 = vunpack.c.l.b16 %v384
    %v1073 = vunpack.c.h.b16 %v384
    %v1074 = vunpack.c.l.b16 %v385
    %v1075 = vunpack.c.h.b16 %v385
    %v1076 = vunpack.c.l.b16 %v386
    %v1077 = vunpack.c.h.b16 %v386
    %v1078 = vunpack.c.l.b16 %v387
    %v1079 = vunpack.c.h.b16 %v387
    %v1080 = vunpack.c.l.b16 %v388
    %v1081 = vunpack.c.h.b16 %v388
    %v1082 = vunpack.c.l.b16 %v389
    %v1083 = vunpack.c.h.b16 %v389
    %v1084 = vpack.c.b16 %v640, %v636
    %v1085 = vpack.c.b16 %v641, %v637
    %v1086 = vpack.c.b16 %v642, %v638
    %v1087 = vpack.c.b16 %v643, %v639
    %v1088 = vpack.c.b16 %v648, %v644
    %v1089 = vpack.c.b16 %v649, %v645
    %v1090 = vpack.c.b16 %v650, %v646
    %v1091 = vpack.c.b16 %v651, %v647
    %v1092 = vpack.c.b16 %v656, %v652
    %v1093 = vpack.c.b16 %v657, %v653
    %v1094 = vpack.c.b16 %v658, %v654
    %v1095 = vpack.c.b16 %v659, %v655
    %v1096 = vpack.c.b16 %v664, %v660
    %v1097 = vpack.c.b16 %v665, %v661
    %v1098 = vpack.c.b16 %v666, %v662
    %v1099 = vpack.c.b16 %v667, %v663
    %v1100 = vpack.c.b16 %v672, %v668
    %v1101 = vpack.c.b16 %v673, %v669
    %v1102 = vpack.c.b16 %v674, %v670
    %v1103 = vpack.c.b16 %v675, %v671
    %v1104 = vpack.c.b16 %v680, %v676
    %v1105 = vpack.c.b16 %v681, %v677
    %v1106 = vpack.c.b16 %v682, %v678
    %v1107 = vpack.c.b16 %v683, %v679
    %v1108 = vpack.c.b16 %v688, %v684
    %v1109 = vpack.c.b16 %v689, %v685
    %v1110 = vpack.c.b16 %v690, %v686
    %v1111 = vpack.c.b16 %v691, %v687
    %v1112 = vpack.c.b16 %v696, %v692
    %v1113 = vpack.c.b16 %v697, %v693
    %v1114 = vpack.c.b16 %v698, %v694
    %v1115 = vpack.c.b16 %v699, %v695
    %v1116 = vpack.c.b16 %v704, %v700
    %v1117 = vpack.c.b16 %v705, %v701
    %v1118 = vpack.c.b16 %v706, %v702
    %v1119 = vpack.c.b16 %v707, %v703
    %v1120 = vpack.c.b16 %v712, %v708
    %v1121 = vpack.c.b16 %v713, %v709
    %v1122 = vpack.c.b16 %v714, %v710
    %v1123 = vpack.c.b16 %v715, %v711
    %v1124 = vpack.c.b16 %v720, %v716
    %v1125 = vpack.c.b16 %v721, %v717
    %v1126 = vpack.c.b16 %v722, %v718
    %v1127 = vpack.c.b16 %v723, %v719
    %v1128 = vpack.c.b16 %v728, %v724
    %v1129 = vpack.c.b16 %v729, %v725
    %v1130 = vpack.c.b16 %v730, %v726
    %v1131 = vpack.c.b16 %v731, %v727
    %v1132 = vpack.c.b16 %v736, %v732
    %v1133 = vpack.c.b16 %v737, %v733
    %v1134 = vpack.c.b16 %v738, %v734
    %v1135 = vpack.c.b16 %v739, %v735
    %v1136 = vpack.c.b16 %v744, %v740
    %v1137 = vpack.c.b16 %v745, %v741
    %v1138 = vpack.c.b16 %v746, %v742
    %v1139 = vpack.c.b16 %v747, %v743
    %v1140 = vpack.c.b16 %v752, %v748
    %v1141 = vpack.c.b16 %v753, %v749
    %v1142 = vpack.c.b16 %v754, %v750
    %v1143 = vpack.c.b16 %v755, %v751
    %v1144 = vpack.c.b16 %v760, %v756
    %v1145 = vpack.c.b16 %v761, %v757
    %v1146 = vpack.c.b16 %v762, %v758
    %v1147 = vpack.c.b16 %v763, %v759
    %v1148 = vpack.c.b16 %v768, %v764
    %v1149 = vpack.c.b16 %v769, %v765
    %v1150 = vpack.c.b16 %v770, %v766
    %v1151 = vpack.c.b16 %v771, %v767
    %v1152 = vpack.c.b16 %v776, %v772
    %v1153 = vpack.c.b16 %v777, %v773
    %v1154 = vpack.c.b16 %v778, %v774
    %v1155 = vpack.c.b16 %v779, %v775
    %v1156 = vpack.c.b16 %v784, %v780
    %v1157 = vpack.c.b16 %v785, %v781
    %v1158 = vpack.c.b16 %v786, %v782
    %v1159 = vpack.c.b16 %v787, %v783
    %v1160 = vpack.c.b16 %v792, %v788
    %v1161 = vpack.c.b16 %v793, %v789
    %v1162 = vpack.c.b16 %v794, %v790
    %v1163 = vpack.c.b16 %v795, %v791
    %v1164 = vpack.c.b16 %v800, %v796
    %v1165 = vpack.c.b16 %v801, %v797
    %v1166 = vpack.c.b16 %v802, %v798
    %v1167 = vpack.c.b16 %v803, %v799
    %v1168 = vpack.c.b16 %v808, %v804
    %v1169 = vpack.c.b16 %v809, %v805
    %v1170 = vpack.c.b16 %v810, %v806
    %v1171 = vpack.c.b16 %v811, %v807
    %v1172 = vpack.c.b16 %v816, %v812
    %v1173 = vpack.c.b16 %v817, %v813
    %v1174 = vpack.c.b16 %v818, %v814
    %v1175 = vpack.c.b16 %v819, %v815
    %v1176 = vpack.c.b16 %v824, %v820
    %v1177 = vpack.c.b16 %v825, %v821
    %v1178 = vpack.c.b16 %v826, %v822
    %v1179 = vpack.c.b16 %v827, %v823
    %v1180 = vpack.c.b16 %v832, %v828
    %v1181 = vpack.c.b16 %v833, %v829
    %v1182 = vpack.c.b16 %v834, %v830
    %v1183 = vpack.c.b16 %v835, %v831
    %v1184 = vpack.c.b16 %v840, %v836
    %v1185 = vpack.c.b16 %v841, %v837
    %v1186 = vpack.c.b16 %v842, %v838
    %v1187 = vpack.c.b16 %v843, %v839
    %v1188 = vpack.c.b16 %v848, %v844
    %v1189 = vpack.c.b16 %v849, %v845
    %v1190 = vpack.c.b16 %v850, %v846
    %v1191 = vpack.c.b16 %v851, %v847
    %v1192 = vpack.c.b16 %v856, %v852
    %v1193 = vpack.c.b16 %v857, %v853
    %v1194 = vpack.c.b16 %v858, %v854
    %v1195 = vpack.c.b16 %v859, %v855
    %v1196 = vpack.c.b16 %v864, %v860
    %v1197 = vpack.c.b16 %v865, %v861
    %v1198 = vpack.c.b16 %v866, %v862
    %v1199 = vpack.c.b16 %v867, %v863
    %v1200 = vpack.c.b16 %v872, %v868
    %v1201 = vpack.c.b16 %v873, %v869
    %v1202 = vpack.c.b16 %v874, %v870
    %v1203 = vpack.c.b16 %v875, %v871
    %v1204 = vpack.c.b16 %v880, %v876
    %v1205 = vpack.c.b16 %v881, %v877
    %v1206 = vpack.c.b16 %v882, %v878
    %v1207 = vpack.c.b16 %v883, %v879
    %v1208 = vpack.c.b16 %v888, %v884
    %v1209 = vpack.c.b16 %v889, %v885
    %v1210 = vpack.c.b16 %v890, %v886
    %v1211 = vpack.c.b16 %v891, %v887
    %v1212 = vpack.c.b16 %v896, %v892
    %v1213 = vpack.c.b16 %v897, %v893
    %v1214 = vpack.c.b16 %v898, %v894
    %v1215 = vpack.c.b16 %v899, %v895
    %v1216 = vpack.c.b16 %v904, %v900
    %v1217 = vpack.c.b16 %v905, %v901
    %v1218 = vpack.c.b16 %v906, %v902
    %v1219 = vpack.c.b16 %v907, %v903
    %v1220 = vpack.c.b16 %v912, %v908
    %v1221 = vpack.c.b16 %v913, %v909
    %v1222 = vpack.c.b16 %v914, %v910
    %v1223 = vpack.c.b16 %v915, %v911
    %v1224 = vpack.c.b16 %v920, %v916
    %v1225 = vpack.c.b16 %v921, %v917
    %v1226 = vpack.c.b16 %v922, %v918
    %v1227 = vpack.c.b16 %v923, %v919
    %v1228 = vpack.c.b16 %v928, %v924
    %v1229 = vpack.c.b16 %v929, %v925
    %v1230 = vpack.c.b16 %v930, %v926
    %v1231 = vpack.c.b16 %v931, %v927
    %v1232 = vpack.c.b16 %v936, %v932
    %v1233 = vpack.c.b16 %v937, %v933
    %v1234 = vpack.c.b16 %v938, %v934
    %v1235 = vpack.c.b16 %v939, %v935
    %v1236 = vpack.c.b16 %v944, %v940
    %v1237 = vpack.c.b16 %v945, %v941
    %v1238 = vpack.c.b16 %v946, %v942
    %v1239 = vpack.c.b16 %v947, %v943
    %v1240 = vpack.c.b16 %v952, %v948
    %v1241 = vpack.c.b16 %v953, %v949
    %v1242 = vpack.c.b16 %v954, %v950
    %v1243 = vpack.c.b16 %v955, %v951
    %v1244 = vpack.c.b16 %v960, %v956
    %v1245 = vpack.c.b16 %v961, %v957
    %v1246 = vpack.c.b16 %v962, %v958
    %v1247 = vpack.c.b16 %v963, %v959
    %v1248 = vpack.c.b16 %v968, %v964
    %v1249 = vpack.c.b16 %v969, %v965
    %v1250 = vpack.c.b16 %v970, %v966
    %v1251 = vpack.c.b16 %v971, %v967
    %v1252 = vpack.c.b16 %v976, %v972
    %v1253 = vpack.c.b16 %v977, %v973
    %v1254 = vpack.c.b16 %v978, %v974
    %v1255 = vpack.c.b16 %v979, %v975
    %v1256 = vpack.c.b16 %v984, %v980
    %v1257 = vpack.c.b16 %v985, %v981
    %v1258 = vpack.c.b16 %v986, %v982
    %v1259 = vpack.c.b16 %v987, %v983
    %v1260 = vpack.c.b16 %v992, %v988
    %v1261 = vpack.c.b16 %v993, %v989
    %v1262 = vpack.c.b16 %v994, %v990
    %v1263 = vpack.c.b16 %v995, %v991
    %v1264 = vpack.c.b16 %v1000, %v996
    %v1265 = vpack.c.b16 %v1001, %v997
    %v1266 = vpack.c.b16 %v1002, %v998
    %v1267 = vpack.c.b16 %v1003, %v999
    %v1268 = vpack.c.b16 %v1008, %v1004
    %v1269 = vpack.c.b16 %v1009, %v1005
    %v1270 = vpack.c.b16 %v1010, %v1006
    %v1271 = vpack.c.b16 %v1011, %v1007
    %v1272 = vpack.c.b16 %v1016, %v1012
    %v1273 = vpack.c.b16 %v1017, %v1013
    %v1274 = vpack.c.b16 %v1018, %v1014
    %v1275 = vpack.c.b16 %v1019, %v1015
    %v1276 = vpack.c.b16 %v1024, %v1020
    %v1277 = vpack.c.b16 %v1025, %v1021
    %v1278 = vpack.c.b16 %v1026, %v1022
    %v1279 = vpack.c.b16 %v1027, %v1023
    %v1280 = vpack.c.b16 %v1032, %v1028
    %v1281 = vpack.c.b16 %v1033, %v1029
    %v1282 = vpack.c.b16 %v1034, %v1030
    %v1283 = vpack.c.b16 %v1035, %v1031
    %v1284 = vpack.c.b16 %v1040, %v1036
    %v1285 = vpack.c.b16 %v1041, %v1037
    %v1286 = vpack.c.b16 %v1042, %v1038
    %v1287 = vpack.c.b16 %v1043, %v1039
    %v1288 = vpack.c.b16 %v1048, %v1044
    %v1289 = vpack.c.b16 %v1049, %v1045
    %v1290 = vpack.c.b16 %v1050, %v1046
    %v1291 = vpack.c.b16 %v1051, %v1047
    %v1292 = vpack.c.b16 %v1056, %v1052
    %v1293 = vpack.c.b16 %v1057, %v1053
    %v1294 = vpack.c.b16 %v1058, %v1054
    %v1295 = vpack.c.b16 %v1059, %v1055
    %v1296 = vpack.c.b16 %v1064, %v1060
    %v1297 = vpack.c.b16 %v1065, %v1061
    %v1298 = vpack.c.b16 %v1066, %v1062
    %v1299 = vpack.c.b16 %v1067, %v1063
    %v1300 = vpack.c.b16 %v1072, %v1068
    %v1301 = vpack.c.b16 %v1073, %v1069
    %v1302 = vpack.c.b16 %v1074, %v1070
    %v1303 = vpack.c.b16 %v1075, %v1071
    %v1304 = vpack.c.b16 %v1080, %v1076
    %v1305 = vpack.c.b16 %v1081, %v1077
    %v1306 = vpack.c.b16 %v1082, %v1078
    %v1307 = vpack.c.b16 %v1083, %v1079
    %1532 = vmatprep.subr.bf16.mxu0 %v1085
    %1533 = vmatpush1.bf16.msra.mxu0 %v1084
    %1534 = vmatprep.subr.bf16.mxu0 %v1089
    %1535 = vmatpush1.bf16.msra.mxu0 %v1088
    %1536 = vmatprep.subr.bf16.mxu0 %v1093
    %1537 = vmatpush1.bf16.msra.mxu0 %v1092
    %1538 = vmatprep.subr.bf16.mxu0 %v1097
    %1539 = vmatpush1.bf16.msra.mxu0 %v1096
    %1540 = vmatprep.subr.bf16.mxu0 %v1101
    %1541 = vmatpush1.bf16.msra.mxu0 %v1100
    %1542 = vmatprep.subr.bf16.mxu0 %v1105
    %1543 = vmatpush1.bf16.msra.mxu0 %v1104
    %1544 = vmatprep.subr.bf16.mxu0 %v1109
    %1545 = vmatpush1.bf16.msra.mxu0 %v1108
    %1546 = vmatprep.subr.bf16.mxu0 %v1113
    %1547 = vmatpush1.bf16.msra.mxu0 %v1112
    %1548 = vmatprep.subr.bf16.mxu0 %v1117
    %1549 = vmatpush1.bf16.msra.mxu0 %v1116
    %1550 = vmatprep.subr.bf16.mxu0 %v1121
    %1551 = vmatpush1.bf16.msra.mxu0 %v1120
    %1552 = vmatprep.subr.bf16.mxu0 %v1125
    %1553 = vmatpush1.bf16.msra.mxu0 %v1124
    %1554 = vmatprep.subr.bf16.mxu0 %v1129
    %1555 = vmatpush1.bf16.msra.mxu0 %v1128
    %1556 = vmatprep.subr.bf16.mxu0 %v1133
    %1557 = vmatpush1.bf16.msra.mxu0 %v1132
    %1558 = vmatprep.subr.bf16.mxu0 %v1137
    %1559 = vmatpush1.bf16.msra.mxu0 %v1136
    %1560 = vmatprep.subr.bf16.mxu0 %v1141
    %1561 = vmatpush1.bf16.msra.mxu0 %v1140
    %1562 = vmatprep.subr.bf16.mxu0 %v1145
    %1563 = vmatpush1.bf16.msra.mxu0 %v1144
    %1564 = vmatprep.mubr.bf16.mxu0 %v160
    %1565 = vmatmul.mubr.bf16.gmra.mrb[0].mxu0 %v159
    %v1566 = vpop.f32.mrb[0].mxu0
    %v1567 = vadd.f32 %v395, %v1566
    %v1568 = vpop.f32.mrb[0].mxu0
    %v1569 = vadd.f32 %v399, %v1568
    %v1570 = vpop.f32.mrb[0].mxu0
    %v1571 = vpop.f32.mrb[0].mxu0
    %1572 = vdwg.mxu0
    %1573 = vmatprep.subr.bf16.mxu0 %v1149
    %1574 = vmatpush1.bf16.msra.mxu0 %v1148
    %1575 = vmatprep.subr.bf16.mxu0 %v1153
    %1576 = vmatpush1.bf16.msra.mxu0 %v1152
    %1577 = vmatprep.subr.bf16.mxu0 %v1157
    %1578 = vmatpush1.bf16.msra.mxu0 %v1156
    %1579 = vmatprep.subr.bf16.mxu0 %v1161
    %1580 = vmatpush1.bf16.msra.mxu0 %v1160
    %1581 = vmatprep.subr.bf16.mxu0 %v1165
    %1582 = vmatpush1.bf16.msra.mxu0 %v1164
    %1583 = vmatprep.subr.bf16.mxu0 %v1169
    %1584 = vmatpush1.bf16.msra.mxu0 %v1168
    %1585 = vmatprep.subr.bf16.mxu0 %v1173
    %1586 = vmatpush1.bf16.msra.mxu0 %v1172
    %1587 = vmatprep.subr.bf16.mxu0 %v1177
    %1588 = vmatpush1.bf16.msra.mxu0 %v1176
    %1589 = vmatprep.subr.bf16.mxu0 %v1181
    %1590 = vmatpush1.bf16.msra.mxu0 %v1180
    %1591 = vmatprep.subr.bf16.mxu0 %v1185
    %1592 = vmatpush1.bf16.msra.mxu0 %v1184
    %1593 = vmatprep.subr.bf16.mxu0 %v1189
    %1594 = vmatpush1.bf16.msra.mxu0 %v1188
    %1595 = vmatprep.subr.bf16.mxu0 %v1193
    %1596 = vmatpush1.bf16.msra.mxu0 %v1192
    %1597 = vmatprep.subr.bf16.mxu0 %v1197
    %1598 = vmatpush1.bf16.msra.mxu0 %v1196
    %1599 = vmatprep.subr.bf16.mxu0 %v1201
    %1600 = vmatpush1.bf16.msra.mxu0 %v1200
    %1601 = vmatprep.subr.bf16.mxu0 %v1205
    %1602 = vmatpush1.bf16.msra.mxu0 %v1204
    %1603 = vmatprep.subr.bf16.mxu0 %v1209
    %1604 = vmatpush1.bf16.msra.mxu0 %v1208
    %1605 = vmatprep.mubr.bf16.mxu0 %v162
    %1606 = vmatmul.mubr.bf16.gmra.mrb[0].mxu0 %v161
    %v1607 = vpop.f32.mrb[0].mxu0
    %v1608 = vadd.f32 %v1567, %v1607
    %v1609 = vpop.f32.mrb[0].mxu0
    %v1610 = vadd.f32 %v1569, %v1609
    %v1611 = vpop.f32.mrb[0].mxu0
    %v1612 = vpop.f32.mrb[0].mxu0
    %1613 = vdwg.mxu0
    %1614 = vmatprep.subr.bf16.mxu0 %v1213
    %1615 = vmatpush1.bf16.msra.mxu0 %v1212
    %1616 = vmatprep.subr.bf16.mxu0 %v1217
    %1617 = vmatpush1.bf16.msra.mxu0 %v1216
    %1618 = vmatprep.subr.bf16.mxu0 %v1221
    %1619 = vmatpush1.bf16.msra.mxu0 %v1220
    %1620 = vmatprep.subr.bf16.mxu0 %v1225
    %1621 = vmatpush1.bf16.msra.mxu0 %v1224
    %1622 = vmatprep.subr.bf16.mxu0 %v1229
    %1623 = vmatpush1.bf16.msra.mxu0 %v1228
    %1624 = vmatprep.subr.bf16.mxu0 %v1233
    %1625 = vmatpush1.bf16.msra.mxu0 %v1232
    %1626 = vmatprep.subr.bf16.mxu0 %v1237
    %1627 = vmatpush1.bf16.msra.mxu0 %v1236
    %1628 = vmatprep.subr.bf16.mxu0 %v1241
    %1629 = vmatpush1.bf16.msra.mxu0 %v1240
    %1630 = vmatprep.subr.bf16.mxu0 %v1245
    %1631 = vmatpush1.bf16.msra.mxu0 %v1244
    %1632 = vmatprep.subr.bf16.mxu0 %v1249
    %1633 = vmatpush1.bf16.msra.mxu0 %v1248
    %1634 = vmatprep.subr.bf16.mxu0 %v1253
    %1635 = vmatpush1.bf16.msra.mxu0 %v1252
    %1636 = vmatprep.subr.bf16.mxu0 %v1257
    %1637 = vmatpush1.bf16.msra.mxu0 %v1256
    %1638 = vmatprep.subr.bf16.mxu0 %v1261
    %1639 = vmatpush1.bf16.msra.mxu0 %v1260
    %1640 = vmatprep.subr.bf16.mxu0 %v1265
    %1641 = vmatpush1.bf16.msra.mxu0 %v1264
    %1642 = vmatprep.subr.bf16.mxu0 %v1269
    %1643 = vmatpush1.bf16.msra.mxu0 %v1268
    %1644 = vmatprep.subr.bf16.mxu0 %v1273
    %1645 = vmatpush1.bf16.msra.mxu0 %v1272
    %1646 = vmatprep.mubr.bf16.mxu0 %v164
    %1647 = vmatmul.mubr.bf16.gmra.mrb[0].mxu0 %v163
    %v1648 = vpop.f32.mrb[0].mxu0
    %v1649 = vadd.f32 %v1608, %v1648
    %v1650 = vpop.f32.mrb[0].mxu0
    %v1651 = vadd.f32 %v1610, %v1650
    %v1652 = vpop.f32.mrb[0].mxu0
    %v1653 = vpop.f32.mrb[0].mxu0
    %1654 = vdwg.mxu0
    %1655 = vmatprep.subr.bf16.mxu0 %v1277
    %1656 = vmatpush1.bf16.msra.mxu0 %v1276
    %1657 = vmatprep.subr.bf16.mxu0 %v1281
    %1658 = vmatpush1.bf16.msra.mxu0 %v1280
    %1659 = vmatprep.subr.bf16.mxu0 %v1285
    %1660 = vmatpush1.bf16.msra.mxu0 %v1284
    %1661 = vmatprep.subr.bf16.mxu0 %v1289
    %1662 = vmatpush1.bf16.msra.mxu0 %v1288
    %1663 = vmatprep.subr.bf16.mxu0 %v1293
    %1664 = vmatpush1.bf16.msra.mxu0 %v1292
    %1665 = vmatprep.subr.bf16.mxu0 %v1297
    %1666 = vmatpush1.bf16.msra.mxu0 %v1296
    %1667 = vmatprep.subr.bf16.mxu0 %v1301
    %1668 = vmatpush1.bf16.msra.mxu0 %v1300
    %1669 = vmatprep.subr.bf16.mxu0 %v1305
    %1670 = vmatpush1.bf16.msra.mxu0 %v1304
    %1671 = vmatprep.subr.bf16.mxu0 0
    %1672 = vmatpush1.bf16.msra.mxu0 0
    %1673 = vmatprep.subr.bf16.mxu0 0
    %1674 = vmatpush1.bf16.msra.mxu0 0
    %1675 = vmatprep.subr.bf16.mxu0 0
    %1676 = vmatpush1.bf16.msra.mxu0 0
    %1677 = vmatprep.subr.bf16.mxu0 0
    %1678 = vmatpush1.bf16.msra.mxu0 0
    %1679 = vmatprep.subr.bf16.mxu0 0
    %1680 = vmatpush1.bf16.msra.mxu0 0
    %1681 = vmatprep.subr.bf16.mxu0 0
    %1682 = vmatpush1.bf16.msra.mxu0 0
    %1683 = vmatprep.subr.bf16.mxu0 0
    %1684 = vmatpush1.bf16.msra.mxu0 0
    %1685 = vmatprep.subr.bf16.mxu0 0
    %1686 = vmatpush1.bf16.msra.mxu0 0
    %1687 = vmatprep.mubr.bf16.mxu0 0
    %1688 = vmatmul.mubr.bf16.gmra.mrb[0].mxu0 %v165
    %v1689 = vpop.f32.mrb[0].mxu0
    %v1690 = vadd.f32 %v1649, %v1689
    %v1691 = vpop.f32.mrb[0].mxu0
    %v1692 = vadd.f32 %v1651, %v1691
    %v1693 = vpop.f32.mrb[0].mxu0
    %v1694 = vpop.f32.mrb[0].mxu0
    %1695 = vdwg.mxu0
    %1696 = vmatprep.subr.bf16.mxu0 %v1087
    %1697 = vmatpush1.bf16.msra.mxu0 %v1086
    %1698 = vmatprep.subr.bf16.mxu0 %v1091
    %1699 = vmatpush1.bf16.msra.mxu0 %v1090
    %1700 = vmatprep.subr.bf16.mxu0 %v1095
    %1701 = vmatpush1.bf16.msra.mxu0 %v1094
    %1702 = vmatprep.subr.bf16.mxu0 %v1099
    %1703 = vmatpush1.bf16.msra.mxu0 %v1098
    %1704 = vmatprep.subr.bf16.mxu0 %v1103
    %1705 = vmatpush1.bf16.msra.mxu0 %v1102
    %1706 = vmatprep.subr.bf16.mxu0 %v1107
    %1707 = vmatpush1.bf16.msra.mxu0 %v1106
    %1708 = vmatprep.subr.bf16.mxu0 %v1111
    %1709 = vmatpush1.bf16.msra.mxu0 %v1110
    %1710 = vmatprep.subr.bf16.mxu0 %v1115
    %1711 = vmatpush1.bf16.msra.mxu0 %v1114
    %1712 = vmatprep.subr.bf16.mxu0 %v1119
    %1713 = vmatpush1.bf16.msra.mxu0 %v1118
    %1714 = vmatprep.subr.bf16.mxu0 %v1123
    %1715 = vmatpush1.bf16.msra.mxu0 %v1122
    %1716 = vmatprep.subr.bf16.mxu0 %v1127
    %1717 = vmatpush1.bf16.msra.mxu0 %v1126
    %1718 = vmatprep.subr.bf16.mxu0 %v1131
    %1719 = vmatpush1.bf16.msra.mxu0 %v1130
    %1720 = vmatprep.subr.bf16.mxu0 %v1135
    %1721 = vmatpush1.bf16.msra.mxu0 %v1134
    %1722 = vmatprep.subr.bf16.mxu0 %v1139
    %1723 = vmatpush1.bf16.msra.mxu0 %v1138
    %1724 = vmatprep.subr.bf16.mxu0 %v1143
    %1725 = vmatpush1.bf16.msra.mxu0 %v1142
    %1726 = vmatprep.subr.bf16.mxu0 %v1147
    %1727 = vmatpush1.bf16.msra.mxu0 %v1146
    %1728 = vmatprep.mubr.bf16.mxu0 %v160
    %1729 = vmatmul.mubr.bf16.gmra.mrb[0].mxu0 %v159
    %v1730 = vpop.f32.mrb[0].mxu0
    %v1731 = vadd.f32 %v403, %v1730
    %v1732 = vpop.f32.mrb[0].mxu0
    %v1733 = vadd.f32 %v407, %v1732
    %v1734 = vpop.f32.mrb[0].mxu0
    %v1735 = vpop.f32.mrb[0].mxu0
    %1736 = vdwg.mxu0
    %1737 = vmatprep.subr.bf16.mxu0 %v1151
    %1738 = vmatpush1.bf16.msra.mxu0 %v1150
    %1739 = vmatprep.subr.bf16.mxu0 %v1155
    %1740 = vmatpush1.bf16.msra.mxu0 %v1154
    %1741 = vmatprep.subr.bf16.mxu0 %v1159
    %1742 = vmatpush1.bf16.msra.mxu0 %v1158
    %1743 = vmatprep.subr.bf16.mxu0 %v1163
    %1744 = vmatpush1.bf16.msra.mxu0 %v1162
    %1745 = vmatprep.subr.bf16.mxu0 %v1167
    %1746 = vmatpush1.bf16.msra.mxu0 %v1166
    %1747 = vmatprep.subr.bf16.mxu0 %v1171
    %1748 = vmatpush1.bf16.msra.mxu0 %v1170
    %1749 = vmatprep.subr.bf16.mxu0 %v1175
    %1750 = vmatpush1.bf16.msra.mxu0 %v1174
    %1751 = vmatprep.subr.bf16.mxu0 %v1179
    %1752 = vmatpush1.bf16.msra.mxu0 %v1178
    %1753 = vmatprep.subr.bf16.mxu0 %v1183
    %1754 = vmatpush1.bf16.msra.mxu0 %v1182
    %1755 = vmatprep.subr.bf16.mxu0 %v1187
    %1756 = vmatpush1.bf16.msra.mxu0 %v1186
    %1757 = vmatprep.subr.bf16.mxu0 %v1191
    %1758 = vmatpush1.bf16.msra.mxu0 %v1190
    %1759 = vmatprep.subr.bf16.mxu0 %v1195
    %1760 = vmatpush1.bf16.msra.mxu0 %v1194
    %1761 = vmatprep.subr.bf16.mxu0 %v1199
    %1762 = vmatpush1.bf16.msra.mxu0 %v1198
    %1763 = vmatprep.subr.bf16.mxu0 %v1203
    %1764 = vmatpush1.bf16.msra.mxu0 %v1202
    %1765 = vmatprep.subr.bf16.mxu0 %v1207
    %1766 = vmatpush1.bf16.msra.mxu0 %v1206
    %1767 = vmatprep.subr.bf16.mxu0 %v1211
    %1768 = vmatpush1.bf16.msra.mxu0 %v1210
    %1769 = vmatprep.mubr.bf16.mxu0 %v162
    %1770 = vmatmul.mubr.bf16.gmra.mrb[0].mxu0 %v161
    %v1771 = vpop.f32.mrb[0].mxu0
    %v1772 = vadd.f32 %v1731, %v1771
    %v1773 = vpop.f32.mrb[0].mxu0
    %v1774 = vadd.f32 %v1733, %v1773
    %v1775 = vpop.f32.mrb[0].mxu0
    %v1776 = vpop.f32.mrb[0].mxu0
    %1777 = vdwg.mxu0
    %1778 = vmatprep.subr.bf16.mxu0 %v1215
    %1779 = vmatpush1.bf16.msra.mxu0 %v1214
    %1780 = vmatprep.subr.bf16.mxu0 %v1219
    %1781 = vmatpush1.bf16.msra.mxu0 %v1218
    %1782 = vmatprep.subr.bf16.mxu0 %v1223
    %1783 = vmatpush1.bf16.msra.mxu0 %v1222
    %1784 = vmatprep.subr.bf16.mxu0 %v1227
    %1785 = vmatpush1.bf16.msra.mxu0 %v1226
    %1786 = vmatprep.subr.bf16.mxu0 %v1231
    %1787 = vmatpush1.bf16.msra.mxu0 %v1230
    %1788 = vmatprep.subr.bf16.mxu0 %v1235
    %1789 = vmatpush1.bf16.msra.mxu0 %v1234
    %1790 = vmatprep.subr.bf16.mxu0 %v1239
    %1791 = vmatpush1.bf16.msra.mxu0 %v1238
    %1792 = vmatprep.subr.bf16.mxu0 %v1243
    %1793 = vmatpush1.bf16.msra.mxu0 %v1242
    %1794 = vmatprep.subr.bf16.mxu0 %v1247
    %1795 = vmatpush1.bf16.msra.mxu0 %v1246
    %1796 = vmatprep.subr.bf16.mxu0 %v1251
    %1797 = vmatpush1.bf16.msra.mxu0 %v1250
    %1798 = vmatprep.subr.bf16.mxu0 %v1255
    %1799 = vmatpush1.bf16.msra.mxu0 %v1254
    %1800 = vmatprep.subr.bf16.mxu0 %v1259
    %1801 = vmatpush1.bf16.msra.mxu0 %v1258
    %1802 = vmatprep.subr.bf16.mxu0 %v1263
    %1803 = vmatpush1.bf16.msra.mxu0 %v1262
    %1804 = vmatprep.subr.bf16.mxu0 %v1267
    %1805 = vmatpush1.bf16.msra.mxu0 %v1266
    %1806 = vmatprep.subr.bf16.mxu0 %v1271
    %1807 = vmatpush1.bf16.msra.mxu0 %v1270
    %1808 = vmatprep.subr.bf16.mxu0 %v1275
    %1809 = vmatpush1.bf16.msra.mxu0 %v1274
    %1810 = vmatprep.mubr.bf16.mxu0 %v164
    %1811 = vmatmul.mubr.bf16.gmra.mrb[0].mxu0 %v163
    %v1812 = vpop.f32.mrb[0].mxu0
    %v1813 = vadd.f32 %v1772, %v1812
    %v1814 = vpop.f32.mrb[0].mxu0
    %v1815 = vadd.f32 %v1774, %v1814
    %v1816 = vpop.f32.mrb[0].mxu0
    %v1817 = vpop.f32.mrb[0].mxu0
    %1818 = vdwg.mxu0
    %1819 = vmatprep.subr.bf16.mxu0 %v1279
    %1820 = vmatpush1.bf16.msra.mxu0 %v1278
    %1821 = vmatprep.subr.bf16.mxu0 %v1283
    %1822 = vmatpush1.bf16.msra.mxu0 %v1282
    %1823 = vmatprep.subr.bf16.mxu0 %v1287
    %1824 = vmatpush1.bf16.msra.mxu0 %v1286
    %1825 = vmatprep.subr.bf16.mxu0 %v1291
    %1826 = vmatpush1.bf16.msra.mxu0 %v1290
    %1827 = vmatprep.subr.bf16.mxu0 %v1295
    %1828 = vmatpush1.bf16.msra.mxu0 %v1294
    %1829 = vmatprep.subr.bf16.mxu0 %v1299
    %1830 = vmatpush1.bf16.msra.mxu0 %v1298
    %1831 = vmatprep.subr.bf16.mxu0 %v1303
    %1832 = vmatpush1.bf16.msra.mxu0 %v1302
    %1833 = vmatprep.subr.bf16.mxu0 %v1307
    %1834 = vmatpush1.bf16.msra.mxu0 %v1306
    %1835 = vmatprep.subr.bf16.mxu0 0
    %1836 = vmatpush1.bf16.msra.mxu0 0
    %1837 = vmatprep.subr.bf16.mxu0 0
    %1838 = vmatpush1.bf16.msra.mxu0 0
    %1839 = vmatprep.subr.bf16.mxu0 0
    %1840 = vmatpush1.bf16.msra.mxu0 0
    %1841 = vmatprep.subr.bf16.mxu0 0
    %1842 = vmatpush1.bf16.msra.mxu0 0
    %1843 = vmatprep.subr.bf16.mxu0 0
    %1844 = vmatpush1.bf16.msra.mxu0 0
    %1845 = vmatprep.subr.bf16.mxu0 0
    %1846 = vmatpush1.bf16.msra.mxu0 0
    %1847 = vmatprep.subr.bf16.mxu0 0
    %1848 = vmatpush1.bf16.msra.mxu0 0
    %1849 = vmatprep.subr.bf16.mxu0 0
    %1850 = vmatpush1.bf16.msra.mxu0 0
    %1851 = vmatprep.mubr.bf16.mxu0 0
    %1852 = vmatmul.mubr.bf16.gmra.mrb[0].mxu0 %v165
    %v1853 = vpop.f32.mrb[0].mxu0
    %v1854 = vadd.f32 %v1813, %v1853
    %v1855 = vpop.f32.mrb[0].mxu0
    %v1856 = vadd.f32 %v1815, %v1855
    %v1857 = vpop.f32.mrb[0].mxu0
    %v1858 = vpop.f32.mrb[0].mxu0
    %1859 = vdwg.mxu0
    %v1860 = vmax.f32 %v1690, 0.0
    %v1861 = vmax.f32 %v1692, 0.0
    %v1862 = vmax.f32 %v1854, 0.0
    %v1863 = vmax.f32 %v1856, 0.0
    %v1864 = vpack.c.bf16 %v1860, %v1860
    %v1865 = vpack.c.bf16 %v1861, %v1861
    %v1866 = vpack.c.bf16 %v1862, %v1862
    %v1867 = vpack.c.bf16 %v1863, %v1863
    %v1868 = vld [vmem:[#allocation4] sm:$0xff]
    %v1869 = vld [vmem:[#allocation4 + $0x8] sm:$0xff]
    %v1870 = vld [vmem:[#allocation4 + $0x10] sm:$0xff]
    %v1871 = vld [vmem:[#allocation4 + $0x18] sm:$0xff]
    %v1872 = vld [vmem:[#allocation4 + $0x20] sm:$0xff]
    %v1873 = vld [vmem:[#allocation4 + $0x28] sm:$0xff]
    %v1874 = vld [vmem:[#allocation4 + $0x30] sm:$0xff]
    %v1875 = vld [vmem:[#allocation4 + $0x38] sm:$0xff]
    %v1876 = vld [vmem:[#allocation4 + $0x40] sm:$0xff]
    %v1877 = vld [vmem:[#allocation4 + $0x48] sm:$0xff]
    %v1878 = vld [vmem:[#allocation4 + $0x50] sm:$0xff]
    %v1879 = vld [vmem:[#allocation4 + $0x58] sm:$0xff]
    %v1880 = vld [vmem:[#allocation4 + $0x60] sm:$0xff]
    %v1881 = vld [vmem:[#allocation4 + $0x68] sm:$0xff]
    %v1882 = vld [vmem:[#allocation4 + $0x70] sm:$0xff]
    %v1883 = vld [vmem:[#allocation4 + $0x78] sm:$0xff]
    %v1884 = vld [vmem:[#allocation4 + $0x80] sm:$0xff]
    %v1885 = vld [vmem:[#allocation4 + $0x88] sm:$0xff]
    %v1886 = vld [vmem:[#allocation4 + $0x90] sm:$0xff]
    %v1887 = vld [vmem:[#allocation4 + $0x98] sm:$0xff]
    %v1888 = vld [vmem:[#allocation4 + $0xa0] sm:$0xff]
    %v1889 = vld [vmem:[#allocation4 + $0xa8] sm:$0xff]
    %v1890 = vld [vmem:[#allocation4 + $0xb0] sm:$0xff]
    %v1891 = vld [vmem:[#allocation4 + $0xb8] sm:$0xff]
    %v1892 = vld [vmem:[#allocation4 + $0xc0] sm:$0xff]
    %v1893 = vld [vmem:[#allocation4 + $0xc8] sm:$0xff]
    %v1894 = vld [vmem:[#allocation4 + $0xd0] sm:$0xff]
    %v1895 = vld [vmem:[#allocation4 + $0xd8] sm:$0xff]
    %v1896 = vld [vmem:[#allocation4 + $0xe0] sm:$0xff]
    %v1897 = vld [vmem:[#allocation4 + $0xe8] sm:$0xff]
    %v1898 = vld [vmem:[#allocation4 + $0xf0] sm:$0xff]
    %v1899 = vld [vmem:[#allocation4 + $0xf8] sm:$0xff]
    %v1900 = vld [vmem:[#allocation4 + $0x100] sm:$0xff]
    %v1901 = vld [vmem:[#allocation4 + $0x108] sm:$0xff]
    %v1902 = vld [vmem:[#allocation4 + $0x110] sm:$0xff]
    %v1903 = vld [vmem:[#allocation4 + $0x118] sm:$0xff]
    %v1904 = vld [vmem:[#allocation4 + $0x120] sm:$0xff]
    %v1905 = vld [vmem:[#allocation4 + $0x128] sm:$0xff]
    %v1906 = vld [vmem:[#allocation4 + $0x130] sm:$0xff]
    %v1907 = vld [vmem:[#allocation4 + $0x138] sm:$0xff]
    %v1908 = vld [vmem:[#allocation4 + $0x140] sm:$0xff]
    %v1909 = vld [vmem:[#allocation4 + $0x148] sm:$0xff]
    %v1910 = vld [vmem:[#allocation4 + $0x150] sm:$0xff]
    %v1911 = vld [vmem:[#allocation4 + $0x158] sm:$0xff]
    %v1912 = vld [vmem:[#allocation4 + $0x160] sm:$0xff]
    %v1913 = vld [vmem:[#allocation4 + $0x168] sm:$0xff]
    %v1914 = vld [vmem:[#allocation4 + $0x170] sm:$0xff]
    %v1915 = vld [vmem:[#allocation4 + $0x178] sm:$0xff]
    %v1916 = vld [vmem:[#allocation4 + $0x180] sm:$0xff]
    %v1917 = vld [vmem:[#allocation4 + $0x188] sm:$0xff]
    %v1918 = vld [vmem:[#allocation4 + $0x190] sm:$0xff]
    %v1919 = vld [vmem:[#allocation4 + $0x198] sm:$0xff]
    %v1920 = vld [vmem:[#allocation4 + $0x1a0] sm:$0xff]
    %v1921 = vld [vmem:[#allocation4 + $0x1a8] sm:$0xff]
    %v1922 = vld [vmem:[#allocation4 + $0x1b0] sm:$0xff]
    %v1923 = vld [vmem:[#allocation4 + $0x1b8] sm:$0xff]
    %v1924 = vld [vmem:[#allocation4 + $0x1c0] sm:$0xff]
    %v1925 = vld [vmem:[#allocation4 + $0x1c8] sm:$0xff]
    %v1926 = vld [vmem:[#allocation4 + $0x1d0] sm:$0xff]
    %v1927 = vld [vmem:[#allocation4 + $0x1d8] sm:$0xff]
    %v1928 = vld [vmem:[#allocation4 + $0x1e0] sm:$0xff]
    %v1929 = vld [vmem:[#allocation4 + $0x1e8] sm:$0xff]
    %v1930 = vld [vmem:[#allocation4 + $0x1f0] sm:$0xff]
    %v1931 = vld [vmem:[#allocation4 + $0x1f8] sm:$0xff]
    %v1932 = vld [vmem:[#allocation4 + $0x200] sm:$0xff]
    %v1933 = vld [vmem:[#allocation4 + $0x208] sm:$0xff]
    %v1934 = vld [vmem:[#allocation4 + $0x210] sm:$0xff]
    %v1935 = vld [vmem:[#allocation4 + $0x218] sm:$0xff]
    %v1936 = vld [vmem:[#allocation4 + $0x220] sm:$0xff]
    %v1937 = vld [vmem:[#allocation4 + $0x228] sm:$0xff]
    %v1938 = vld [vmem:[#allocation4 + $0x230] sm:$0xff]
    %v1939 = vld [vmem:[#allocation4 + $0x238] sm:$0xff]
    %v1940 = vld [vmem:[#allocation4 + $0x240] sm:$0xff]
    %v1941 = vld [vmem:[#allocation4 + $0x248] sm:$0xff]
    %v1942 = vld [vmem:[#allocation4 + $0x250] sm:$0xff]
    %v1943 = vld [vmem:[#allocation4 + $0x258] sm:$0xff]
    %v1944 = vld [vmem:[#allocation4 + $0x260] sm:$0xff]
    %v1945 = vld [vmem:[#allocation4 + $0x268] sm:$0xff]
    %v1946 = vld [vmem:[#allocation4 + $0x270] sm:$0xff]
    %v1947 = vld [vmem:[#allocation4 + $0x278] sm:$0xff]
    %v1948 = vld [vmem:[#allocation4 + $0x280] sm:$0xff]
    %v1949 = vld [vmem:[#allocation4 + $0x288] sm:$0xff]
    %v1950 = vld [vmem:[#allocation4 + $0x290] sm:$0xff]
    %v1951 = vld [vmem:[#allocation4 + $0x298] sm:$0xff]
    %v1952 = vld [vmem:[#allocation4 + $0x2a0] sm:$0xff]
    %v1953 = vld [vmem:[#allocation4 + $0x2a8] sm:$0xff]
    %v1954 = vld [vmem:[#allocation4 + $0x2b0] sm:$0xff]
    %v1955 = vld [vmem:[#allocation4 + $0x2b8] sm:$0xff]
    %v1956 = vld [vmem:[#allocation4 + $0x2c0] sm:$0xff]
    %v1957 = vld [vmem:[#allocation4 + $0x2c8] sm:$0xff]
    %v1958 = vld [vmem:[#allocation4 + $0x2d0] sm:$0xff]
    %v1959 = vld [vmem:[#allocation4 + $0x2d8] sm:$0xff]
    %v1960 = vld [vmem:[#allocation4 + $0x2e0] sm:$0xff]
    %v1961 = vld [vmem:[#allocation4 + $0x2e8] sm:$0xff]
    %v1962 = vld [vmem:[#allocation4 + $0x2f0] sm:$0xff]
    %v1963 = vld [vmem:[#allocation4 + $0x2f8] sm:$0xff]
    %v1964 = vld [vmem:[#allocation4 + $0x300] sm:$0xff]
    %v1965 = vld [vmem:[#allocation4 + $0x308] sm:$0xff]
    %v1966 = vld [vmem:[#allocation4 + $0x310] sm:$0xff]
    %v1967 = vld [vmem:[#allocation4 + $0x318] sm:$0xff]
    %v1968 = vld [vmem:[#allocation4 + $0x320] sm:$0xff]
    %v1969 = vld [vmem:[#allocation4 + $0x328] sm:$0xff]
    %v1970 = vld [vmem:[#allocation4 + $0x330] sm:$0xff]
    %v1971 = vld [vmem:[#allocation4 + $0x338] sm:$0xff]
    %v1972 = vld [vmem:[#allocation4 + $0x340] sm:$0xff]
    %v1973 = vld [vmem:[#allocation4 + $0x348] sm:$0xff]
    %v1974 = vld [vmem:[#allocation4 + $0x350] sm:$0xff]
    %v1975 = vld [vmem:[#allocation4 + $0x358] sm:$0xff]
    %v1976 = vld [vmem:[#allocation4 + $0x360] sm:$0xff]
    %v1977 = vld [vmem:[#allocation4 + $0x368] sm:$0xff]
    %v1978 = vld [vmem:[#allocation4 + $0x370] sm:$0xff]
    %v1979 = vld [vmem:[#allocation4 + $0x378] sm:$0xff]
    %v1980 = vld [vmem:[#allocation4 + $0x380] sm:$0xff]
    %v1981 = vld [vmem:[#allocation4 + $0x388] sm:$0xff]
    %v1982 = vld [vmem:[#allocation4 + $0x390] sm:$0xff]
    %v1983 = vld [vmem:[#allocation4 + $0x398] sm:$0xff]
    %v1984 = vld [vmem:[#allocation4 + $0x3a0] sm:$0xff]
    %v1985 = vld [vmem:[#allocation4 + $0x3a8] sm:$0xff]
    %v1986 = vld [vmem:[#allocation4 + $0x3b0] sm:$0xff]
    %v1987 = vld [vmem:[#allocation4 + $0x3b8] sm:$0xff]
    %v1988 = vld [vmem:[#allocation4 + $0x3c0] sm:$0xff]
    %v1989 = vld [vmem:[#allocation4 + $0x3c8] sm:$0xff]
    %v1990 = vld [vmem:[#allocation4 + $0x3d0] sm:$0xff]
    %v1991 = vld [vmem:[#allocation4 + $0x3d8] sm:$0xff]
    %v1992 = vld [vmem:[#allocation4 + $0x3e0] sm:$0xff]
    %v1993 = vld [vmem:[#allocation4 + $0x3e8] sm:$0xff]
    %v1994 = vld [vmem:[#allocation4 + $0x3f0] sm:$0xff]
    %v1995 = vld [vmem:[#allocation4 + $0x3f8] sm:$0xff]
    %v1996 = vld [vmem:[%s5] sm:$0xf]
    %v1998 = vlaneseq
    %v1999 = vshrl.u32 %v1998, 7
    %v2000 = vsub.s32 0, %v1999
    %v2001 = vrot.slane %v1996, %v2000
    %v2002 = vlaneseq
    %v2003 = vshrl.u32 %v2002, 7
    %v2004 = vsub.s32 1, %v2003
    %v2005 = vrot.slane %v1996, %v2004
    %v2006 = vlaneseq
    %v2007 = vshrl.u32 %v2006, 7
    %v2008 = vsub.s32 2, %v2007
    %v2009 = vrot.slane %v1996, %v2008
    %v2010 = vlaneseq
    %v2011 = vshrl.u32 %v2010, 7
    %v2012 = vsub.s32 3, %v2011
    %v2013 = vrot.slane %v1996, %v2012
    %v2146 = vunpack.c.l.b16 %v1868
    %v2147 = vunpack.c.h.b16 %v1868
    %v2148 = vunpack.c.l.b16 %v1869
    %v2149 = vunpack.c.h.b16 %v1869
    %v2150 = vunpack.c.l.b16 %v1870
    %v2151 = vunpack.c.h.b16 %v1870
    %v2152 = vunpack.c.l.b16 %v1871
    %v2153 = vunpack.c.h.b16 %v1871
    %v2154 = vunpack.c.l.b16 %v1872
    %v2155 = vunpack.c.h.b16 %v1872
    %v2156 = vunpack.c.l.b16 %v1873
    %v2157 = vunpack.c.h.b16 %v1873
    %v2158 = vunpack.c.l.b16 %v1874
    %v2159 = vunpack.c.h.b16 %v1874
    %v2160 = vunpack.c.l.b16 %v1875
    %v2161 = vunpack.c.h.b16 %v1875
    %v2162 = vunpack.c.l.b16 %v1876
    %v2163 = vunpack.c.h.b16 %v1876
    %v2164 = vunpack.c.l.b16 %v1877
    %v2165 = vunpack.c.h.b16 %v1877
    %v2166 = vunpack.c.l.b16 %v1878
    %v2167 = vunpack.c.h.b16 %v1878
    %v2168 = vunpack.c.l.b16 %v1879
    %v2169 = vunpack.c.h.b16 %v1879
    %v2170 = vunpack.c.l.b16 %v1880
    %v2171 = vunpack.c.h.b16 %v1880
    %v2172 = vunpack.c.l.b16 %v1881
    %v2173 = vunpack.c.h.b16 %v1881
    %v2174 = vunpack.c.l.b16 %v1882
    %v2175 = vunpack.c.h.b16 %v1882
    %v2176 = vunpack.c.l.b16 %v1883
    %v2177 = vunpack.c.h.b16 %v1883
    %v2178 = vunpack.c.l.b16 %v1884
    %v2179 = vunpack.c.h.b16 %v1884
    %v2180 = vunpack.c.l.b16 %v1885
    %v2181 = vunpack.c.h.b16 %v1885
    %v2182 = vunpack.c.l.b16 %v1886
    %v2183 = vunpack.c.h.b16 %v1886
    %v2184 = vunpack.c.l.b16 %v1887
    %v2185 = vunpack.c.h.b16 %v1887
    %v2186 = vunpack.c.l.b16 %v1888
    %v2187 = vunpack.c.h.b16 %v1888
    %v2188 = vunpack.c.l.b16 %v1889
    %v2189 = vunpack.c.h.b16 %v1889
    %v2190 = vunpack.c.l.b16 %v1890
    %v2191 = vunpack.c.h.b16 %v1890
    %v2192 = vunpack.c.l.b16 %v1891
    %v2193 = vunpack.c.h.b16 %v1891
    %v2194 = vunpack.c.l.b16 %v1892
    %v2195 = vunpack.c.h.b16 %v1892
    %v2196 = vunpack.c.l.b16 %v1893
    %v2197 = vunpack.c.h.b16 %v1893
    %v2198 = vunpack.c.l.b16 %v1894
    %v2199 = vunpack.c.h.b16 %v1894
    %v2200 = vunpack.c.l.b16 %v1895
    %v2201 = vunpack.c.h.b16 %v1895
    %v2202 = vunpack.c.l.b16 %v1896
    %v2203 = vunpack.c.h.b16 %v1896
    %v2204 = vunpack.c.l.b16 %v1897
    %v2205 = vunpack.c.h.b16 %v1897
    %v2206 = vunpack.c.l.b16 %v1898
    %v2207 = vunpack.c.h.b16 %v1898
    %v2208 = vunpack.c.l.b16 %v1899
    %v2209 = vunpack.c.h.b16 %v1899
    %v2210 = vunpack.c.l.b16 %v1900
    %v2211 = vunpack.c.h.b16 %v1900
    %v2212 = vunpack.c.l.b16 %v1901
    %v2213 = vunpack.c.h.b16 %v1901
    %v2214 = vunpack.c.l.b16 %v1902
    %v2215 = vunpack.c.h.b16 %v1902
    %v2216 = vunpack.c.l.b16 %v1903
    %v2217 = vunpack.c.h.b16 %v1903
    %v2218 = vunpack.c.l.b16 %v1904
    %v2219 = vunpack.c.h.b16 %v1904
    %v2220 = vunpack.c.l.b16 %v1905
    %v2221 = vunpack.c.h.b16 %v1905
    %v2222 = vunpack.c.l.b16 %v1906
    %v2223 = vunpack.c.h.b16 %v1906
    %v2224 = vunpack.c.l.b16 %v1907
    %v2225 = vunpack.c.h.b16 %v1907
    %v2226 = vunpack.c.l.b16 %v1908
    %v2227 = vunpack.c.h.b16 %v1908
    %v2228 = vunpack.c.l.b16 %v1909
    %v2229 = vunpack.c.h.b16 %v1909
    %v2230 = vunpack.c.l.b16 %v1910
    %v2231 = vunpack.c.h.b16 %v1910
    %v2232 = vunpack.c.l.b16 %v1911
    %v2233 = vunpack.c.h.b16 %v1911
    %v2234 = vunpack.c.l.b16 %v1912
    %v2235 = vunpack.c.h.b16 %v1912
    %v2236 = vunpack.c.l.b16 %v1913
    %v2237 = vunpack.c.h.b16 %v1913
    %v2238 = vunpack.c.l.b16 %v1914
    %v2239 = vunpack.c.h.b16 %v1914
    %v2240 = vunpack.c.l.b16 %v1915
    %v2241 = vunpack.c.h.b16 %v1915
    %v2242 = vunpack.c.l.b16 %v1916
    %v2243 = vunpack.c.h.b16 %v1916
    %v2244 = vunpack.c.l.b16 %v1917
    %v2245 = vunpack.c.h.b16 %v1917
    %v2246 = vunpack.c.l.b16 %v1918
    %v2247 = vunpack.c.h.b16 %v1918
    %v2248 = vunpack.c.l.b16 %v1919
    %v2249 = vunpack.c.h.b16 %v1919
    %v2250 = vunpack.c.l.b16 %v1920
    %v2251 = vunpack.c.h.b16 %v1920
    %v2252 = vunpack.c.l.b16 %v1921
    %v2253 = vunpack.c.h.b16 %v1921
    %v2254 = vunpack.c.l.b16 %v1922
    %v2255 = vunpack.c.h.b16 %v1922
    %v2256 = vunpack.c.l.b16 %v1923
    %v2257 = vunpack.c.h.b16 %v1923
    %v2258 = vunpack.c.l.b16 %v1924
    %v2259 = vunpack.c.h.b16 %v1924
    %v2260 = vunpack.c.l.b16 %v1925
    %v2261 = vunpack.c.h.b16 %v1925
    %v2262 = vunpack.c.l.b16 %v1926
    %v2263 = vunpack.c.h.b16 %v1926
    %v2264 = vunpack.c.l.b16 %v1927
    %v2265 = vunpack.c.h.b16 %v1927
    %v2266 = vunpack.c.l.b16 %v1928
    %v2267 = vunpack.c.h.b16 %v1928
    %v2268 = vunpack.c.l.b16 %v1929
    %v2269 = vunpack.c.h.b16 %v1929
    %v2270 = vunpack.c.l.b16 %v1930
    %v2271 = vunpack.c.h.b16 %v1930
    %v2272 = vunpack.c.l.b16 %v1931
    %v2273 = vunpack.c.h.b16 %v1931
    %v2274 = vunpack.c.l.b16 %v1932
    %v2275 = vunpack.c.h.b16 %v1932
    %v2276 = vunpack.c.l.b16 %v1933
    %v2277 = vunpack.c.h.b16 %v1933
    %v2278 = vunpack.c.l.b16 %v1934
    %v2279 = vunpack.c.h.b16 %v1934
    %v2280 = vunpack.c.l.b16 %v1935
    %v2281 = vunpack.c.h.b16 %v1935
    %v2282 = vunpack.c.l.b16 %v1936
    %v2283 = vunpack.c.h.b16 %v1936
    %v2284 = vunpack.c.l.b16 %v1937
    %v2285 = vunpack.c.h.b16 %v1937
    %v2286 = vunpack.c.l.b16 %v1938
    %v2287 = vunpack.c.h.b16 %v1938
    %v2288 = vunpack.c.l.b16 %v1939
    %v2289 = vunpack.c.h.b16 %v1939
    %v2290 = vunpack.c.l.b16 %v1940
    %v2291 = vunpack.c.h.b16 %v1940
    %v2292 = vunpack.c.l.b16 %v1941
    %v2293 = vunpack.c.h.b16 %v1941
    %v2294 = vunpack.c.l.b16 %v1942
    %v2295 = vunpack.c.h.b16 %v1942
    %v2296 = vunpack.c.l.b16 %v1943
    %v2297 = vunpack.c.h.b16 %v1943
    %v2298 = vunpack.c.l.b16 %v1944
    %v2299 = vunpack.c.h.b16 %v1944
    %v2300 = vunpack.c.l.b16 %v1945
    %v2301 = vunpack.c.h.b16 %v1945
    %v2302 = vunpack.c.l.b16 %v1946
    %v2303 = vunpack.c.h.b16 %v1946
    %v2304 = vunpack.c.l.b16 %v1947
    %v2305 = vunpack.c.h.b16 %v1947
    %v2306 = vunpack.c.l.b16 %v1948
    %v2307 = vunpack.c.h.b16 %v1948
    %v2308 = vunpack.c.l.b16 %v1949
    %v2309 = vunpack.c.h.b16 %v1949
    %v2310 = vunpack.c.l.b16 %v1950
    %v2311 = vunpack.c.h.b16 %v1950
    %v2312 = vunpack.c.l.b16 %v1951
    %v2313 = vunpack.c.h.b16 %v1951
    %v2314 = vunpack.c.l.b16 %v1952
    %v2315 = vunpack.c.h.b16 %v1952
    %v2316 = vunpack.c.l.b16 %v1953
    %v2317 = vunpack.c.h.b16 %v1953
    %v2318 = vunpack.c.l.b16 %v1954
    %v2319 = vunpack.c.h.b16 %v1954
    %v2320 = vunpack.c.l.b16 %v1955
    %v2321 = vunpack.c.h.b16 %v1955
    %v2322 = vunpack.c.l.b16 %v1956
    %v2323 = vunpack.c.h.b16 %v1956
    %v2324 = vunpack.c.l.b16 %v1957
    %v2325 = vunpack.c.h.b16 %v1957
    %v2326 = vunpack.c.l.b16 %v1958
    %v2327 = vunpack.c.h.b16 %v1958
    %v2328 = vunpack.c.l.b16 %v1959
    %v2329 = vunpack.c.h.b16 %v1959
    %v2330 = vunpack.c.l.b16 %v1960
    %v2331 = vunpack.c.h.b16 %v1960
    %v2332 = vunpack.c.l.b16 %v1961
    %v2333 = vunpack.c.h.b16 %v1961
    %v2334 = vunpack.c.l.b16 %v1962
    %v2335 = vunpack.c.h.b16 %v1962
    %v2336 = vunpack.c.l.b16 %v1963
    %v2337 = vunpack.c.h.b16 %v1963
    %v2338 = vunpack.c.l.b16 %v1964
    %v2339 = vunpack.c.h.b16 %v1964
    %v2340 = vunpack.c.l.b16 %v1965
    %v2341 = vunpack.c.h.b16 %v1965
    %v2342 = vunpack.c.l.b16 %v1966
    %v2343 = vunpack.c.h.b16 %v1966
    %v2344 = vunpack.c.l.b16 %v1967
    %v2345 = vunpack.c.h.b16 %v1967
    %v2346 = vunpack.c.l.b16 %v1968
    %v2347 = vunpack.c.h.b16 %v1968
    %v2348 = vunpack.c.l.b16 %v1969
    %v2349 = vunpack.c.h.b16 %v1969
    %v2350 = vunpack.c.l.b16 %v1970
    %v2351 = vunpack.c.h.b16 %v1970
    %v2352 = vunpack.c.l.b16 %v1971
    %v2353 = vunpack.c.h.b16 %v1971
    %v2354 = vunpack.c.l.b16 %v1972
    %v2355 = vunpack.c.h.b16 %v1972
    %v2356 = vunpack.c.l.b16 %v1973
    %v2357 = vunpack.c.h.b16 %v1973
    %v2358 = vunpack.c.l.b16 %v1974
    %v2359 = vunpack.c.h.b16 %v1974
    %v2360 = vunpack.c.l.b16 %v1975
    %v2361 = vunpack.c.h.b16 %v1975
    %v2362 = vunpack.c.l.b16 %v1976
    %v2363 = vunpack.c.h.b16 %v1976
    %v2364 = vunpack.c.l.b16 %v1977
    %v2365 = vunpack.c.h.b16 %v1977
    %v2366 = vunpack.c.l.b16 %v1978
    %v2367 = vunpack.c.h.b16 %v1978
    %v2368 = vunpack.c.l.b16 %v1979
    %v2369 = vunpack.c.h.b16 %v1979
    %v2370 = vunpack.c.l.b16 %v1980
    %v2371 = vunpack.c.h.b16 %v1980
    %v2372 = vunpack.c.l.b16 %v1981
    %v2373 = vunpack.c.h.b16 %v1981
    %v2374 = vunpack.c.l.b16 %v1982
    %v2375 = vunpack.c.h.b16 %v1982
    %v2376 = vunpack.c.l.b16 %v1983
    %v2377 = vunpack.c.h.b16 %v1983
    %v2378 = vunpack.c.l.b16 %v1984
    %v2379 = vunpack.c.h.b16 %v1984
    %v2380 = vunpack.c.l.b16 %v1985
    %v2381 = vunpack.c.h.b16 %v1985
    %v2382 = vunpack.c.l.b16 %v1986
    %v2383 = vunpack.c.h.b16 %v1986
    %v2384 = vunpack.c.l.b16 %v1987
    %v2385 = vunpack.c.h.b16 %v1987
    %v2386 = vunpack.c.l.b16 %v1988
    %v2387 = vunpack.c.h.b16 %v1988
    %v2388 = vunpack.c.l.b16 %v1989
    %v2389 = vunpack.c.h.b16 %v1989
    %v2390 = vunpack.c.l.b16 %v1990
    %v2391 = vunpack.c.h.b16 %v1990
    %v2392 = vunpack.c.l.b16 %v1991
    %v2393 = vunpack.c.h.b16 %v1991
    %v2394 = vunpack.c.l.b16 %v1992
    %v2395 = vunpack.c.h.b16 %v1992
    %v2396 = vunpack.c.l.b16 %v1993
    %v2397 = vunpack.c.h.b16 %v1993
    %v2398 = vunpack.c.l.b16 %v1994
    %v2399 = vunpack.c.h.b16 %v1994
    %v2400 = vunpack.c.l.b16 %v1995
    %v2401 = vunpack.c.h.b16 %v1995
    %v2402 = vpack.c.b16 %v2150, %v2146
    %v2403 = vpack.c.b16 %v2151, %v2147
    %v2404 = vpack.c.b16 %v2152, %v2148
    %v2405 = vpack.c.b16 %v2153, %v2149
    %v2406 = vpack.c.b16 %v2158, %v2154
    %v2407 = vpack.c.b16 %v2159, %v2155
    %v2408 = vpack.c.b16 %v2160, %v2156
    %v2409 = vpack.c.b16 %v2161, %v2157
    %v2410 = vpack.c.b16 %v2166, %v2162
    %v2411 = vpack.c.b16 %v2167, %v2163
    %v2412 = vpack.c.b16 %v2168, %v2164
    %v2413 = vpack.c.b16 %v2169, %v2165
    %v2414 = vpack.c.b16 %v2174, %v2170
    %v2415 = vpack.c.b16 %v2175, %v2171
    %v2416 = vpack.c.b16 %v2176, %v2172
    %v2417 = vpack.c.b16 %v2177, %v2173
    %v2418 = vpack.c.b16 %v2182, %v2178
    %v2419 = vpack.c.b16 %v2183, %v2179
    %v2420 = vpack.c.b16 %v2184, %v2180
    %v2421 = vpack.c.b16 %v2185, %v2181
    %v2422 = vpack.c.b16 %v2190, %v2186
    %v2423 = vpack.c.b16 %v2191, %v2187
    %v2424 = vpack.c.b16 %v2192, %v2188
    %v2425 = vpack.c.b16 %v2193, %v2189
    %v2426 = vpack.c.b16 %v2198, %v2194
    %v2427 = vpack.c.b16 %v2199, %v2195
    %v2428 = vpack.c.b16 %v2200, %v2196
    %v2429 = vpack.c.b16 %v2201, %v2197
    %v2430 = vpack.c.b16 %v2206, %v2202
    %v2431 = vpack.c.b16 %v2207, %v2203
    %v2432 = vpack.c.b16 %v2208, %v2204
    %v2433 = vpack.c.b16 %v2209, %v2205
    %v2434 = vpack.c.b16 %v2214, %v2210
    %v2435 = vpack.c.b16 %v2215, %v2211
    %v2436 = vpack.c.b16 %v2216, %v2212
    %v2437 = vpack.c.b16 %v2217, %v2213
    %v2438 = vpack.c.b16 %v2222, %v2218
    %v2439 = vpack.c.b16 %v2223, %v2219
    %v2440 = vpack.c.b16 %v2224, %v2220
    %v2441 = vpack.c.b16 %v2225, %v2221
    %v2442 = vpack.c.b16 %v2230, %v2226
    %v2443 = vpack.c.b16 %v2231, %v2227
    %v2444 = vpack.c.b16 %v2232, %v2228
    %v2445 = vpack.c.b16 %v2233, %v2229
    %v2446 = vpack.c.b16 %v2238, %v2234
    %v2447 = vpack.c.b16 %v2239, %v2235
    %v2448 = vpack.c.b16 %v2240, %v2236
    %v2449 = vpack.c.b16 %v2241, %v2237
    %v2450 = vpack.c.b16 %v2246, %v2242
    %v2451 = vpack.c.b16 %v2247, %v2243
    %v2452 = vpack.c.b16 %v2248, %v2244
    %v2453 = vpack.c.b16 %v2249, %v2245
    %v2454 = vpack.c.b16 %v2254, %v2250
    %v2455 = vpack.c.b16 %v2255, %v2251
    %v2456 = vpack.c.b16 %v2256, %v2252
    %v2457 = vpack.c.b16 %v2257, %v2253
    %v2458 = vpack.c.b16 %v2262, %v2258
    %v2459 = vpack.c.b16 %v2263, %v2259
    %v2460 = vpack.c.b16 %v2264, %v2260
    %v2461 = vpack.c.b16 %v2265, %v2261
    %v2462 = vpack.c.b16 %v2270, %v2266
    %v2463 = vpack.c.b16 %v2271, %v2267
    %v2464 = vpack.c.b16 %v2272, %v2268
    %v2465 = vpack.c.b16 %v2273, %v2269
    %v2466 = vpack.c.b16 %v2278, %v2274
    %v2467 = vpack.c.b16 %v2279, %v2275
    %v2468 = vpack.c.b16 %v2280, %v2276
    %v2469 = vpack.c.b16 %v2281, %v2277
    %v2470 = vpack.c.b16 %v2286, %v2282
    %v2471 = vpack.c.b16 %v2287, %v2283
    %v2472 = vpack.c.b16 %v2288, %v2284
    %v2473 = vpack.c.b16 %v2289, %v2285
    %v2474 = vpack.c.b16 %v2294, %v2290
    %v2475 = vpack.c.b16 %v2295, %v2291
    %v2476 = vpack.c.b16 %v2296, %v2292
    %v2477 = vpack.c.b16 %v2297, %v2293
    %v2478 = vpack.c.b16 %v2302, %v2298
    %v2479 = vpack.c.b16 %v2303, %v2299
    %v2480 = vpack.c.b16 %v2304, %v2300
    %v2481 = vpack.c.b16 %v2305, %v2301
    %v2482 = vpack.c.b16 %v2310, %v2306
    %v2483 = vpack.c.b16 %v2311, %v2307
    %v2484 = vpack.c.b16 %v2312, %v2308
    %v2485 = vpack.c.b16 %v2313, %v2309
    %v2486 = vpack.c.b16 %v2318, %v2314
    %v2487 = vpack.c.b16 %v2319, %v2315
    %v2488 = vpack.c.b16 %v2320, %v2316
    %v2489 = vpack.c.b16 %v2321, %v2317
    %v2490 = vpack.c.b16 %v2326, %v2322
    %v2491 = vpack.c.b16 %v2327, %v2323
    %v2492 = vpack.c.b16 %v2328, %v2324
    %v2493 = vpack.c.b16 %v2329, %v2325
    %v2494 = vpack.c.b16 %v2334, %v2330
    %v2495 = vpack.c.b16 %v2335, %v2331
    %v2496 = vpack.c.b16 %v2336, %v2332
    %v2497 = vpack.c.b16 %v2337, %v2333
    %v2498 = vpack.c.b16 %v2342, %v2338
    %v2499 = vpack.c.b16 %v2343, %v2339
    %v2500 = vpack.c.b16 %v2344, %v2340
    %v2501 = vpack.c.b16 %v2345, %v2341
    %v2502 = vpack.c.b16 %v2350, %v2346
    %v2503 = vpack.c.b16 %v2351, %v2347
    %v2504 = vpack.c.b16 %v2352, %v2348
    %v2505 = vpack.c.b16 %v2353, %v2349
    %v2506 = vpack.c.b16 %v2358, %v2354
    %v2507 = vpack.c.b16 %v2359, %v2355
    %v2508 = vpack.c.b16 %v2360, %v2356
    %v2509 = vpack.c.b16 %v2361, %v2357
    %v2510 = vpack.c.b16 %v2366, %v2362
    %v2511 = vpack.c.b16 %v2367, %v2363
    %v2512 = vpack.c.b16 %v2368, %v2364
    %v2513 = vpack.c.b16 %v2369, %v2365
    %v2514 = vpack.c.b16 %v2374, %v2370
    %v2515 = vpack.c.b16 %v2375, %v2371
    %v2516 = vpack.c.b16 %v2376, %v2372
    %v2517 = vpack.c.b16 %v2377, %v2373
    %v2518 = vpack.c.b16 %v2382, %v2378
    %v2519 = vpack.c.b16 %v2383, %v2379
    %v2520 = vpack.c.b16 %v2384, %v2380
    %v2521 = vpack.c.b16 %v2385, %v2381
    %v2522 = vpack.c.b16 %v2390, %v2386
    %v2523 = vpack.c.b16 %v2391, %v2387
    %v2524 = vpack.c.b16 %v2392, %v2388
    %v2525 = vpack.c.b16 %v2393, %v2389
    %v2526 = vpack.c.b16 %v2398, %v2394
    %v2527 = vpack.c.b16 %v2399, %v2395
    %v2528 = vpack.c.b16 %v2400, %v2396
    %v2529 = vpack.c.b16 %v2401, %v2397
    %2658 = vmatprep.subr.bf16.mxu0 %v2403
    %2659 = vmatpush1.bf16.msra.mxu0 %v2402
    %2660 = vmatprep.subr.bf16.mxu0 %v2407
    %2661 = vmatpush1.bf16.msra.mxu0 %v2406
    %2662 = vmatprep.subr.bf16.mxu0 %v2411
    %2663 = vmatpush1.bf16.msra.mxu0 %v2410
    %2664 = vmatprep.subr.bf16.mxu0 %v2415
    %2665 = vmatpush1.bf16.msra.mxu0 %v2414
    %2666 = vmatprep.subr.bf16.mxu0 %v2419
    %2667 = vmatpush1.bf16.msra.mxu0 %v2418
    %2668 = vmatprep.subr.bf16.mxu0 %v2423
    %2669 = vmatpush1.bf16.msra.mxu0 %v2422
    %2670 = vmatprep.subr.bf16.mxu0 %v2427
    %2671 = vmatpush1.bf16.msra.mxu0 %v2426
    %2672 = vmatprep.subr.bf16.mxu0 %v2431
    %2673 = vmatpush1.bf16.msra.mxu0 %v2430
    %2674 = vmatprep.subr.bf16.mxu0 %v2435
    %2675 = vmatpush1.bf16.msra.mxu0 %v2434
    %2676 = vmatprep.subr.bf16.mxu0 %v2439
    %2677 = vmatpush1.bf16.msra.mxu0 %v2438
    %2678 = vmatprep.subr.bf16.mxu0 %v2443
    %2679 = vmatpush1.bf16.msra.mxu0 %v2442
    %2680 = vmatprep.subr.bf16.mxu0 %v2447
    %2681 = vmatpush1.bf16.msra.mxu0 %v2446
    %2682 = vmatprep.subr.bf16.mxu0 %v2451
    %2683 = vmatpush1.bf16.msra.mxu0 %v2450
    %2684 = vmatprep.subr.bf16.mxu0 %v2455
    %2685 = vmatpush1.bf16.msra.mxu0 %v2454
    %2686 = vmatprep.subr.bf16.mxu0 %v2459
    %2687 = vmatpush1.bf16.msra.mxu0 %v2458
    %2688 = vmatprep.subr.bf16.mxu0 %v2463
    %2689 = vmatpush1.bf16.msra.mxu0 %v2462
    %2690 = vmatprep.mubr.bf16.mxu0 %v1865
    %2691 = vmatmul.mubr.bf16.gmra.mrb[0].mxu0 %v1864
    %v2692 = vpop.f32.mrb[0].mxu0
    %v2693 = vadd.f32 %v2001, %v2692
    %v2694 = vpop.f32.mrb[0].mxu0
    %v2695 = vadd.f32 %v2005, %v2694
    %v2696 = vpop.f32.mrb[0].mxu0
    %v2697 = vpop.f32.mrb[0].mxu0
    %2698 = vdwg.mxu0
    %2699 = vmatprep.subr.bf16.mxu0 %v2467
    %2700 = vmatpush1.bf16.msra.mxu0 %v2466
    %2701 = vmatprep.subr.bf16.mxu0 %v2471
    %2702 = vmatpush1.bf16.msra.mxu0 %v2470
    %2703 = vmatprep.subr.bf16.mxu0 %v2475
    %2704 = vmatpush1.bf16.msra.mxu0 %v2474
    %2705 = vmatprep.subr.bf16.mxu0 %v2479
    %2706 = vmatpush1.bf16.msra.mxu0 %v2478
    %2707 = vmatprep.subr.bf16.mxu0 %v2483
    %2708 = vmatpush1.bf16.msra.mxu0 %v2482
    %2709 = vmatprep.subr.bf16.mxu0 %v2487
    %2710 = vmatpush1.bf16.msra.mxu0 %v2486
    %2711 = vmatprep.subr.bf16.mxu0 %v2491
    %2712 = vmatpush1.bf16.msra.mxu0 %v2490
    %2713 = vmatprep.subr.bf16.mxu0 %v2495
    %2714 = vmatpush1.bf16.msra.mxu0 %v2494
    %2715 = vmatprep.subr.bf16.mxu0 %v2499
    %2716 = vmatpush1.bf16.msra.mxu0 %v2498
    %2717 = vmatprep.subr.bf16.mxu0 %v2503
    %2718 = vmatpush1.bf16.msra.mxu0 %v2502
    %2719 = vmatprep.subr.bf16.mxu0 %v2507
    %2720 = vmatpush1.bf16.msra.mxu0 %v2506
    %2721 = vmatprep.subr.bf16.mxu0 %v2511
    %2722 = vmatpush1.bf16.msra.mxu0 %v2510
    %2723 = vmatprep.subr.bf16.mxu0 %v2515
    %2724 = vmatpush1.bf16.msra.mxu0 %v2514
    %2725 = vmatprep.subr.bf16.mxu0 %v2519
    %2726 = vmatpush1.bf16.msra.mxu0 %v2518
    %2727 = vmatprep.subr.bf16.mxu0 %v2523
    %2728 = vmatpush1.bf16.msra.mxu0 %v2522
    %2729 = vmatprep.subr.bf16.mxu0 %v2527
    %2730 = vmatpush1.bf16.msra.mxu0 %v2526
    %2731 = vmatprep.mubr.bf16.mxu0 %v1867
    %2732 = vmatmul.mubr.bf16.gmra.mrb[0].mxu0 %v1866
    %v2733 = vpop.f32.mrb[0].mxu0
    %v2734 = vadd.f32 %v2693, %v2733
    %v2735 = vpop.f32.mrb[0].mxu0
    %v2736 = vadd.f32 %v2695, %v2735
    %v2737 = vpop.f32.mrb[0].mxu0
    %v2738 = vpop.f32.mrb[0].mxu0
    %2739 = vdwg.mxu0
    %2740 = vmatprep.subr.bf16.mxu0 %v2405
    %2741 = vmatpush1.bf16.msra.mxu0 %v2404
    %2742 = vmatprep.subr.bf16.mxu0 %v2409
    %2743 = vmatpush1.bf16.msra.mxu0 %v2408
    %2744 = vmatprep.subr.bf16.mxu0 %v2413
    %2745 = vmatpush1.bf16.msra.mxu0 %v2412
    %2746 = vmatprep.subr.bf16.mxu0 %v2417
    %2747 = vmatpush1.bf16.msra.mxu0 %v2416
    %2748 = vmatprep.subr.bf16.mxu0 %v2421
    %2749 = vmatpush1.bf16.msra.mxu0 %v2420
    %2750 = vmatprep.subr.bf16.mxu0 %v2425
    %2751 = vmatpush1.bf16.msra.mxu0 %v2424
    %2752 = vmatprep.subr.bf16.mxu0 %v2429
    %2753 = vmatpush1.bf16.msra.mxu0 %v2428
    %2754 = vmatprep.subr.bf16.mxu0 %v2433
    %2755 = vmatpush1.bf16.msra.mxu0 %v2432
    %2756 = vmatprep.subr.bf16.mxu0 %v2437
    %2757 = vmatpush1.bf16.msra.mxu0 %v2436
    %2758 = vmatprep.subr.bf16.mxu0 %v2441
    %2759 = vmatpush1.bf16.msra.mxu0 %v2440
    %2760 = vmatprep.subr.bf16.mxu0 %v2445
    %2761 = vmatpush1.bf16.msra.mxu0 %v2444
    %2762 = vmatprep.subr.bf16.mxu0 %v2449
    %2763 = vmatpush1.bf16.msra.mxu0 %v2448
    %2764 = vmatprep.subr.bf16.mxu0 %v2453
    %2765 = vmatpush1.bf16.msra.mxu0 %v2452
    %2766 = vmatprep.subr.bf16.mxu0 %v2457
    %2767 = vmatpush1.bf16.msra.mxu0 %v2456
    %2768 = vmatprep.subr.bf16.mxu0 %v2461
    %2769 = vmatpush1.bf16.msra.mxu0 %v2460
    %2770 = vmatprep.subr.bf16.mxu0 %v2465
    %2771 = vmatpush1.bf16.msra.mxu0 %v2464
    %2772 = vmatprep.mubr.bf16.mxu0 %v1865
    %2773 = vmatmul.mubr.bf16.gmra.mrb[0].mxu0 %v1864
    %v2774 = vpop.f32.mrb[0].mxu0
    %v2775 = vadd.f32 %v2009, %v2774
    %v2776 = vpop.f32.mrb[0].mxu0
    %v2777 = vadd.f32 %v2013, %v2776
    %v2778 = vpop.f32.mrb[0].mxu0
    %v2779 = vpop.f32.mrb[0].mxu0
    %2780 = vdwg.mxu0
    %2781 = vmatprep.subr.bf16.mxu0 %v2469
    %2782 = vmatpush1.bf16.msra.mxu0 %v2468
    %2783 = vmatprep.subr.bf16.mxu0 %v2473
    %2784 = vmatpush1.bf16.msra.mxu0 %v2472
    %2785 = vmatprep.subr.bf16.mxu0 %v2477
    %2786 = vmatpush1.bf16.msra.mxu0 %v2476
    %2787 = vmatprep.subr.bf16.mxu0 %v2481
    %2788 = vmatpush1.bf16.msra.mxu0 %v2480
    %2789 = vmatprep.subr.bf16.mxu0 %v2485
    %2790 = vmatpush1.bf16.msra.mxu0 %v2484
    %2791 = vmatprep.subr.bf16.mxu0 %v2489
    %2792 = vmatpush1.bf16.msra.mxu0 %v2488
    %2793 = vmatprep.subr.bf16.mxu0 %v2493
    %2794 = vmatpush1.bf16.msra.mxu0 %v2492
    %2795 = vmatprep.subr.bf16.mxu0 %v2497
    %2796 = vmatpush1.bf16.msra.mxu0 %v2496
    %2797 = vmatprep.subr.bf16.mxu0 %v2501
    %2798 = vmatpush1.bf16.msra.mxu0 %v2500
    %2799 = vmatprep.subr.bf16.mxu0 %v2505
    %2800 = vmatpush1.bf16.msra.mxu0 %v2504
    %2801 = vmatprep.subr.bf16.mxu0 %v2509
    %2802 = vmatpush1.bf16.msra.mxu0 %v2508
    %2803 = vmatprep.subr.bf16.mxu0 %v2513
    %2804 = vmatpush1.bf16.msra.mxu0 %v2512
    %2805 = vmatprep.subr.bf16.mxu0 %v2517
    %2806 = vmatpush1.bf16.msra.mxu0 %v2516
    %2807 = vmatprep.subr.bf16.mxu0 %v2521
    %2808 = vmatpush1.bf16.msra.mxu0 %v2520
    %2809 = vmatprep.subr.bf16.mxu0 %v2525
    %2810 = vmatpush1.bf16.msra.mxu0 %v2524
    %2811 = vmatprep.subr.bf16.mxu0 %v2529
    %2812 = vmatpush1.bf16.msra.mxu0 %v2528
    %2813 = vmatprep.mubr.bf16.mxu0 %v1867
    %2814 = vmatmul.mubr.bf16.gmra.mrb[0].mxu0 %v1866
    %v2815 = vpop.f32.mrb[0].mxu0
    %v2816 = vadd.f32 %v2775, %v2815
    %v2817 = vpop.f32.mrb[0].mxu0
    %v2818 = vadd.f32 %v2777, %v2817
    %v2819 = vpop.f32.mrb[0].mxu0
    %v2820 = vpop.f32.mrb[0].mxu0
    %2821 = vdwg.mxu0
    %v2822 = vmax.f32 %v2734, 0.0
    %v2823 = vmax.f32 %v2736, 0.0
    %v2824 = vmax.f32 %v2816, 0.0
    %v2825 = vmax.f32 %v2818, 0.0
    %v2826 = vpack.c.bf16 %v2822, %v2822
    %v2827 = vpack.c.bf16 %v2823, %v2823
    %v2828 = vpack.c.bf16 %v2824, %v2824
    %v2829 = vpack.c.bf16 %v2825, %v2825
    %v2830 = vld [vmem:[#allocation6] sm:$0xf]
    %v2831 = vld [vmem:[#allocation6 + $0x4] sm:$0xf]
    %v2832 = vld [vmem:[#allocation6 + $0x8] sm:$0xf]
    %v2833 = vld [vmem:[#allocation6 + $0xc] sm:$0xf]
    %v2834 = vld [vmem:[#allocation6 + $0x10] sm:$0xf]
    %v2835 = vld [vmem:[#allocation6 + $0x14] sm:$0xf]
    %v2836 = vld [vmem:[#allocation6 + $0x18] sm:$0xf]
    %v2837 = vld [vmem:[#allocation6 + $0x1c] sm:$0xf]
    %v2838 = vld [vmem:[#allocation6 + $0x20] sm:$0xf]
    %v2839 = vld [vmem:[#allocation6 + $0x24] sm:$0xf]
    %v2840 = vld [vmem:[#allocation6 + $0x28] sm:$0xf]
    %v2841 = vld [vmem:[#allocation6 + $0x2c] sm:$0xf]
    %v2842 = vld [vmem:[#allocation6 + $0x30] sm:$0xf]
    %v2843 = vld [vmem:[#allocation6 + $0x34] sm:$0xf]
    %v2844 = vld [vmem:[#allocation6 + $0x38] sm:$0xf]
    %v2845 = vld [vmem:[#allocation6 + $0x3c] sm:$0xf]
    %v2846 = vld [vmem:[#allocation6 + $0x40] sm:$0xf]
    %v2847 = vld [vmem:[#allocation6 + $0x44] sm:$0xf]
    %v2848 = vld [vmem:[#allocation6 + $0x48] sm:$0xf]
    %v2849 = vld [vmem:[#allocation6 + $0x4c] sm:$0xf]
    %v2850 = vld [vmem:[#allocation6 + $0x50] sm:$0xf]
    %v2851 = vld [vmem:[#allocation6 + $0x54] sm:$0xf]
    %v2852 = vld [vmem:[#allocation6 + $0x58] sm:$0xf]
    %v2853 = vld [vmem:[#allocation6 + $0x5c] sm:$0xf]
    %v2854 = vld [vmem:[#allocation6 + $0x60] sm:$0xf]
    %v2855 = vld [vmem:[#allocation6 + $0x64] sm:$0xf]
    %v2856 = vld [vmem:[#allocation6 + $0x68] sm:$0xf]
    %v2857 = vld [vmem:[#allocation6 + $0x6c] sm:$0xf]
    %v2858 = vld [vmem:[#allocation6 + $0x70] sm:$0xf]
    %v2859 = vld [vmem:[#allocation6 + $0x74] sm:$0xf]
    %v2860 = vld [vmem:[#allocation6 + $0x78] sm:$0xf]
    %v2861 = vld [vmem:[#allocation6 + $0x7c] sm:$0xf]
    %v2862 = vld [vmem:[#allocation6 + $0x80] sm:$0xf]
    %v2863 = vld [vmem:[#allocation6 + $0x84] sm:$0xf]
    %v2864 = vld [vmem:[#allocation6 + $0x88] sm:$0xf]
    %v2865 = vld [vmem:[#allocation6 + $0x8c] sm:$0xf]
    %v2866 = vld [vmem:[#allocation6 + $0x90] sm:$0xf]
    %v2867 = vld [vmem:[#allocation6 + $0x94] sm:$0xf]
    %v2868 = vld [vmem:[#allocation6 + $0x98] sm:$0xf]
    %v2869 = vld [vmem:[#allocation6 + $0x9c] sm:$0xf]
    %v2870 = vld [vmem:[#allocation6 + $0xa0] sm:$0xf]
    %v2871 = vld [vmem:[#allocation6 + $0xa4] sm:$0xf]
    %v2872 = vld [vmem:[#allocation6 + $0xa8] sm:$0xf]
    %v2873 = vld [vmem:[#allocation6 + $0xac] sm:$0xf]
    %v2874 = vld [vmem:[#allocation6 + $0xb0] sm:$0xf]
    %v2875 = vld [vmem:[#allocation6 + $0xb4] sm:$0xf]
    %v2876 = vld [vmem:[#allocation6 + $0xb8] sm:$0xf]
    %v2877 = vld [vmem:[#allocation6 + $0xbc] sm:$0xf]
    %v2878 = vld [vmem:[#allocation6 + $0xc0] sm:$0xf]
    %v2879 = vld [vmem:[#allocation6 + $0xc4] sm:$0xf]
    %v2880 = vld [vmem:[#allocation6 + $0xc8] sm:$0xf]
    %v2881 = vld [vmem:[#allocation6 + $0xcc] sm:$0xf]
    %v2882 = vld [vmem:[#allocation6 + $0xd0] sm:$0xf]
    %v2883 = vld [vmem:[#allocation6 + $0xd4] sm:$0xf]
    %v2884 = vld [vmem:[#allocation6 + $0xd8] sm:$0xf]
    %v2885 = vld [vmem:[#allocation6 + $0xdc] sm:$0xf]
    %v2886 = vld [vmem:[#allocation6 + $0xe0] sm:$0xf]
    %v2887 = vld [vmem:[#allocation6 + $0xe4] sm:$0xf]
    %v2888 = vld [vmem:[#allocation6 + $0xe8] sm:$0xf]
    %v2889 = vld [vmem:[#allocation6 + $0xec] sm:$0xf]
    %v2890 = vld [vmem:[#allocation6 + $0xf0] sm:$0xf]
    %v2891 = vld [vmem:[#allocation6 + $0xf4] sm:$0xf]
    %v2892 = vld [vmem:[#allocation6 + $0xf8] sm:$0xf]
    %v2893 = vld [vmem:[#allocation6 + $0xfc] sm:$0xf]
    %v2894 = vld [vmem:[%s7] sm:$0x1]
    %v2896 = vlaneseq
    %v2897 = vshrl.u32 %v2896, 7
    %v2898 = vsub.s32 0, %v2897
    %v2899 = vrot.slane %v2894, %v2898
    %v2965 = vunpack.c.l.b16 %v2830
    %v2966 = vunpack.c.l.b16 %v2831
    %v2967 = vunpack.c.l.b16 %v2832
    %v2968 = vunpack.c.l.b16 %v2833
    %v2969 = vunpack.c.l.b16 %v2834
    %v2970 = vunpack.c.l.b16 %v2835
    %v2971 = vunpack.c.l.b16 %v2836
    %v2972 = vunpack.c.l.b16 %v2837
    %v2973 = vunpack.c.l.b16 %v2838
    %v2974 = vunpack.c.l.b16 %v2839
    %v2975 = vunpack.c.l.b16 %v2840
    %v2976 = vunpack.c.l.b16 %v2841
    %v2977 = vunpack.c.l.b16 %v2842
    %v2978 = vunpack.c.l.b16 %v2843
    %v2979 = vunpack.c.l.b16 %v2844
    %v2980 = vunpack.c.l.b16 %v2845
    %v2981 = vunpack.c.l.b16 %v2846
    %v2982 = vunpack.c.l.b16 %v2847
    %v2983 = vunpack.c.l.b16 %v2848
    %v2984 = vunpack.c.l.b16 %v2849
    %v2985 = vunpack.c.l.b16 %v2850
    %v2986 = vunpack.c.l.b16 %v2851
    %v2987 = vunpack.c.l.b16 %v2852
    %v2988 = vunpack.c.l.b16 %v2853
    %v2989 = vunpack.c.l.b16 %v2854
    %v2990 = vunpack.c.l.b16 %v2855
    %v2991 = vunpack.c.l.b16 %v2856
    %v2992 = vunpack.c.l.b16 %v2857
    %v2993 = vunpack.c.l.b16 %v2858
    %v2994 = vunpack.c.l.b16 %v2859
    %v2995 = vunpack.c.l.b16 %v2860
    %v2996 = vunpack.c.l.b16 %v2861
    %v2997 = vunpack.c.l.b16 %v2862
    %v2998 = vunpack.c.l.b16 %v2863
    %v2999 = vunpack.c.l.b16 %v2864
    %v3000 = vunpack.c.l.b16 %v2865
    %v3001 = vunpack.c.l.b16 %v2866
    %v3002 = vunpack.c.l.b16 %v2867
    %v3003 = vunpack.c.l.b16 %v2868
    %v3004 = vunpack.c.l.b16 %v2869
    %v3005 = vunpack.c.l.b16 %v2870
    %v3006 = vunpack.c.l.b16 %v2871
    %v3007 = vunpack.c.l.b16 %v2872
    %v3008 = vunpack.c.l.b16 %v2873
    %v3009 = vunpack.c.l.b16 %v2874
    %v3010 = vunpack.c.l.b16 %v2875
    %v3011 = vunpack.c.l.b16 %v2876
    %v3012 = vunpack.c.l.b16 %v2877
    %v3013 = vunpack.c.l.b16 %v2878
    %v3014 = vunpack.c.l.b16 %v2879
    %v3015 = vunpack.c.l.b16 %v2880
    %v3016 = vunpack.c.l.b16 %v2881
    %v3017 = vunpack.c.l.b16 %v2882
    %v3018 = vunpack.c.l.b16 %v2883
    %v3019 = vunpack.c.l.b16 %v2884
    %v3020 = vunpack.c.l.b16 %v2885
    %v3021 = vunpack.c.l.b16 %v2886
    %v3022 = vunpack.c.l.b16 %v2887
    %v3023 = vunpack.c.l.b16 %v2888
    %v3024 = vunpack.c.l.b16 %v2889
    %v3025 = vunpack.c.l.b16 %v2890
    %v3026 = vunpack.c.l.b16 %v2891
    %v3027 = vunpack.c.l.b16 %v2892
    %v3028 = vunpack.c.l.b16 %v2893
    %v3029 = vpack.c.b16 %v2966, %v2965
    %v3030 = vpack.c.b16 %v2968, %v2967
    %v3031 = vpack.c.b16 %v2970, %v2969
    %v3032 = vpack.c.b16 %v2972, %v2971
    %v3033 = vpack.c.b16 %v2974, %v2973
    %v3034 = vpack.c.b16 %v2976, %v2975
    %v3035 = vpack.c.b16 %v2978, %v2977
    %v3036 = vpack.c.b16 %v2980, %v2979
    %v3037 = vpack.c.b16 %v2982, %v2981
    %v3038 = vpack.c.b16 %v2984, %v2983
    %v3039 = vpack.c.b16 %v2986, %v2985
    %v3040 = vpack.c.b16 %v2988, %v2987
    %v3041 = vpack.c.b16 %v2990, %v2989
    %v3042 = vpack.c.b16 %v2992, %v2991
    %v3043 = vpack.c.b16 %v2994, %v2993
    %v3044 = vpack.c.b16 %v2996, %v2995
    %v3045 = vpack.c.b16 %v2998, %v2997
    %v3046 = vpack.c.b16 %v3000, %v2999
    %v3047 = vpack.c.b16 %v3002, %v3001
    %v3048 = vpack.c.b16 %v3004, %v3003
    %v3049 = vpack.c.b16 %v3006, %v3005
    %v3050 = vpack.c.b16 %v3008, %v3007
    %v3051 = vpack.c.b16 %v3010, %v3009
    %v3052 = vpack.c.b16 %v3012, %v3011
    %v3053 = vpack.c.b16 %v3014, %v3013
    %v3054 = vpack.c.b16 %v3016, %v3015
    %v3055 = vpack.c.b16 %v3018, %v3017
    %v3056 = vpack.c.b16 %v3020, %v3019
    %v3057 = vpack.c.b16 %v3022, %v3021
    %v3058 = vpack.c.b16 %v3024, %v3023
    %v3059 = vpack.c.b16 %v3026, %v3025
    %v3060 = vpack.c.b16 %v3028, %v3027
    %3093 = vmatprep.subr.bf16.mxu0 0
    %3094 = vmatpush1.bf16.msra.mxu0 %v3029
    %3095 = vmatprep.subr.bf16.mxu0 0
    %3096 = vmatpush1.bf16.msra.mxu0 %v3030
    %3097 = vmatprep.subr.bf16.mxu0 0
    %3098 = vmatpush1.bf16.msra.mxu0 %v3031
    %3099 = vmatprep.subr.bf16.mxu0 0
    %3100 = vmatpush1.bf16.msra.mxu0 %v3032
    %3101 = vmatprep.subr.bf16.mxu0 0
    %3102 = vmatpush1.bf16.msra.mxu0 %v3033
    %3103 = vmatprep.subr.bf16.mxu0 0
    %3104 = vmatpush1.bf16.msra.mxu0 %v3034
    %3105 = vmatprep.subr.bf16.mxu0 0
    %3106 = vmatpush1.bf16.msra.mxu0 %v3035
    %3107 = vmatprep.subr.bf16.mxu0 0
    %3108 = vmatpush1.bf16.msra.mxu0 %v3036
    %3109 = vmatprep.subr.bf16.mxu0 0
    %3110 = vmatpush1.bf16.msra.mxu0 %v3037
    %3111 = vmatprep.subr.bf16.mxu0 0
    %3112 = vmatpush1.bf16.msra.mxu0 %v3038
    %3113 = vmatprep.subr.bf16.mxu0 0
    %3114 = vmatpush1.bf16.msra.mxu0 %v3039
    %3115 = vmatprep.subr.bf16.mxu0 0
    %3116 = vmatpush1.bf16.msra.mxu0 %v3040
    %3117 = vmatprep.subr.bf16.mxu0 0
    %3118 = vmatpush1.bf16.msra.mxu0 %v3041
    %3119 = vmatprep.subr.bf16.mxu0 0
    %3120 = vmatpush1.bf16.msra.mxu0 %v3042
    %3121 = vmatprep.subr.bf16.mxu0 0
    %3122 = vmatpush1.bf16.msra.mxu0 %v3043
    %3123 = vmatprep.subr.bf16.mxu0 0
    %3124 = vmatpush1.bf16.msra.mxu0 %v3044
    %3125 = vmatprep.mubr.bf16.mxu0 %v2827
    %3126 = vmatmul.mubr.bf16.gmra.mrb[0].mxu0 %v2826
    %v3127 = vpop.f32.mrb[0].mxu0
    %v3128 = vadd.f32 %v2899, %v3127
    %v3129 = vpop.f32.mrb[0].mxu0
    %v3130 = vpop.f32.mrb[0].mxu0
    %v3131 = vpop.f32.mrb[0].mxu0
    %3132 = vdwg.mxu0
    %3133 = vmatprep.subr.bf16.mxu0 0
    %3134 = vmatpush1.bf16.msra.mxu0 %v3045
    %3135 = vmatprep.subr.bf16.mxu0 0
    %3136 = vmatpush1.bf16.msra.mxu0 %v3046
    %3137 = vmatprep.subr.bf16.mxu0 0
    %3138 = vmatpush1.bf16.msra.mxu0 %v3047
    %3139 = vmatprep.subr.bf16.mxu0 0
    %3140 = vmatpush1.bf16.msra.mxu0 %v3048
    %3141 = vmatprep.subr.bf16.mxu0 0
    %3142 = vmatpush1.bf16.msra.mxu0 %v3049
    %3143 = vmatprep.subr.bf16.mxu0 0
    %3144 = vmatpush1.bf16.msra.mxu0 %v3050
    %3145 = vmatprep.subr.bf16.mxu0 0
    %3146 = vmatpush1.bf16.msra.mxu0 %v3051
    %3147 = vmatprep.subr.bf16.mxu0 0
    %3148 = vmatpush1.bf16.msra.mxu0 %v3052
    %3149 = vmatprep.subr.bf16.mxu0 0
    %3150 = vmatpush1.bf16.msra.mxu0 %v3053
    %3151 = vmatprep.subr.bf16.mxu0 0
    %3152 = vmatpush1.bf16.msra.mxu0 %v3054
    %3153 = vmatprep.subr.bf16.mxu0 0
    %3154 = vmatpush1.bf16.msra.mxu0 %v3055
    %3155 = vmatprep.subr.bf16.mxu0 0
    %3156 = vmatpush1.bf16.msra.mxu0 %v3056
    %3157 = vmatprep.subr.bf16.mxu0 0
    %3158 = vmatpush1.bf16.msra.mxu0 %v3057
    %3159 = vmatprep.subr.bf16.mxu0 0
    %3160 = vmatpush1.bf16.msra.mxu0 %v3058
    %3161 = vmatprep.subr.bf16.mxu0 0
    %3162 = vmatpush1.bf16.msra.mxu0 %v3059
    %3163 = vmatprep.subr.bf16.mxu0 0
    %3164 = vmatpush1.bf16.msra.mxu0 %v3060
    %3165 = vmatprep.mubr.bf16.mxu0 %v2829
    %3166 = vmatmul.mubr.bf16.gmra.mrb[0].mxu0 %v2828
    %v3167 = vpop.f32.mrb[0].mxu0
    %v3168 = vadd.f32 %v3128, %v3167
    %v3169 = vpop.f32.mrb[0].mxu0
    %v3170 = vpop.f32.mrb[0].mxu0
    %v3171 = vpop.f32.mrb[0].mxu0
    %3172 = vdwg.mxu0
    %v3173 = vld [vmem:[#allocation7] sm:$0xf]
    %v3174 = vld [vmem:[#allocation7 + $0x4] sm:$0xf]
    %v3175 = vld [vmem:[#allocation7 + $0x8] sm:$0xf]
    %v3176 = vld [vmem:[#allocation7 + $0xc] sm:$0xf]
    %v3177 = vld [vmem:[#allocation7 + $0x10] sm:$0xf]
    %v3178 = vld [vmem:[#allocation7 + $0x14] sm:$0xf]
    %v3179 = vld [vmem:[#allocation7 + $0x18] sm:$0xf]
    %v3180 = vld [vmem:[#allocation7 + $0x1c] sm:$0xf]
    %v3181 = vld [vmem:[#allocation7 + $0x20] sm:$0xf]
    %v3182 = vld [vmem:[#allocation7 + $0x24] sm:$0xf]
    %v3183 = vld [vmem:[#allocation7 + $0x28] sm:$0xf]
    %v3184 = vld [vmem:[#allocation7 + $0x2c] sm:$0xf]
    %v3185 = vld [vmem:[#allocation7 + $0x30] sm:$0xf]
    %v3186 = vld [vmem:[#allocation7 + $0x34] sm:$0xf]
    %v3187 = vld [vmem:[#allocation7 + $0x38] sm:$0xf]
    %v3188 = vld [vmem:[#allocation7 + $0x3c] sm:$0xf]
    %v3189 = vld [vmem:[#allocation7 + $0x40] sm:$0xf]
    %v3190 = vld [vmem:[#allocation7 + $0x44] sm:$0xf]
    %v3191 = vld [vmem:[#allocation7 + $0x48] sm:$0xf]
    %v3192 = vld [vmem:[#allocation7 + $0x4c] sm:$0xf]
    %v3193 = vld [vmem:[#allocation7 + $0x50] sm:$0xf]
    %v3194 = vld [vmem:[#allocation7 + $0x54] sm:$0xf]
    %v3195 = vld [vmem:[#allocation7 + $0x58] sm:$0xf]
    %v3196 = vld [vmem:[#allocation7 + $0x5c] sm:$0xf]
    %v3197 = vld [vmem:[#allocation7 + $0x60] sm:$0xf]
    %v3198 = vld [vmem:[#allocation7 + $0x64] sm:$0xf]
    %v3199 = vld [vmem:[#allocation7 + $0x68] sm:$0xf]
    %v3200 = vld [vmem:[#allocation7 + $0x6c] sm:$0xf]
    %v3201 = vld [vmem:[#allocation7 + $0x70] sm:$0xf]
    %v3202 = vld [vmem:[#allocation7 + $0x74] sm:$0xf]
    %v3203 = vld [vmem:[#allocation7 + $0x78] sm:$0xf]
    %v3204 = vld [vmem:[#allocation7 + $0x7c] sm:$0xf]
    %v3205 = vld [vmem:[#allocation7 + $0x80] sm:$0xf]
    %v3206 = vld [vmem:[#allocation7 + $0x84] sm:$0xf]
    %v3207 = vld [vmem:[#allocation7 + $0x88] sm:$0xf]
    %v3208 = vld [vmem:[#allocation7 + $0x8c] sm:$0xf]
    %v3209 = vld [vmem:[#allocation7 + $0x90] sm:$0xf]
    %v3210 = vld [vmem:[#allocation7 + $0x94] sm:$0xf]
    %v3211 = vld [vmem:[#allocation7 + $0x98] sm:$0xf]
    %v3212 = vld [vmem:[#allocation7 + $0x9c] sm:$0xf]
    %v3213 = vld [vmem:[#allocation7 + $0xa0] sm:$0xf]
    %v3214 = vld [vmem:[#allocation7 + $0xa4] sm:$0xf]
    %v3215 = vld [vmem:[#allocation7 + $0xa8] sm:$0xf]
    %v3216 = vld [vmem:[#allocation7 + $0xac] sm:$0xf]
    %v3217 = vld [vmem:[#allocation7 + $0xb0] sm:$0xf]
    %v3218 = vld [vmem:[#allocation7 + $0xb4] sm:$0xf]
    %v3219 = vld [vmem:[#allocation7 + $0xb8] sm:$0xf]
    %v3220 = vld [vmem:[#allocation7 + $0xbc] sm:$0xf]
    %v3221 = vld [vmem:[#allocation7 + $0xc0] sm:$0xf]
    %v3222 = vld [vmem:[#allocation7 + $0xc4] sm:$0xf]
    %v3223 = vld [vmem:[#allocation7 + $0xc8] sm:$0xf]
    %v3224 = vld [vmem:[#allocation7 + $0xcc] sm:$0xf]
    %v3225 = vld [vmem:[#allocation7 + $0xd0] sm:$0xf]
    %v3226 = vld [vmem:[#allocation7 + $0xd4] sm:$0xf]
    %v3227 = vld [vmem:[#allocation7 + $0xd8] sm:$0xf]
    %v3228 = vld [vmem:[#allocation7 + $0xdc] sm:$0xf]
    %v3229 = vld [vmem:[#allocation7 + $0xe0] sm:$0xf]
    %v3230 = vld [vmem:[#allocation7 + $0xe4] sm:$0xf]
    %v3231 = vld [vmem:[#allocation7 + $0xe8] sm:$0xf]
    %v3232 = vld [vmem:[#allocation7 + $0xec] sm:$0xf]
    %v3233 = vld [vmem:[#allocation7 + $0xf0] sm:$0xf]
    %v3234 = vld [vmem:[#allocation7 + $0xf4] sm:$0xf]
    %v3235 = vld [vmem:[#allocation7 + $0xf8] sm:$0xf]
    %v3236 = vld [vmem:[#allocation7 + $0xfc] sm:$0xf]
    %v3237 = vld [vmem:[%s9] sm:$0x1]
    %v3239 = vlaneseq
    %v3240 = vshrl.u32 %v3239, 7
    %v3241 = vsub.s32 0, %v3240
    %v3242 = vrot.slane %v3237, %v3241
    %v3308 = vunpack.c.l.b16 %v3173
    %v3309 = vunpack.c.l.b16 %v3174
    %v3310 = vunpack.c.l.b16 %v3175
    %v3311 = vunpack.c.l.b16 %v3176
    %v3312 = vunpack.c.l.b16 %v3177
    %v3313 = vunpack.c.l.b16 %v3178
    %v3314 = vunpack.c.l.b16 %v3179
    %v3315 = vunpack.c.l.b16 %v3180
    %v3316 = vunpack.c.l.b16 %v3181
    %v3317 = vunpack.c.l.b16 %v3182
    %v3318 = vunpack.c.l.b16 %v3183
    %v3319 = vunpack.c.l.b16 %v3184
    %v3320 = vunpack.c.l.b16 %v3185
    %v3321 = vunpack.c.l.b16 %v3186
    %v3322 = vunpack.c.l.b16 %v3187
    %v3323 = vunpack.c.l.b16 %v3188
    %v3324 = vunpack.c.l.b16 %v3189
    %v3325 = vunpack.c.l.b16 %v3190
    %v3326 = vunpack.c.l.b16 %v3191
    %v3327 = vunpack.c.l.b16 %v3192
    %v3328 = vunpack.c.l.b16 %v3193
    %v3329 = vunpack.c.l.b16 %v3194
    %v3330 = vunpack.c.l.b16 %v3195
    %v3331 = vunpack.c.l.b16 %v3196
    %v3332 = vunpack.c.l.b16 %v3197
    %v3333 = vunpack.c.l.b16 %v3198
    %v3334 = vunpack.c.l.b16 %v3199
    %v3335 = vunpack.c.l.b16 %v3200
    %v3336 = vunpack.c.l.b16 %v3201
    %v3337 = vunpack.c.l.b16 %v3202
    %v3338 = vunpack.c.l.b16 %v3203
    %v3339 = vunpack.c.l.b16 %v3204
    %v3340 = vunpack.c.l.b16 %v3205
    %v3341 = vunpack.c.l.b16 %v3206
    %v3342 = vunpack.c.l.b16 %v3207
    %v3343 = vunpack.c.l.b16 %v3208
    %v3344 = vunpack.c.l.b16 %v3209
    %v3345 = vunpack.c.l.b16 %v3210
    %v3346 = vunpack.c.l.b16 %v3211
    %v3347 = vunpack.c.l.b16 %v3212
    %v3348 = vunpack.c.l.b16 %v3213
    %v3349 = vunpack.c.l.b16 %v3214
    %v3350 = vunpack.c.l.b16 %v3215
    %v3351 = vunpack.c.l.b16 %v3216
    %v3352 = vunpack.c.l.b16 %v3217
    %v3353 = vunpack.c.l.b16 %v3218
    %v3354 = vunpack.c.l.b16 %v3219
    %v3355 = vunpack.c.l.b16 %v3220
    %v3356 = vunpack.c.l.b16 %v3221
    %v3357 = vunpack.c.l.b16 %v3222
    %v3358 = vunpack.c.l.b16 %v3223
    %v3359 = vunpack.c.l.b16 %v3224
    %v3360 = vunpack.c.l.b16 %v3225
    %v3361 = vunpack.c.l.b16 %v3226
    %v3362 = vunpack.c.l.b16 %v3227
    %v3363 = vunpack.c.l.b16 %v3228
    %v3364 = vunpack.c.l.b16 %v3229
    %v3365 = vunpack.c.l.b16 %v3230
    %v3366 = vunpack.c.l.b16 %v3231
    %v3367 = vunpack.c.l.b16 %v3232
    %v3368 = vunpack.c.l.b16 %v3233
    %v3369 = vunpack.c.l.b16 %v3234
    %v3370 = vunpack.c.l.b16 %v3235
    %v3371 = vunpack.c.l.b16 %v3236
    %v3372 = vpack.c.b16 %v3309, %v3308
    %v3373 = vpack.c.b16 %v3311, %v3310
    %v3374 = vpack.c.b16 %v3313, %v3312
    %v3375 = vpack.c.b16 %v3315, %v3314
    %v3376 = vpack.c.b16 %v3317, %v3316
    %v3377 = vpack.c.b16 %v3319, %v3318
    %v3378 = vpack.c.b16 %v3321, %v3320
    %v3379 = vpack.c.b16 %v3323, %v3322
    %v3380 = vpack.c.b16 %v3325, %v3324
    %v3381 = vpack.c.b16 %v3327, %v3326
    %v3382 = vpack.c.b16 %v3329, %v3328
    %v3383 = vpack.c.b16 %v3331, %v3330
    %v3384 = vpack.c.b16 %v3333, %v3332
    %v3385 = vpack.c.b16 %v3335, %v3334
    %v3386 = vpack.c.b16 %v3337, %v3336
    %v3387 = vpack.c.b16 %v3339, %v3338
    %v3388 = vpack.c.b16 %v3341, %v3340
    %v3389 = vpack.c.b16 %v3343, %v3342
    %v3390 = vpack.c.b16 %v3345, %v3344
    %v3391 = vpack.c.b16 %v3347, %v3346
    %v3392 = vpack.c.b16 %v3349, %v3348
    %v3393 = vpack.c.b16 %v3351, %v3350
    %v3394 = vpack.c.b16 %v3353, %v3352
    %v3395 = vpack.c.b16 %v3355, %v3354
    %v3396 = vpack.c.b16 %v3357, %v3356
    %v3397 = vpack.c.b16 %v3359, %v3358
    %v3398 = vpack.c.b16 %v3361, %v3360
    %v3399 = vpack.c.b16 %v3363, %v3362
    %v3400 = vpack.c.b16 %v3365, %v3364
    %v3401 = vpack.c.b16 %v3367, %v3366
    %v3402 = vpack.c.b16 %v3369, %v3368
    %v3403 = vpack.c.b16 %v3371, %v3370
    %3436 = vmatprep.subr.bf16.mxu0 0
    %3437 = vmatpush1.bf16.msra.mxu0 %v3372
    %3438 = vmatprep.subr.bf16.mxu0 0
    %3439 = vmatpush1.bf16.msra.mxu0 %v3373
    %3440 = vmatprep.subr.bf16.mxu0 0
    %3441 = vmatpush1.bf16.msra.mxu0 %v3374
    %3442 = vmatprep.subr.bf16.mxu0 0
    %3443 = vmatpush1.bf16.msra.mxu0 %v3375
    %3444 = vmatprep.subr.bf16.mxu0 0
    %3445 = vmatpush1.bf16.msra.mxu0 %v3376
    %3446 = vmatprep.subr.bf16.mxu0 0
    %3447 = vmatpush1.bf16.msra.mxu0 %v3377
    %3448 = vmatprep.subr.bf16.mxu0 0
    %3449 = vmatpush1.bf16.msra.mxu0 %v3378
    %3450 = vmatprep.subr.bf16.mxu0 0
    %3451 = vmatpush1.bf16.msra.mxu0 %v3379
    %3452 = vmatprep.subr.bf16.mxu0 0
    %3453 = vmatpush1.bf16.msra.mxu0 %v3380
    %3454 = vmatprep.subr.bf16.mxu0 0
    %3455 = vmatpush1.bf16.msra.mxu0 %v3381
    %3456 = vmatprep.subr.bf16.mxu0 0
    %3457 = vmatpush1.bf16.msra.mxu0 %v3382
    %3458 = vmatprep.subr.bf16.mxu0 0
    %3459 = vmatpush1.bf16.msra.mxu0 %v3383
    %3460 = vmatprep.subr.bf16.mxu0 0
    %3461 = vmatpush1.bf16.msra.mxu0 %v3384
    %3462 = vmatprep.subr.bf16.mxu0 0
    %3463 = vmatpush1.bf16.msra.mxu0 %v3385
    %3464 = vmatprep.subr.bf16.mxu0 0
    %3465 = vmatpush1.bf16.msra.mxu0 %v3386
    %3466 = vmatprep.subr.bf16.mxu0 0
    %3467 = vmatpush1.bf16.msra.mxu0 %v3387
    %3468 = vmatprep.mubr.bf16.mxu0 %v2827
    %3469 = vmatmul.mubr.bf16.gmra.mrb[0].mxu0 %v2826
    %v3470 = vpop.f32.mrb[0].mxu0
    %v3471 = vadd.f32 %v3242, %v3470
    %v3472 = vpop.f32.mrb[0].mxu0
    %v3473 = vpop.f32.mrb[0].mxu0
    %v3474 = vpop.f32.mrb[0].mxu0
    %3475 = vdwg.mxu0
    %3476 = vmatprep.subr.bf16.mxu0 0
    %3477 = vmatpush1.bf16.msra.mxu0 %v3388
    %3478 = vmatprep.subr.bf16.mxu0 0
    %3479 = vmatpush1.bf16.msra.mxu0 %v3389
    %3480 = vmatprep.subr.bf16.mxu0 0
    %3481 = vmatpush1.bf16.msra.mxu0 %v3390
    %3482 = vmatprep.subr.bf16.mxu0 0
    %3483 = vmatpush1.bf16.msra.mxu0 %v3391
    %3484 = vmatprep.subr.bf16.mxu0 0
    %3485 = vmatpush1.bf16.msra.mxu0 %v3392
    %3486 = vmatprep.subr.bf16.mxu0 0
    %3487 = vmatpush1.bf16.msra.mxu0 %v3393
    %3488 = vmatprep.subr.bf16.mxu0 0
    %3489 = vmatpush1.bf16.msra.mxu0 %v3394
    %3490 = vmatprep.subr.bf16.mxu0 0
    %3491 = vmatpush1.bf16.msra.mxu0 %v3395
    %3492 = vmatprep.subr.bf16.mxu0 0
    %3493 = vmatpush1.bf16.msra.mxu0 %v3396
    %3494 = vmatprep.subr.bf16.mxu0 0
    %3495 = vmatpush1.bf16.msra.mxu0 %v3397
    %3496 = vmatprep.subr.bf16.mxu0 0
    %3497 = vmatpush1.bf16.msra.mxu0 %v3398
    %3498 = vmatprep.subr.bf16.mxu0 0
    %3499 = vmatpush1.bf16.msra.mxu0 %v3399
    %3500 = vmatprep.subr.bf16.mxu0 0
    %3501 = vmatpush1.bf16.msra.mxu0 %v3400
    %3502 = vmatprep.subr.bf16.mxu0 0
    %3503 = vmatpush1.bf16.msra.mxu0 %v3401
    %3504 = vmatprep.subr.bf16.mxu0 0
    %3505 = vmatpush1.bf16.msra.mxu0 %v3402
    %3506 = vmatprep.subr.bf16.mxu0 0
    %3507 = vmatpush1.bf16.msra.mxu0 %v3403
    %3508 = vmatprep.mubr.bf16.mxu0 %v2829
    %3509 = vmatmul.mubr.bf16.gmra.mrb[0].mxu0 %v2828
    %v3510 = vpop.f32.mrb[0].mxu0
    %v3511 = vadd.f32 %v3471, %v3510
    %v3512 = vpop.f32.mrb[0].mxu0
    %v3513 = vpop.f32.mrb[0].mxu0
    %v3514 = vpop.f32.mrb[0].mxu0
    %3515 = vdwg.mxu0
    %v3516 = vmax.f32 %v3511, 0.0
    %v3517 = vand.u32 2147483647, %v3511
    %v3518 = vsub.f32 0.0, %v3517
    %v3519 = vmul.f32 %v3518, 1.442695
    %v3520 = vpow.pop %v3519
    %v3521 = vadd.f32 %v3520, 1.0
    %v3522 = vlog2.pop %v3521
    %v3523 = vmul.f32 %v3522, 0.6931472
    %v3524 = vadd.f32 %v3516, %v3523
    %3525 = vst [vmem:[%s17] sm:$0xff] %v3168
    %3526 = vst [vmem:[%s18] sm:$0xff] %v3524
    %v3527 = vld [vmem:[%s1] sm:$0xff]
    %v3528 = vmul.f32 %v3524, 0.5
    %v3529 = vmul.f32 %v3528, 1.442695
    %v3530 = vpow.pop %v3529
    %v3531 = vmul.f32 %v3527, %v3530
    %v3532 = vadd.f32 %v3531, %v3168
    %v3533 = vpack.c.bf16 %v3532, %v3532
    %v3534 = vld [vmem:[#allocation9] sm:$0xff]
    %v3535 = vld [vmem:[#allocation9 + $0x8] sm:$0xff]
    %v3536 = vld [vmem:[#allocation9 + $0x10] sm:$0xff]
    %v3537 = vld [vmem:[#allocation9 + $0x18] sm:$0xff]
    %v3538 = vld [vmem:[#allocation9 + $0x20] sm:$0xff]
    %v3539 = vld [vmem:[#allocation9 + $0x28] sm:$0xff]
    %v3540 = vld [vmem:[#allocation9 + $0x30] sm:$0xff]
    %v3541 = vld [vmem:[#allocation9 + $0x38] sm:$0xff]
    %v3542 = vld [vmem:[#allocation9 + $0x40] sm:$0xff]
    %v3543 = vld [vmem:[#allocation9 + $0x48] sm:$0xff]
    %v3544 = vld [vmem:[#allocation9 + $0x50] sm:$0xff]
    %v3545 = vld [vmem:[#allocation9 + $0x58] sm:$0xff]
    %v3546 = vld [vmem:[#allocation9 + $0x60] sm:$0xff]
    %v3547 = vld [vmem:[#allocation9 + $0x68] sm:$0xff]
    %v3548 = vld [vmem:[#allocation9 + $0x70] sm:$0xff]
    %v3549 = vld [vmem:[#allocation9 + $0x78] sm:$0xff]
    %v3550 = vld [vmem:[#allocation9 + $0x80] sm:$0xff]
    %v3551 = vld [vmem:[#allocation9 + $0x88] sm:$0xff]
    %v3552 = vld [vmem:[#allocation9 + $0x90] sm:$0xff]
    %v3553 = vld [vmem:[#allocation9 + $0x98] sm:$0xff]
    %v3554 = vld [vmem:[#allocation9 + $0xa0] sm:$0xff]
    %v3555 = vld [vmem:[#allocation9 + $0xa8] sm:$0xff]
    %v3556 = vld [vmem:[#allocation9 + $0xb0] sm:$0xff]
    %v3557 = vld [vmem:[#allocation9 + $0xb8] sm:$0xff]
    %v3558 = vld [vmem:[#allocation9 + $0xc0] sm:$0xff]
    %v3559 = vld [vmem:[#allocation9 + $0xc8] sm:$0xff]
    %v3560 = vld [vmem:[#allocation9 + $0xd0] sm:$0xff]
    %v3561 = vld [vmem:[#allocation9 + $0xd8] sm:$0xff]
    %v3562 = vld [vmem:[#allocation9 + $0xe0] sm:$0xff]
    %v3563 = vld [vmem:[#allocation9 + $0xe8] sm:$0xff]
    %v3564 = vld [vmem:[#allocation9 + $0xf0] sm:$0xff]
    %v3565 = vld [vmem:[#allocation9 + $0xf8] sm:$0xff]
    %v3566 = vld [vmem:[%s11] sm:$0xf]
    %v3568 = vlaneseq
    %v3569 = vshrl.u32 %v3568, 7
    %v3570 = vsub.s32 0, %v3569
    %v3571 = vrot.slane %v3566, %v3570
    %v3572 = vlaneseq
    %v3573 = vshrl.u32 %v3572, 7
    %v3574 = vsub.s32 1, %v3573
    %v3575 = vrot.slane %v3566, %v3574
    %v3576 = vlaneseq
    %v3577 = vshrl.u32 %v3576, 7
    %v3578 = vsub.s32 2, %v3577
    %v3579 = vrot.slane %v3566, %v3578
    %v3580 = vlaneseq
    %v3581 = vshrl.u32 %v3580, 7
    %v3582 = vsub.s32 3, %v3581
    %v3583 = vrot.slane %v3566, %v3582
    %v3620 = vunpack.c.l.b16 %v3534
    %v3621 = vunpack.c.h.b16 %v3534
    %v3622 = vunpack.c.l.b16 %v3535
    %v3623 = vunpack.c.h.b16 %v3535
    %v3624 = vunpack.c.l.b16 %v3536
    %v3625 = vunpack.c.h.b16 %v3536
    %v3626 = vunpack.c.l.b16 %v3537
    %v3627 = vunpack.c.h.b16 %v3537
    %v3628 = vunpack.c.l.b16 %v3538
    %v3629 = vunpack.c.h.b16 %v3538
    %v3630 = vunpack.c.l.b16 %v3539
    %v3631 = vunpack.c.h.b16 %v3539
    %v3632 = vunpack.c.l.b16 %v3540
    %v3633 = vunpack.c.h.b16 %v3540
    %v3634 = vunpack.c.l.b16 %v3541
    %v3635 = vunpack.c.h.b16 %v3541
    %v3636 = vunpack.c.l.b16 %v3542
    %v3637 = vunpack.c.h.b16 %v3542
    %v3638 = vunpack.c.l.b16 %v3543
    %v3639 = vunpack.c.h.b16 %v3543
    %v3640 = vunpack.c.l.b16 %v3544
    %v3641 = vunpack.c.h.b16 %v3544
    %v3642 = vunpack.c.l.b16 %v3545
    %v3643 = vunpack.c.h.b16 %v3545
    %v3644 = vunpack.c.l.b16 %v3546
    %v3645 = vunpack.c.h.b16 %v3546
    %v3646 = vunpack.c.l.b16 %v3547
    %v3647 = vunpack.c.h.b16 %v3547
    %v3648 = vunpack.c.l.b16 %v3548
    %v3649 = vunpack.c.h.b16 %v3548
    %v3650 = vunpack.c.l.b16 %v3549
    %v3651 = vunpack.c.h.b16 %v3549
    %v3652 = vunpack.c.l.b16 %v3550
    %v3653 = vunpack.c.h.b16 %v3550
    %v3654 = vunpack.c.l.b16 %v3551
    %v3655 = vunpack.c.h.b16 %v3551
    %v3656 = vunpack.c.l.b16 %v3552
    %v3657 = vunpack.c.h.b16 %v3552
    %v3658 = vunpack.c.l.b16 %v3553
    %v3659 = vunpack.c.h.b16 %v3553
    %v3660 = vunpack.c.l.b16 %v3554
    %v3661 = vunpack.c.h.b16 %v3554
    %v3662 = vunpack.c.l.b16 %v3555
    %v3663 = vunpack.c.h.b16 %v3555
    %v3664 = vunpack.c.l.b16 %v3556
    %v3665 = vunpack.c.h.b16 %v3556
    %v3666 = vunpack.c.l.b16 %v3557
    %v3667 = vunpack.c.h.b16 %v3557
    %v3668 = vunpack.c.l.b16 %v3558
    %v3669 = vunpack.c.h.b16 %v3558
    %v3670 = vunpack.c.l.b16 %v3559
    %v3671 = vunpack.c.h.b16 %v3559
    %v3672 = vunpack.c.l.b16 %v3560
    %v3673 = vunpack.c.h.b16 %v3560
    %v3674 = vunpack.c.l.b16 %v3561
    %v3675 = vunpack.c.h.b16 %v3561
    %v3676 = vunpack.c.l.b16 %v3562
    %v3677 = vunpack.c.h.b16 %v3562
    %v3678 = vunpack.c.l.b16 %v3563
    %v3679 = vunpack.c.h.b16 %v3563
    %v3680 = vunpack.c.l.b16 %v3564
    %v3681 = vunpack.c.h.b16 %v3564
    %v3682 = vunpack.c.l.b16 %v3565
    %v3683 = vunpack.c.h.b16 %v3565
    %v3684 = vpack.c.b16 %v3624, %v3620
    %v3685 = vpack.c.b16 %v3625, %v3621
    %v3686 = vpack.c.b16 %v3626, %v3622
    %v3687 = vpack.c.b16 %v3627, %v3623
    %v3688 = vpack.c.b16 %v3632, %v3628
    %v3689 = vpack.c.b16 %v3633, %v3629
    %v3690 = vpack.c.b16 %v3634, %v3630
    %v3691 = vpack.c.b16 %v3635, %v3631
    %v3692 = vpack.c.b16 %v3640, %v3636
    %v3693 = vpack.c.b16 %v3641, %v3637
    %v3694 = vpack.c.b16 %v3642, %v3638
    %v3695 = vpack.c.b16 %v3643, %v3639
    %v3696 = vpack.c.b16 %v3648, %v3644
    %v3697 = vpack.c.b16 %v3649, %v3645
    %v3698 = vpack.c.b16 %v3650, %v3646
    %v3699 = vpack.c.b16 %v3651, %v3647
    %v3700 = vpack.c.b16 %v3656, %v3652
    %v3701 = vpack.c.b16 %v3657, %v3653
    %v3702 = vpack.c.b16 %v3658, %v3654
    %v3703 = vpack.c.b16 %v3659, %v3655
    %v3704 = vpack.c.b16 %v3664, %v3660
    %v3705 = vpack.c.b16 %v3665, %v3661
    %v3706 = vpack.c.b16 %v3666, %v3662
    %v3707 = vpack.c.b16 %v3667, %v3663
    %v3708 = vpack.c.b16 %v3672, %v3668
    %v3709 = vpack.c.b16 %v3673, %v3669
    %v3710 = vpack.c.b16 %v3674, %v3670
    %v3711 = vpack.c.b16 %v3675, %v3671
    %v3712 = vpack.c.b16 %v3680, %v3676
    %v3713 = vpack.c.b16 %v3681, %v3677
    %v3714 = vpack.c.b16 %v3682, %v3678
    %v3715 = vpack.c.b16 %v3683, %v3679
    %3748 = vmatprep.subr.bf16.mxu0 %v3685
    %3749 = vmatpush1.bf16.msra.mxu0 %v3684
    %3750 = vmatprep.subr.bf16.mxu0 %v3689
    %3751 = vmatpush1.bf16.msra.mxu0 %v3688
    %3752 = vmatprep.subr.bf16.mxu0 %v3693
    %3753 = vmatpush1.bf16.msra.mxu0 %v3692
    %3754 = vmatprep.subr.bf16.mxu0 %v3697
    %3755 = vmatpush1.bf16.msra.mxu0 %v3696
    %3756 = vmatprep.subr.bf16.mxu0 %v3701
    %3757 = vmatpush1.bf16.msra.mxu0 %v3700
    %3758 = vmatprep.subr.bf16.mxu0 %v3705
    %3759 = vmatpush1.bf16.msra.mxu0 %v3704
    %3760 = vmatprep.subr.bf16.mxu0 %v3709
    %3761 = vmatpush1.bf16.msra.mxu0 %v3708
    %3762 = vmatprep.subr.bf16.mxu0 %v3713
    %3763 = vmatpush1.bf16.msra.mxu0 %v3712
    %3764 = vmatprep.subr.bf16.mxu0 0
    %3765 = vmatpush1.bf16.msra.mxu0 0
    %3766 = vmatprep.subr.bf16.mxu0 0
    %3767 = vmatpush1.bf16.msra.mxu0 0
    %3768 = vmatprep.subr.bf16.mxu0 0
    %3769 = vmatpush1.bf16.msra.mxu0 0
    %3770 = vmatprep.subr.bf16.mxu0 0
    %3771 = vmatpush1.bf16.msra.mxu0 0
    %3772 = vmatprep.subr.bf16.mxu0 0
    %3773 = vmatpush1.bf16.msra.mxu0 0
    %3774 = vmatprep.subr.bf16.mxu0 0
    %3775 = vmatpush1.bf16.msra.mxu0 0
    %3776 = vmatprep.subr.bf16.mxu0 0
    %3777 = vmatpush1.bf16.msra.mxu0 0
    %3778 = vmatprep.subr.bf16.mxu0 0
    %3779 = vmatpush1.bf16.msra.mxu0 0
    %3780 = vmatprep.mubr.bf16.mxu0 0
    %3781 = vmatmul.mubr.bf16.gmra.mrb[0].mxu0 %v3533
    %v3782 = vpop.f32.mrb[0].mxu0
    %v3783 = vadd.f32 %v3571, %v3782
    %v3784 = vpop.f32.mrb[0].mxu0
    %v3785 = vadd.f32 %v3575, %v3784
    %v3786 = vpop.f32.mrb[0].mxu0
    %v3787 = vpop.f32.mrb[0].mxu0
    %3788 = vdwg.mxu0
    %3789 = vmatprep.subr.bf16.mxu0 %v3687
    %3790 = vmatpush1.bf16.msra.mxu0 %v3686
    %3791 = vmatprep.subr.bf16.mxu0 %v3691
    %3792 = vmatpush1.bf16.msra.mxu0 %v3690
    %3793 = vmatprep.subr.bf16.mxu0 %v3695
    %3794 = vmatpush1.bf16.msra.mxu0 %v3694
    %3795 = vmatprep.subr.bf16.mxu0 %v3699
    %3796 = vmatpush1.bf16.msra.mxu0 %v3698
    %3797 = vmatprep.subr.bf16.mxu0 %v3703
    %3798 = vmatpush1.bf16.msra.mxu0 %v3702
    %3799 = vmatprep.subr.bf16.mxu0 %v3707
    %3800 = vmatpush1.bf16.msra.mxu0 %v3706
    %3801 = vmatprep.subr.bf16.mxu0 %v3711
    %3802 = vmatpush1.bf16.msra.mxu0 %v3710
    %3803 = vmatprep.subr.bf16.mxu0 %v3715
    %3804 = vmatpush1.bf16.msra.mxu0 %v3714
    %3805 = vmatprep.subr.bf16.mxu0 0
    %3806 = vmatpush1.bf16.msra.mxu0 0
    %3807 = vmatprep.subr.bf16.mxu0 0
    %3808 = vmatpush1.bf16.msra.mxu0 0
    %3809 = vmatprep.subr.bf16.mxu0 0
    %3810 = vmatpush1.bf16.msra.mxu0 0
    %3811 = vmatprep.subr.bf16.mxu0 0
    %3812 = vmatpush1.bf16.msra.mxu0 0
    %3813 = vmatprep.subr.bf16.mxu0 0
    %3814 = vmatpush1.bf16.msra.mxu0 0
    %3815 = vmatprep.subr.bf16.mxu0 0
    %3816 = vmatpush1.bf16.msra.mxu0 0
    %3817 = vmatprep.subr.bf16.mxu0 0
    %3818 = vmatpush1.bf16.msra.mxu0 0
    %3819 = vmatprep.subr.bf16.mxu0 0
    %3820 = vmatpush1.bf16.msra.mxu0 0
    %3821 = vmatprep.mubr.bf16.mxu0 0
    %3822 = vmatmul.mubr.bf16.gmra.mrb[0].mxu0 %v3533
    %v3823 = vpop.f32.mrb[0].mxu0
    %v3824 = vadd.f32 %v3579, %v3823
    %v3825 = vpop.f32.mrb[0].mxu0
    %v3826 = vadd.f32 %v3583, %v3825
    %v3827 = vpop.f32.mrb[0].mxu0
    %v3828 = vpop.f32.mrb[0].mxu0
    %3829 = vdwg.mxu0
    %v3830 = vmax.f32 %v3783, 0.0
    %v3831 = vmax.f32 %v3785, 0.0
    %v3832 = vmax.f32 %v3824, 0.0
    %v3833 = vmax.f32 %v3826, 0.0
    %v3834 = vpack.c.bf16 %v3830, %v3830
    %v3835 = vpack.c.bf16 %v3831, %v3831
    %v3836 = vpack.c.bf16 %v3832, %v3832
    %v3837 = vpack.c.bf16 %v3833, %v3833
    %v3838 = vld [vmem:[#allocation10] sm:$0xff]
    %v3839 = vld [vmem:[#allocation10 + $0x8] sm:$0xff]
    %v3840 = vld [vmem:[#allocation10 + $0x10] sm:$0xff]
    %v3841 = vld [vmem:[#allocation10 + $0x18] sm:$0xff]
    %v3842 = vld [vmem:[#allocation10 + $0x20] sm:$0xff]
    %v3843 = vld [vmem:[#allocation10 + $0x28] sm:$0xff]
    %v3844 = vld [vmem:[#allocation10 + $0x30] sm:$0xff]
    %v3845 = vld [vmem:[#allocation10 + $0x38] sm:$0xff]
    %v3846 = vld [vmem:[#allocation10 + $0x40] sm:$0xff]
    %v3847 = vld [vmem:[#allocation10 + $0x48] sm:$0xff]
    %v3848 = vld [vmem:[#allocation10 + $0x50] sm:$0xff]
    %v3849 = vld [vmem:[#allocation10 + $0x58] sm:$0xff]
    %v3850 = vld [vmem:[#allocation10 + $0x60] sm:$0xff]
    %v3851 = vld [vmem:[#allocation10 + $0x68] sm:$0xff]
    %v3852 = vld [vmem:[#allocation10 + $0x70] sm:$0xff]
    %v3853 = vld [vmem:[#allocation10 + $0x78] sm:$0xff]
    %v3854 = vld [vmem:[#allocation10 + $0x80] sm:$0xff]
    %v3855 = vld [vmem:[#allocation10 + $0x88] sm:$0xff]
    %v3856 = vld [vmem:[#allocation10 + $0x90] sm:$0xff]
    %v3857 = vld [vmem:[#allocation10 + $0x98] sm:$0xff]
    %v3858 = vld [vmem:[#allocation10 + $0xa0] sm:$0xff]
    %v3859 = vld [vmem:[#allocation10 + $0xa8] sm:$0xff]
    %v3860 = vld [vmem:[#allocation10 + $0xb0] sm:$0xff]
    %v3861 = vld [vmem:[#allocation10 + $0xb8] sm:$0xff]
    %v3862 = vld [vmem:[#allocation10 + $0xc0] sm:$0xff]
    %v3863 = vld [vmem:[#allocation10 + $0xc8] sm:$0xff]
    %v3864 = vld [vmem:[#allocation10 + $0xd0] sm:$0xff]
    %v3865 = vld [vmem:[#allocation10 + $0xd8] sm:$0xff]
    %v3866 = vld [vmem:[#allocation10 + $0xe0] sm:$0xff]
    %v3867 = vld [vmem:[#allocation10 + $0xe8] sm:$0xff]
    %v3868 = vld [vmem:[#allocation10 + $0xf0] sm:$0xff]
    %v3869 = vld [vmem:[#allocation10 + $0xf8] sm:$0xff]
    %v3870 = vld [vmem:[#allocation10 + $0x100] sm:$0xff]
    %v3871 = vld [vmem:[#allocation10 + $0x108] sm:$0xff]
    %v3872 = vld [vmem:[#allocation10 + $0x110] sm:$0xff]
    %v3873 = vld [vmem:[#allocation10 + $0x118] sm:$0xff]
    %v3874 = vld [vmem:[#allocation10 + $0x120] sm:$0xff]
    %v3875 = vld [vmem:[#allocation10 + $0x128] sm:$0xff]
    %v3876 = vld [vmem:[#allocation10 + $0x130] sm:$0xff]
    %v3877 = vld [vmem:[#allocation10 + $0x138] sm:$0xff]
    %v3878 = vld [vmem:[#allocation10 + $0x140] sm:$0xff]
    %v3879 = vld [vmem:[#allocation10 + $0x148] sm:$0xff]
    %v3880 = vld [vmem:[#allocation10 + $0x150] sm:$0xff]
    %v3881 = vld [vmem:[#allocation10 + $0x158] sm:$0xff]
    %v3882 = vld [vmem:[#allocation10 + $0x160] sm:$0xff]
    %v3883 = vld [vmem:[#allocation10 + $0x168] sm:$0xff]
    %v3884 = vld [vmem:[#allocation10 + $0x170] sm:$0xff]
    %v3885 = vld [vmem:[#allocation10 + $0x178] sm:$0xff]
    %v3886 = vld [vmem:[#allocation10 + $0x180] sm:$0xff]
    %v3887 = vld [vmem:[#allocation10 + $0x188] sm:$0xff]
    %v3888 = vld [vmem:[#allocation10 + $0x190] sm:$0xff]
    %v3889 = vld [vmem:[#allocation10 + $0x198] sm:$0xff]
    %v3890 = vld [vmem:[#allocation10 + $0x1a0] sm:$0xff]
    %v3891 = vld [vmem:[#allocation10 + $0x1a8] sm:$0xff]
    %v3892 = vld [vmem:[#allocation10 + $0x1b0] sm:$0xff]
    %v3893 = vld [vmem:[#allocation10 + $0x1b8] sm:$0xff]
    %v3894 = vld [vmem:[#allocation10 + $0x1c0] sm:$0xff]
    %v3895 = vld [vmem:[#allocation10 + $0x1c8] sm:$0xff]
    %v3896 = vld [vmem:[#allocation10 + $0x1d0] sm:$0xff]
    %v3897 = vld [vmem:[#allocation10 + $0x1d8] sm:$0xff]
    %v3898 = vld [vmem:[#allocation10 + $0x1e0] sm:$0xff]
    %v3899 = vld [vmem:[#allocation10 + $0x1e8] sm:$0xff]
    %v3900 = vld [vmem:[#allocation10 + $0x1f0] sm:$0xff]
    %v3901 = vld [vmem:[#allocation10 + $0x1f8] sm:$0xff]
    %v3902 = vld [vmem:[#allocation10 + $0x200] sm:$0xff]
    %v3903 = vld [vmem:[#allocation10 + $0x208] sm:$0xff]
    %v3904 = vld [vmem:[#allocation10 + $0x210] sm:$0xff]
    %v3905 = vld [vmem:[#allocation10 + $0x218] sm:$0xff]
    %v3906 = vld [vmem:[#allocation10 + $0x220] sm:$0xff]
    %v3907 = vld [vmem:[#allocation10 + $0x228] sm:$0xff]
    %v3908 = vld [vmem:[#allocation10 + $0x230] sm:$0xff]
    %v3909 = vld [vmem:[#allocation10 + $0x238] sm:$0xff]
    %v3910 = vld [vmem:[#allocation10 + $0x240] sm:$0xff]
    %v3911 = vld [vmem:[#allocation10 + $0x248] sm:$0xff]
    %v3912 = vld [vmem:[#allocation10 + $0x250] sm:$0xff]
    %v3913 = vld [vmem:[#allocation10 + $0x258] sm:$0xff]
    %v3914 = vld [vmem:[#allocation10 + $0x260] sm:$0xff]
    %v3915 = vld [vmem:[#allocation10 + $0x268] sm:$0xff]
    %v3916 = vld [vmem:[#allocation10 + $0x270] sm:$0xff]
    %v3917 = vld [vmem:[#allocation10 + $0x278] sm:$0xff]
    %v3918 = vld [vmem:[#allocation10 + $0x280] sm:$0xff]
    %v3919 = vld [vmem:[#allocation10 + $0x288] sm:$0xff]
    %v3920 = vld [vmem:[#allocation10 + $0x290] sm:$0xff]
    %v3921 = vld [vmem:[#allocation10 + $0x298] sm:$0xff]
    %v3922 = vld [vmem:[#allocation10 + $0x2a0] sm:$0xff]
    %v3923 = vld [vmem:[#allocation10 + $0x2a8] sm:$0xff]
    %v3924 = vld [vmem:[#allocation10 + $0x2b0] sm:$0xff]
    %v3925 = vld [vmem:[#allocation10 + $0x2b8] sm:$0xff]
    %v3926 = vld [vmem:[#allocation10 + $0x2c0] sm:$0xff]
    %v3927 = vld [vmem:[#allocation10 + $0x2c8] sm:$0xff]
    %v3928 = vld [vmem:[#allocation10 + $0x2d0] sm:$0xff]
    %v3929 = vld [vmem:[#allocation10 + $0x2d8] sm:$0xff]
    %v3930 = vld [vmem:[#allocation10 + $0x2e0] sm:$0xff]
    %v3931 = vld [vmem:[#allocation10 + $0x2e8] sm:$0xff]
    %v3932 = vld [vmem:[#allocation10 + $0x2f0] sm:$0xff]
    %v3933 = vld [vmem:[#allocation10 + $0x2f8] sm:$0xff]
    %v3934 = vld [vmem:[#allocation10 + $0x300] sm:$0xff]
    %v3935 = vld [vmem:[#allocation10 + $0x308] sm:$0xff]
    %v3936 = vld [vmem:[#allocation10 + $0x310] sm:$0xff]
    %v3937 = vld [vmem:[#allocation10 + $0x318] sm:$0xff]
    %v3938 = vld [vmem:[#allocation10 + $0x320] sm:$0xff]
    %v3939 = vld [vmem:[#allocation10 + $0x328] sm:$0xff]
    %v3940 = vld [vmem:[#allocation10 + $0x330] sm:$0xff]
    %v3941 = vld [vmem:[#allocation10 + $0x338] sm:$0xff]
    %v3942 = vld [vmem:[#allocation10 + $0x340] sm:$0xff]
    %v3943 = vld [vmem:[#allocation10 + $0x348] sm:$0xff]
    %v3944 = vld [vmem:[#allocation10 + $0x350] sm:$0xff]
    %v3945 = vld [vmem:[#allocation10 + $0x358] sm:$0xff]
    %v3946 = vld [vmem:[#allocation10 + $0x360] sm:$0xff]
    %v3947 = vld [vmem:[#allocation10 + $0x368] sm:$0xff]
    %v3948 = vld [vmem:[#allocation10 + $0x370] sm:$0xff]
    %v3949 = vld [vmem:[#allocation10 + $0x378] sm:$0xff]
    %v3950 = vld [vmem:[#allocation10 + $0x380] sm:$0xff]
    %v3951 = vld [vmem:[#allocation10 + $0x388] sm:$0xff]
    %v3952 = vld [vmem:[#allocation10 + $0x390] sm:$0xff]
    %v3953 = vld [vmem:[#allocation10 + $0x398] sm:$0xff]
    %v3954 = vld [vmem:[#allocation10 + $0x3a0] sm:$0xff]
    %v3955 = vld [vmem:[#allocation10 + $0x3a8] sm:$0xff]
    %v3956 = vld [vmem:[#allocation10 + $0x3b0] sm:$0xff]
    %v3957 = vld [vmem:[#allocation10 + $0x3b8] sm:$0xff]
    %v3958 = vld [vmem:[#allocation10 + $0x3c0] sm:$0xff]
    %v3959 = vld [vmem:[#allocation10 + $0x3c8] sm:$0xff]
    %v3960 = vld [vmem:[#allocation10 + $0x3d0] sm:$0xff]
    %v3961 = vld [vmem:[#allocation10 + $0x3d8] sm:$0xff]
    %v3962 = vld [vmem:[#allocation10 + $0x3e0] sm:$0xff]
    %v3963 = vld [vmem:[#allocation10 + $0x3e8] sm:$0xff]
    %v3964 = vld [vmem:[#allocation10 + $0x3f0] sm:$0xff]
    %v3965 = vld [vmem:[#allocation10 + $0x3f8] sm:$0xff]
    %v3966 = vld [vmem:[%s13] sm:$0xf]
    %v3968 = vlaneseq
    %v3969 = vshrl.u32 %v3968, 7
    %v3970 = vsub.s32 0, %v3969
    %v3971 = vrot.slane %v3966, %v3970
    %v3972 = vlaneseq
    %v3973 = vshrl.u32 %v3972, 7
    %v3974 = vsub.s32 1, %v3973
    %v3975 = vrot.slane %v3966, %v3974
    %v3976 = vlaneseq
    %v3977 = vshrl.u32 %v3976, 7
    %v3978 = vsub.s32 2, %v3977
    %v3979 = vrot.slane %v3966, %v3978
    %v3980 = vlaneseq
    %v3981 = vshrl.u32 %v3980, 7
    %v3982 = vsub.s32 3, %v3981
    %v3983 = vrot.slane %v3966, %v3982
    %v4116 = vunpack.c.l.b16 %v3838
    %v4117 = vunpack.c.h.b16 %v3838
    %v4118 = vunpack.c.l.b16 %v3839
    %v4119 = vunpack.c.h.b16 %v3839
    %v4120 = vunpack.c.l.b16 %v3840
    %v4121 = vunpack.c.h.b16 %v3840
    %v4122 = vunpack.c.l.b16 %v3841
    %v4123 = vunpack.c.h.b16 %v3841
    %v4124 = vunpack.c.l.b16 %v3842
    %v4125 = vunpack.c.h.b16 %v3842
    %v4126 = vunpack.c.l.b16 %v3843
    %v4127 = vunpack.c.h.b16 %v3843
    %v4128 = vunpack.c.l.b16 %v3844
    %v4129 = vunpack.c.h.b16 %v3844
    %v4130 = vunpack.c.l.b16 %v3845
    %v4131 = vunpack.c.h.b16 %v3845
    %v4132 = vunpack.c.l.b16 %v3846
    %v4133 = vunpack.c.h.b16 %v3846
    %v4134 = vunpack.c.l.b16 %v3847
    %v4135 = vunpack.c.h.b16 %v3847
    %v4136 = vunpack.c.l.b16 %v3848
    %v4137 = vunpack.c.h.b16 %v3848
    %v4138 = vunpack.c.l.b16 %v3849
    %v4139 = vunpack.c.h.b16 %v3849
    %v4140 = vunpack.c.l.b16 %v3850
    %v4141 = vunpack.c.h.b16 %v3850
    %v4142 = vunpack.c.l.b16 %v3851
    %v4143 = vunpack.c.h.b16 %v3851
    %v4144 = vunpack.c.l.b16 %v3852
    %v4145 = vunpack.c.h.b16 %v3852
    %v4146 = vunpack.c.l.b16 %v3853
    %v4147 = vunpack.c.h.b16 %v3853
    %v4148 = vunpack.c.l.b16 %v3854
    %v4149 = vunpack.c.h.b16 %v3854
    %v4150 = vunpack.c.l.b16 %v3855
    %v4151 = vunpack.c.h.b16 %v3855
    %v4152 = vunpack.c.l.b16 %v3856
    %v4153 = vunpack.c.h.b16 %v3856
    %v4154 = vunpack.c.l.b16 %v3857
    %v4155 = vunpack.c.h.b16 %v3857
    %v4156 = vunpack.c.l.b16 %v3858
    %v4157 = vunpack.c.h.b16 %v3858
    %v4158 = vunpack.c.l.b16 %v3859
    %v4159 = vunpack.c.h.b16 %v3859
    %v4160 = vunpack.c.l.b16 %v3860
    %v4161 = vunpack.c.h.b16 %v3860
    %v4162 = vunpack.c.l.b16 %v3861
    %v4163 = vunpack.c.h.b16 %v3861
    %v4164 = vunpack.c.l.b16 %v3862
    %v4165 = vunpack.c.h.b16 %v3862
    %v4166 = vunpack.c.l.b16 %v3863
    %v4167 = vunpack.c.h.b16 %v3863
    %v4168 = vunpack.c.l.b16 %v3864
    %v4169 = vunpack.c.h.b16 %v3864
    %v4170 = vunpack.c.l.b16 %v3865
    %v4171 = vunpack.c.h.b16 %v3865
    %v4172 = vunpack.c.l.b16 %v3866
    %v4173 = vunpack.c.h.b16 %v3866
    %v4174 = vunpack.c.l.b16 %v3867
    %v4175 = vunpack.c.h.b16 %v3867
    %v4176 = vunpack.c.l.b16 %v3868
    %v4177 = vunpack.c.h.b16 %v3868
    %v4178 = vunpack.c.l.b16 %v3869
    %v4179 = vunpack.c.h.b16 %v3869
    %v4180 = vunpack.c.l.b16 %v3870
    %v4181 = vunpack.c.h.b16 %v3870
    %v4182 = vunpack.c.l.b16 %v3871
    %v4183 = vunpack.c.h.b16 %v3871
    %v4184 = vunpack.c.l.b16 %v3872
    %v4185 = vunpack.c.h.b16 %v3872
    %v4186 = vunpack.c.l.b16 %v3873
    %v4187 = vunpack.c.h.b16 %v3873
    %v4188 = vunpack.c.l.b16 %v3874
    %v4189 = vunpack.c.h.b16 %v3874
    %v4190 = vunpack.c.l.b16 %v3875
    %v4191 = vunpack.c.h.b16 %v3875
    %v4192 = vunpack.c.l.b16 %v3876
    %v4193 = vunpack.c.h.b16 %v3876
    %v4194 = vunpack.c.l.b16 %v3877
    %v4195 = vunpack.c.h.b16 %v3877
    %v4196 = vunpack.c.l.b16 %v3878
    %v4197 = vunpack.c.h.b16 %v3878
    %v4198 = vunpack.c.l.b16 %v3879
    %v4199 = vunpack.c.h.b16 %v3879
    %v4200 = vunpack.c.l.b16 %v3880
    %v4201 = vunpack.c.h.b16 %v3880
    %v4202 = vunpack.c.l.b16 %v3881
    %v4203 = vunpack.c.h.b16 %v3881
    %v4204 = vunpack.c.l.b16 %v3882
    %v4205 = vunpack.c.h.b16 %v3882
    %v4206 = vunpack.c.l.b16 %v3883
    %v4207 = vunpack.c.h.b16 %v3883
    %v4208 = vunpack.c.l.b16 %v3884
    %v4209 = vunpack.c.h.b16 %v3884
    %v4210 = vunpack.c.l.b16 %v3885
    %v4211 = vunpack.c.h.b16 %v3885
    %v4212 = vunpack.c.l.b16 %v3886
    %v4213 = vunpack.c.h.b16 %v3886
    %v4214 = vunpack.c.l.b16 %v3887
    %v4215 = vunpack.c.h.b16 %v3887
    %v4216 = vunpack.c.l.b16 %v3888
    %v4217 = vunpack.c.h.b16 %v3888
    %v4218 = vunpack.c.l.b16 %v3889
    %v4219 = vunpack.c.h.b16 %v3889
    %v4220 = vunpack.c.l.b16 %v3890
    %v4221 = vunpack.c.h.b16 %v3890
    %v4222 = vunpack.c.l.b16 %v3891
    %v4223 = vunpack.c.h.b16 %v3891
    %v4224 = vunpack.c.l.b16 %v3892
    %v4225 = vunpack.c.h.b16 %v3892
    %v4226 = vunpack.c.l.b16 %v3893
    %v4227 = vunpack.c.h.b16 %v3893
    %v4228 = vunpack.c.l.b16 %v3894
    %v4229 = vunpack.c.h.b16 %v3894
    %v4230 = vunpack.c.l.b16 %v3895
    %v4231 = vunpack.c.h.b16 %v3895
    %v4232 = vunpack.c.l.b16 %v3896
    %v4233 = vunpack.c.h.b16 %v3896
    %v4234 = vunpack.c.l.b16 %v3897
    %v4235 = vunpack.c.h.b16 %v3897
    %v4236 = vunpack.c.l.b16 %v3898
    %v4237 = vunpack.c.h.b16 %v3898
    %v4238 = vunpack.c.l.b16 %v3899
    %v4239 = vunpack.c.h.b16 %v3899
    %v4240 = vunpack.c.l.b16 %v3900
    %v4241 = vunpack.c.h.b16 %v3900
    %v4242 = vunpack.c.l.b16 %v3901
    %v4243 = vunpack.c.h.b16 %v3901
    %v4244 = vunpack.c.l.b16 %v3902
    %v4245 = vunpack.c.h.b16 %v3902
    %v4246 = vunpack.c.l.b16 %v3903
    %v4247 = vunpack.c.h.b16 %v3903
    %v4248 = vunpack.c.l.b16 %v3904
    %v4249 = vunpack.c.h.b16 %v3904
    %v4250 = vunpack.c.l.b16 %v3905
    %v4251 = vunpack.c.h.b16 %v3905
    %v4252 = vunpack.c.l.b16 %v3906
    %v4253 = vunpack.c.h.b16 %v3906
    %v4254 = vunpack.c.l.b16 %v3907
    %v4255 = vunpack.c.h.b16 %v3907
    %v4256 = vunpack.c.l.b16 %v3908
    %v4257 = vunpack.c.h.b16 %v3908
    %v4258 = vunpack.c.l.b16 %v3909
    %v4259 = vunpack.c.h.b16 %v3909
    %v4260 = vunpack.c.l.b16 %v3910
    %v4261 = vunpack.c.h.b16 %v3910
    %v4262 = vunpack.c.l.b16 %v3911
    %v4263 = vunpack.c.h.b16 %v3911
    %v4264 = vunpack.c.l.b16 %v3912
    %v4265 = vunpack.c.h.b16 %v3912
    %v4266 = vunpack.c.l.b16 %v3913
    %v4267 = vunpack.c.h.b16 %v3913
    %v4268 = vunpack.c.l.b16 %v3914
    %v4269 = vunpack.c.h.b16 %v3914
    %v4270 = vunpack.c.l.b16 %v3915
    %v4271 = vunpack.c.h.b16 %v3915
    %v4272 = vunpack.c.l.b16 %v3916
    %v4273 = vunpack.c.h.b16 %v3916
    %v4274 = vunpack.c.l.b16 %v3917
    %v4275 = vunpack.c.h.b16 %v3917
    %v4276 = vunpack.c.l.b16 %v3918
    %v4277 = vunpack.c.h.b16 %v3918
    %v4278 = vunpack.c.l.b16 %v3919
    %v4279 = vunpack.c.h.b16 %v3919
    %v4280 = vunpack.c.l.b16 %v3920
    %v4281 = vunpack.c.h.b16 %v3920
    %v4282 = vunpack.c.l.b16 %v3921
    %v4283 = vunpack.c.h.b16 %v3921
    %v4284 = vunpack.c.l.b16 %v3922
    %v4285 = vunpack.c.h.b16 %v3922
    %v4286 = vunpack.c.l.b16 %v3923
    %v4287 = vunpack.c.h.b16 %v3923
    %v4288 = vunpack.c.l.b16 %v3924
    %v4289 = vunpack.c.h.b16 %v3924
    %v4290 = vunpack.c.l.b16 %v3925
    %v4291 = vunpack.c.h.b16 %v3925
    %v4292 = vunpack.c.l.b16 %v3926
    %v4293 = vunpack.c.h.b16 %v3926
    %v4294 = vunpack.c.l.b16 %v3927
    %v4295 = vunpack.c.h.b16 %v3927
    %v4296 = vunpack.c.l.b16 %v3928
    %v4297 = vunpack.c.h.b16 %v3928
    %v4298 = vunpack.c.l.b16 %v3929
    %v4299 = vunpack.c.h.b16 %v3929
    %v4300 = vunpack.c.l.b16 %v3930
    %v4301 = vunpack.c.h.b16 %v3930
    %v4302 = vunpack.c.l.b16 %v3931
    %v4303 = vunpack.c.h.b16 %v3931
    %v4304 = vunpack.c.l.b16 %v3932
    %v4305 = vunpack.c.h.b16 %v3932
    %v4306 = vunpack.c.l.b16 %v3933
    %v4307 = vunpack.c.h.b16 %v3933
    %v4308 = vunpack.c.l.b16 %v3934
    %v4309 = vunpack.c.h.b16 %v3934
    %v4310 = vunpack.c.l.b16 %v3935
    %v4311 = vunpack.c.h.b16 %v3935
    %v4312 = vunpack.c.l.b16 %v3936
    %v4313 = vunpack.c.h.b16 %v3936
    %v4314 = vunpack.c.l.b16 %v3937
    %v4315 = vunpack.c.h.b16 %v3937
    %v4316 = vunpack.c.l.b16 %v3938
    %v4317 = vunpack.c.h.b16 %v3938
    %v4318 = vunpack.c.l.b16 %v3939
    %v4319 = vunpack.c.h.b16 %v3939
    %v4320 = vunpack.c.l.b16 %v3940
    %v4321 = vunpack.c.h.b16 %v3940
    %v4322 = vunpack.c.l.b16 %v3941
    %v4323 = vunpack.c.h.b16 %v3941
    %v4324 = vunpack.c.l.b16 %v3942
    %v4325 = vunpack.c.h.b16 %v3942
    %v4326 = vunpack.c.l.b16 %v3943
    %v4327 = vunpack.c.h.b16 %v3943
    %v4328 = vunpack.c.l.b16 %v3944
    %v4329 = vunpack.c.h.b16 %v3944
    %v4330 = vunpack.c.l.b16 %v3945
    %v4331 = vunpack.c.h.b16 %v3945
    %v4332 = vunpack.c.l.b16 %v3946
    %v4333 = vunpack.c.h.b16 %v3946
    %v4334 = vunpack.c.l.b16 %v3947
    %v4335 = vunpack.c.h.b16 %v3947
    %v4336 = vunpack.c.l.b16 %v3948
    %v4337 = vunpack.c.h.b16 %v3948
    %v4338 = vunpack.c.l.b16 %v3949
    %v4339 = vunpack.c.h.b16 %v3949
    %v4340 = vunpack.c.l.b16 %v3950
    %v4341 = vunpack.c.h.b16 %v3950
    %v4342 = vunpack.c.l.b16 %v3951
    %v4343 = vunpack.c.h.b16 %v3951
    %v4344 = vunpack.c.l.b16 %v3952
    %v4345 = vunpack.c.h.b16 %v3952
    %v4346 = vunpack.c.l.b16 %v3953
    %v4347 = vunpack.c.h.b16 %v3953
    %v4348 = vunpack.c.l.b16 %v3954
    %v4349 = vunpack.c.h.b16 %v3954
    %v4350 = vunpack.c.l.b16 %v3955
    %v4351 = vunpack.c.h.b16 %v3955
    %v4352 = vunpack.c.l.b16 %v3956
    %v4353 = vunpack.c.h.b16 %v3956
    %v4354 = vunpack.c.l.b16 %v3957
    %v4355 = vunpack.c.h.b16 %v3957
    %v4356 = vunpack.c.l.b16 %v3958
    %v4357 = vunpack.c.h.b16 %v3958
    %v4358 = vunpack.c.l.b16 %v3959
    %v4359 = vunpack.c.h.b16 %v3959
    %v4360 = vunpack.c.l.b16 %v3960
    %v4361 = vunpack.c.h.b16 %v3960
    %v4362 = vunpack.c.l.b16 %v3961
    %v4363 = vunpack.c.h.b16 %v3961
    %v4364 = vunpack.c.l.b16 %v3962
    %v4365 = vunpack.c.h.b16 %v3962
    %v4366 = vunpack.c.l.b16 %v3963
    %v4367 = vunpack.c.h.b16 %v3963
    %v4368 = vunpack.c.l.b16 %v3964
    %v4369 = vunpack.c.h.b16 %v3964
    %v4370 = vunpack.c.l.b16 %v3965
    %v4371 = vunpack.c.h.b16 %v3965
    %v4372 = vpack.c.b16 %v4120, %v4116
    %v4373 = vpack.c.b16 %v4121, %v4117
    %v4374 = vpack.c.b16 %v4122, %v4118
    %v4375 = vpack.c.b16 %v4123, %v4119
    %v4376 = vpack.c.b16 %v4128, %v4124
    %v4377 = vpack.c.b16 %v4129, %v4125
    %v4378 = vpack.c.b16 %v4130, %v4126
    %v4379 = vpack.c.b16 %v4131, %v4127
    %v4380 = vpack.c.b16 %v4136, %v4132
    %v4381 = vpack.c.b16 %v4137, %v4133
    %v4382 = vpack.c.b16 %v4138, %v4134
    %v4383 = vpack.c.b16 %v4139, %v4135
    %v4384 = vpack.c.b16 %v4144, %v4140
    %v4385 = vpack.c.b16 %v4145, %v4141
    %v4386 = vpack.c.b16 %v4146, %v4142
    %v4387 = vpack.c.b16 %v4147, %v4143
    %v4388 = vpack.c.b16 %v4152, %v4148
    %v4389 = vpack.c.b16 %v4153, %v4149
    %v4390 = vpack.c.b16 %v4154, %v4150
    %v4391 = vpack.c.b16 %v4155, %v4151
    %v4392 = vpack.c.b16 %v4160, %v4156
    %v4393 = vpack.c.b16 %v4161, %v4157
    %v4394 = vpack.c.b16 %v4162, %v4158
    %v4395 = vpack.c.b16 %v4163, %v4159
    %v4396 = vpack.c.b16 %v4168, %v4164
    %v4397 = vpack.c.b16 %v4169, %v4165
    %v4398 = vpack.c.b16 %v4170, %v4166
    %v4399 = vpack.c.b16 %v4171, %v4167
    %v4400 = vpack.c.b16 %v4176, %v4172
    %v4401 = vpack.c.b16 %v4177, %v4173
    %v4402 = vpack.c.b16 %v4178, %v4174
    %v4403 = vpack.c.b16 %v4179, %v4175
    %v4404 = vpack.c.b16 %v4184, %v4180
    %v4405 = vpack.c.b16 %v4185, %v4181
    %v4406 = vpack.c.b16 %v4186, %v4182
    %v4407 = vpack.c.b16 %v4187, %v4183
    %v4408 = vpack.c.b16 %v4192, %v4188
    %v4409 = vpack.c.b16 %v4193, %v4189
    %v4410 = vpack.c.b16 %v4194, %v4190
    %v4411 = vpack.c.b16 %v4195, %v4191
    %v4412 = vpack.c.b16 %v4200, %v4196
    %v4413 = vpack.c.b16 %v4201, %v4197
    %v4414 = vpack.c.b16 %v4202, %v4198
    %v4415 = vpack.c.b16 %v4203, %v4199
    %v4416 = vpack.c.b16 %v4208, %v4204
    %v4417 = vpack.c.b16 %v4209, %v4205
    %v4418 = vpack.c.b16 %v4210, %v4206
    %v4419 = vpack.c.b16 %v4211, %v4207
    %v4420 = vpack.c.b16 %v4216, %v4212
    %v4421 = vpack.c.b16 %v4217, %v4213
    %v4422 = vpack.c.b16 %v4218, %v4214
    %v4423 = vpack.c.b16 %v4219, %v4215
    %v4424 = vpack.c.b16 %v4224, %v4220
    %v4425 = vpack.c.b16 %v4225, %v4221
    %v4426 = vpack.c.b16 %v4226, %v4222
    %v4427 = vpack.c.b16 %v4227, %v4223
    %v4428 = vpack.c.b16 %v4232, %v4228
    %v4429 = vpack.c.b16 %v4233, %v4229
    %v4430 = vpack.c.b16 %v4234, %v4230
    %v4431 = vpack.c.b16 %v4235, %v4231
    %v4432 = vpack.c.b16 %v4240, %v4236
    %v4433 = vpack.c.b16 %v4241, %v4237
    %v4434 = vpack.c.b16 %v4242, %v4238
    %v4435 = vpack.c.b16 %v4243, %v4239
    %v4436 = vpack.c.b16 %v4248, %v4244
    %v4437 = vpack.c.b16 %v4249, %v4245
    %v4438 = vpack.c.b16 %v4250, %v4246
    %v4439 = vpack.c.b16 %v4251, %v4247
    %v4440 = vpack.c.b16 %v4256, %v4252
    %v4441 = vpack.c.b16 %v4257, %v4253
    %v4442 = vpack.c.b16 %v4258, %v4254
    %v4443 = vpack.c.b16 %v4259, %v4255
    %v4444 = vpack.c.b16 %v4264, %v4260
    %v4445 = vpack.c.b16 %v4265, %v4261
    %v4446 = vpack.c.b16 %v4266, %v4262
    %v4447 = vpack.c.b16 %v4267, %v4263
    %v4448 = vpack.c.b16 %v4272, %v4268
    %v4449 = vpack.c.b16 %v4273, %v4269
    %v4450 = vpack.c.b16 %v4274, %v4270
    %v4451 = vpack.c.b16 %v4275, %v4271
    %v4452 = vpack.c.b16 %v4280, %v4276
    %v4453 = vpack.c.b16 %v4281, %v4277
    %v4454 = vpack.c.b16 %v4282, %v4278
    %v4455 = vpack.c.b16 %v4283, %v4279
    %v4456 = vpack.c.b16 %v4288, %v4284
    %v4457 = vpack.c.b16 %v4289, %v4285
    %v4458 = vpack.c.b16 %v4290, %v4286
    %v4459 = vpack.c.b16 %v4291, %v4287
    %v4460 = vpack.c.b16 %v4296, %v4292
    %v4461 = vpack.c.b16 %v4297, %v4293
    %v4462 = vpack.c.b16 %v4298, %v4294
    %v4463 = vpack.c.b16 %v4299, %v4295
    %v4464 = vpack.c.b16 %v4304, %v4300
    %v4465 = vpack.c.b16 %v4305, %v4301
    %v4466 = vpack.c.b16 %v4306, %v4302
    %v4467 = vpack.c.b16 %v4307, %v4303
    %v4468 = vpack.c.b16 %v4312, %v4308
    %v4469 = vpack.c.b16 %v4313, %v4309
    %v4470 = vpack.c.b16 %v4314, %v4310
    %v4471 = vpack.c.b16 %v4315, %v4311
    %v4472 = vpack.c.b16 %v4320, %v4316
    %v4473 = vpack.c.b16 %v4321, %v4317
    %v4474 = vpack.c.b16 %v4322, %v4318
    %v4475 = vpack.c.b16 %v4323, %v4319
    %v4476 = vpack.c.b16 %v4328, %v4324
    %v4477 = vpack.c.b16 %v4329, %v4325
    %v4478 = vpack.c.b16 %v4330, %v4326
    %v4479 = vpack.c.b16 %v4331, %v4327
    %v4480 = vpack.c.b16 %v4336, %v4332
    %v4481 = vpack.c.b16 %v4337, %v4333
    %v4482 = vpack.c.b16 %v4338, %v4334
    %v4483 = vpack.c.b16 %v4339, %v4335
    %v4484 = vpack.c.b16 %v4344, %v4340
    %v4485 = vpack.c.b16 %v4345, %v4341
    %v4486 = vpack.c.b16 %v4346, %v4342
    %v4487 = vpack.c.b16 %v4347, %v4343
    %v4488 = vpack.c.b16 %v4352, %v4348
    %v4489 = vpack.c.b16 %v4353, %v4349
    %v4490 = vpack.c.b16 %v4354, %v4350
    %v4491 = vpack.c.b16 %v4355, %v4351
    %v4492 = vpack.c.b16 %v4360, %v4356
    %v4493 = vpack.c.b16 %v4361, %v4357
    %v4494 = vpack.c.b16 %v4362, %v4358
    %v4495 = vpack.c.b16 %v4363, %v4359
    %v4496 = vpack.c.b16 %v4368, %v4364
    %v4497 = vpack.c.b16 %v4369, %v4365
    %v4498 = vpack.c.b16 %v4370, %v4366
    %v4499 = vpack.c.b16 %v4371, %v4367
    %4628 = vmatprep.subr.bf16.mxu0 %v4373
    %4629 = vmatpush1.bf16.msra.mxu0 %v4372
    %4630 = vmatprep.subr.bf16.mxu0 %v4377
    %4631 = vmatpush1.bf16.msra.mxu0 %v4376
    %4632 = vmatprep.subr.bf16.mxu0 %v4381
    %4633 = vmatpush1.bf16.msra.mxu0 %v4380
    %4634 = vmatprep.subr.bf16.mxu0 %v4385
    %4635 = vmatpush1.bf16.msra.mxu0 %v4384
    %4636 = vmatprep.subr.bf16.mxu0 %v4389
    %4637 = vmatpush1.bf16.msra.mxu0 %v4388
    %4638 = vmatprep.subr.bf16.mxu0 %v4393
    %4639 = vmatpush1.bf16.msra.mxu0 %v4392
    %4640 = vmatprep.subr.bf16.mxu0 %v4397
    %4641 = vmatpush1.bf16.msra.mxu0 %v4396
    %4642 = vmatprep.subr.bf16.mxu0 %v4401
    %4643 = vmatpush1.bf16.msra.mxu0 %v4400
    %4644 = vmatprep.subr.bf16.mxu0 %v4405
    %4645 = vmatpush1.bf16.msra.mxu0 %v4404
    %4646 = vmatprep.subr.bf16.mxu0 %v4409
    %4647 = vmatpush1.bf16.msra.mxu0 %v4408
    %4648 = vmatprep.subr.bf16.mxu0 %v4413
    %4649 = vmatpush1.bf16.msra.mxu0 %v4412
    %4650 = vmatprep.subr.bf16.mxu0 %v4417
    %4651 = vmatpush1.bf16.msra.mxu0 %v4416
    %4652 = vmatprep.subr.bf16.mxu0 %v4421
    %4653 = vmatpush1.bf16.msra.mxu0 %v4420
    %4654 = vmatprep.subr.bf16.mxu0 %v4425
    %4655 = vmatpush1.bf16.msra.mxu0 %v4424
    %4656 = vmatprep.subr.bf16.mxu0 %v4429
    %4657 = vmatpush1.bf16.msra.mxu0 %v4428
    %4658 = vmatprep.subr.bf16.mxu0 %v4433
    %4659 = vmatpush1.bf16.msra.mxu0 %v4432
    %4660 = vmatprep.mubr.bf16.mxu0 %v3835
    %4661 = vmatmul.mubr.bf16.gmra.mrb[0].mxu0 %v3834
    %v4662 = vpop.f32.mrb[0].mxu0
    %v4663 = vadd.f32 %v3971, %v4662
    %v4664 = vpop.f32.mrb[0].mxu0
    %v4665 = vadd.f32 %v3975, %v4664
    %v4666 = vpop.f32.mrb[0].mxu0
    %v4667 = vpop.f32.mrb[0].mxu0
    %4668 = vdwg.mxu0
    %4669 = vmatprep.subr.bf16.mxu0 %v4437
    %4670 = vmatpush1.bf16.msra.mxu0 %v4436
    %4671 = vmatprep.subr.bf16.mxu0 %v4441
    %4672 = vmatpush1.bf16.msra.mxu0 %v4440
    %4673 = vmatprep.subr.bf16.mxu0 %v4445
    %4674 = vmatpush1.bf16.msra.mxu0 %v4444
    %4675 = vmatprep.subr.bf16.mxu0 %v4449
    %4676 = vmatpush1.bf16.msra.mxu0 %v4448
    %4677 = vmatprep.subr.bf16.mxu0 %v4453
    %4678 = vmatpush1.bf16.msra.mxu0 %v4452
    %4679 = vmatprep.subr.bf16.mxu0 %v4457
    %4680 = vmatpush1.bf16.msra.mxu0 %v4456
    %4681 = vmatprep.subr.bf16.mxu0 %v4461
    %4682 = vmatpush1.bf16.msra.mxu0 %v4460
    %4683 = vmatprep.subr.bf16.mxu0 %v4465
    %4684 = vmatpush1.bf16.msra.mxu0 %v4464
    %4685 = vmatprep.subr.bf16.mxu0 %v4469
    %4686 = vmatpush1.bf16.msra.mxu0 %v4468
    %4687 = vmatprep.subr.bf16.mxu0 %v4473
    %4688 = vmatpush1.bf16.msra.mxu0 %v4472
    %4689 = vmatprep.subr.bf16.mxu0 %v4477
    %4690 = vmatpush1.bf16.msra.mxu0 %v4476
    %4691 = vmatprep.subr.bf16.mxu0 %v4481
    %4692 = vmatpush1.bf16.msra.mxu0 %v4480
    %4693 = vmatprep.subr.bf16.mxu0 %v4485
    %4694 = vmatpush1.bf16.msra.mxu0 %v4484
    %4695 = vmatprep.subr.bf16.mxu0 %v4489
    %4696 = vmatpush1.bf16.msra.mxu0 %v4488
    %4697 = vmatprep.subr.bf16.mxu0 %v4493
    %4698 = vmatpush1.bf16.msra.mxu0 %v4492
    %4699 = vmatprep.subr.bf16.mxu0 %v4497
    %4700 = vmatpush1.bf16.msra.mxu0 %v4496
    %4701 = vmatprep.mubr.bf16.mxu0 %v3837
    %4702 = vmatmul.mubr.bf16.gmra.mrb[0].mxu0 %v3836
    %v4703 = vpop.f32.mrb[0].mxu0
    %v4704 = vadd.f32 %v4663, %v4703
    %v4705 = vpop.f32.mrb[0].mxu0
    %v4706 = vadd.f32 %v4665, %v4705
    %v4707 = vpop.f32.mrb[0].mxu0
    %v4708 = vpop.f32.mrb[0].mxu0
    %4709 = vdwg.mxu0
    %4710 = vmatprep.subr.bf16.mxu0 %v4375
    %4711 = vmatpush1.bf16.msra.mxu0 %v4374
    %4712 = vmatprep.subr.bf16.mxu0 %v4379
    %4713 = vmatpush1.bf16.msra.mxu0 %v4378
    %4714 = vmatprep.subr.bf16.mxu0 %v4383
    %4715 = vmatpush1.bf16.msra.mxu0 %v4382
    %4716 = vmatprep.subr.bf16.mxu0 %v4387
    %4717 = vmatpush1.bf16.msra.mxu0 %v4386
    %4718 = vmatprep.subr.bf16.mxu0 %v4391
    %4719 = vmatpush1.bf16.msra.mxu0 %v4390
    %4720 = vmatprep.subr.bf16.mxu0 %v4395
    %4721 = vmatpush1.bf16.msra.mxu0 %v4394
    %4722 = vmatprep.subr.bf16.mxu0 %v4399
    %4723 = vmatpush1.bf16.msra.mxu0 %v4398
    %4724 = vmatprep.subr.bf16.mxu0 %v4403
    %4725 = vmatpush1.bf16.msra.mxu0 %v4402
    %4726 = vmatprep.subr.bf16.mxu0 %v4407
    %4727 = vmatpush1.bf16.msra.mxu0 %v4406
    %4728 = vmatprep.subr.bf16.mxu0 %v4411
    %4729 = vmatpush1.bf16.msra.mxu0 %v4410
    %4730 = vmatprep.subr.bf16.mxu0 %v4415
    %4731 = vmatpush1.bf16.msra.mxu0 %v4414
    %4732 = vmatprep.subr.bf16.mxu0 %v4419
    %4733 = vmatpush1.bf16.msra.mxu0 %v4418
    %4734 = vmatprep.subr.bf16.mxu0 %v4423
    %4735 = vmatpush1.bf16.msra.mxu0 %v4422
    %4736 = vmatprep.subr.bf16.mxu0 %v4427
    %4737 = vmatpush1.bf16.msra.mxu0 %v4426
    %4738 = vmatprep.subr.bf16.mxu0 %v4431
    %4739 = vmatpush1.bf16.msra.mxu0 %v4430
    %4740 = vmatprep.subr.bf16.mxu0 %v4435
    %4741 = vmatpush1.bf16.msra.mxu0 %v4434
    %4742 = vmatprep.mubr.bf16.mxu0 %v3835
    %4743 = vmatmul.mubr.bf16.gmra.mrb[0].mxu0 %v3834
    %v4744 = vpop.f32.mrb[0].mxu0
    %v4745 = vadd.f32 %v3979, %v4744
    %v4746 = vpop.f32.mrb[0].mxu0
    %v4747 = vadd.f32 %v3983, %v4746
    %v4748 = vpop.f32.mrb[0].mxu0
    %v4749 = vpop.f32.mrb[0].mxu0
    %4750 = vdwg.mxu0
    %4751 = vmatprep.subr.bf16.mxu0 %v4439
    %4752 = vmatpush1.bf16.msra.mxu0 %v4438
    %4753 = vmatprep.subr.bf16.mxu0 %v4443
    %4754 = vmatpush1.bf16.msra.mxu0 %v4442
    %4755 = vmatprep.subr.bf16.mxu0 %v4447
    %4756 = vmatpush1.bf16.msra.mxu0 %v4446
    %4757 = vmatprep.subr.bf16.mxu0 %v4451
    %4758 = vmatpush1.bf16.msra.mxu0 %v4450
    %4759 = vmatprep.subr.bf16.mxu0 %v4455
    %4760 = vmatpush1.bf16.msra.mxu0 %v4454
    %4761 = vmatprep.subr.bf16.mxu0 %v4459
    %4762 = vmatpush1.bf16.msra.mxu0 %v4458
    %4763 = vmatprep.subr.bf16.mxu0 %v4463
    %4764 = vmatpush1.bf16.msra.mxu0 %v4462
    %4765 = vmatprep.subr.bf16.mxu0 %v4467
    %4766 = vmatpush1.bf16.msra.mxu0 %v4466
    %4767 = vmatprep.subr.bf16.mxu0 %v4471
    %4768 = vmatpush1.bf16.msra.mxu0 %v4470
    %4769 = vmatprep.subr.bf16.mxu0 %v4475
    %4770 = vmatpush1.bf16.msra.mxu0 %v4474
    %4771 = vmatprep.subr.bf16.mxu0 %v4479
    %4772 = vmatpush1.bf16.msra.mxu0 %v4478
    %4773 = vmatprep.subr.bf16.mxu0 %v4483
    %4774 = vmatpush1.bf16.msra.mxu0 %v4482
    %4775 = vmatprep.subr.bf16.mxu0 %v4487
    %4776 = vmatpush1.bf16.msra.mxu0 %v4486
    %4777 = vmatprep.subr.bf16.mxu0 %v4491
    %4778 = vmatpush1.bf16.msra.mxu0 %v4490
    %4779 = vmatprep.subr.bf16.mxu0 %v4495
    %4780 = vmatpush1.bf16.msra.mxu0 %v4494
    %4781 = vmatprep.subr.bf16.mxu0 %v4499
    %4782 = vmatpush1.bf16.msra.mxu0 %v4498
    %4783 = vmatprep.mubr.bf16.mxu0 %v3837
    %4784 = vmatmul.mubr.bf16.gmra.mrb[0].mxu0 %v3836
    %v4785 = vpop.f32.mrb[0].mxu0
    %v4786 = vadd.f32 %v4745, %v4785
    %v4787 = vpop.f32.mrb[0].mxu0
    %v4788 = vadd.f32 %v4747, %v4787
    %v4789 = vpop.f32.mrb[0].mxu0
    %v4790 = vpop.f32.mrb[0].mxu0
    %4791 = vdwg.mxu0
    %v4792 = vmax.f32 %v4704, 0.0
    %v4793 = vmax.f32 %v4706, 0.0
    %v4794 = vmax.f32 %v4786, 0.0
    %v4795 = vmax.f32 %v4788, 0.0
    %v4796 = vpack.c.bf16 %v4792, %v4792
    %v4797 = vpack.c.bf16 %v4793, %v4793
    %v4798 = vpack.c.bf16 %v4794, %v4794
    %v4799 = vpack.c.bf16 %v4795, %v4795
    %v4800 = vld [vmem:[#allocation12] sm:$0xff]
    %v4801 = vld [vmem:[#allocation12 + $0x8] sm:$0xff]
    %v4802 = vld [vmem:[#allocation12 + $0x10] sm:$0xff]
    %v4803 = vld [vmem:[#allocation12 + $0x18] sm:$0xf]
    %v4804 = vld [vmem:[#allocation12 + $0x1c] sm:$0xff]
    %v4805 = vld [vmem:[#allocation12 + $0x24] sm:$0xff]
    %v4806 = vld [vmem:[#allocation12 + $0x2c] sm:$0xff]
    %v4807 = vld [vmem:[#allocation12 + $0x34] sm:$0xf]
    %v4808 = vld [vmem:[#allocation12 + $0x38] sm:$0xff]
    %v4809 = vld [vmem:[#allocation12 + $0x40] sm:$0xff]
    %v4810 = vld [vmem:[#allocation12 + $0x48] sm:$0xff]
    %v4811 = vld [vmem:[#allocation12 + $0x50] sm:$0xf]
    %v4812 = vld [vmem:[#allocation12 + $0x54] sm:$0xff]
    %v4813 = vld [vmem:[#allocation12 + $0x5c] sm:$0xff]
    %v4814 = vld [vmem:[#allocation12 + $0x64] sm:$0xff]
    %v4815 = vld [vmem:[#allocation12 + $0x6c] sm:$0xf]
    %v4816 = vld [vmem:[#allocation12 + $0x70] sm:$0xff]
    %v4817 = vld [vmem:[#allocation12 + $0x78] sm:$0xff]
    %v4818 = vld [vmem:[#allocation12 + $0x80] sm:$0xff]
    %v4819 = vld [vmem:[#allocation12 + $0x88] sm:$0xf]
    %v4820 = vld [vmem:[#allocation12 + $0x8c] sm:$0xff]
    %v4821 = vld [vmem:[#allocation12 + $0x94] sm:$0xff]
    %v4822 = vld [vmem:[#allocation12 + $0x9c] sm:$0xff]
    %v4823 = vld [vmem:[#allocation12 + $0xa4] sm:$0xf]
    %v4824 = vld [vmem:[#allocation12 + $0xa8] sm:$0xff]
    %v4825 = vld [vmem:[#allocation12 + $0xb0] sm:$0xff]
    %v4826 = vld [vmem:[#allocation12 + $0xb8] sm:$0xff]
    %v4827 = vld [vmem:[#allocation12 + $0xc0] sm:$0xf]
    %v4828 = vld [vmem:[#allocation12 + $0xc4] sm:$0xff]
    %v4829 = vld [vmem:[#allocation12 + $0xcc] sm:$0xff]
    %v4830 = vld [vmem:[#allocation12 + $0xd4] sm:$0xff]
    %v4831 = vld [vmem:[#allocation12 + $0xdc] sm:$0xf]
    %v4832 = vld [vmem:[#allocation12 + $0xe0] sm:$0xff]
    %v4833 = vld [vmem:[#allocation12 + $0xe8] sm:$0xff]
    %v4834 = vld [vmem:[#allocation12 + $0xf0] sm:$0xff]
    %v4835 = vld [vmem:[#allocation12 + $0xf8] sm:$0xf]
    %v4836 = vld [vmem:[#allocation12 + $0xfc] sm:$0xff]
    %v4837 = vld [vmem:[#allocation12 + $0x104] sm:$0xff]
    %v4838 = vld [vmem:[#allocation12 + $0x10c] sm:$0xff]
    %v4839 = vld [vmem:[#allocation12 + $0x114] sm:$0xf]
    %v4840 = vld [vmem:[#allocation12 + $0x118] sm:$0xff]
    %v4841 = vld [vmem:[#allocation12 + $0x120] sm:$0xff]
    %v4842 = vld [vmem:[#allocation12 + $0x128] sm:$0xff]
    %v4843 = vld [vmem:[#allocation12 + $0x130] sm:$0xf]
    %v4844 = vld [vmem:[#allocation12 + $0x134] sm:$0xff]
    %v4845 = vld [vmem:[#allocation12 + $0x13c] sm:$0xff]
    %v4846 = vld [vmem:[#allocation12 + $0x144] sm:$0xff]
    %v4847 = vld [vmem:[#allocation12 + $0x14c] sm:$0xf]
    %v4848 = vld [vmem:[#allocation12 + $0x150] sm:$0xff]
    %v4849 = vld [vmem:[#allocation12 + $0x158] sm:$0xff]
    %v4850 = vld [vmem:[#allocation12 + $0x160] sm:$0xff]
    %v4851 = vld [vmem:[#allocation12 + $0x168] sm:$0xf]
    %v4852 = vld [vmem:[#allocation12 + $0x16c] sm:$0xff]
    %v4853 = vld [vmem:[#allocation12 + $0x174] sm:$0xff]
    %v4854 = vld [vmem:[#allocation12 + $0x17c] sm:$0xff]
    %v4855 = vld [vmem:[#allocation12 + $0x184] sm:$0xf]
    %v4856 = vld [vmem:[#allocation12 + $0x188] sm:$0xff]
    %v4857 = vld [vmem:[#allocation12 + $0x190] sm:$0xff]
    %v4858 = vld [vmem:[#allocation12 + $0x198] sm:$0xff]
    %v4859 = vld [vmem:[#allocation12 + $0x1a0] sm:$0xf]
    %v4860 = vld [vmem:[#allocation12 + $0x1a4] sm:$0xff]
    %v4861 = vld [vmem:[#allocation12 + $0x1ac] sm:$0xff]
    %v4862 = vld [vmem:[#allocation12 + $0x1b4] sm:$0xff]
    %v4863 = vld [vmem:[#allocation12 + $0x1bc] sm:$0xf]
    %v4864 = vld [vmem:[#allocation12 + $0x1c0] sm:$0xff]
    %v4865 = vld [vmem:[#allocation12 + $0x1c8] sm:$0xff]
    %v4866 = vld [vmem:[#allocation12 + $0x1d0] sm:$0xff]
    %v4867 = vld [vmem:[#allocation12 + $0x1d8] sm:$0xf]
    %v4868 = vld [vmem:[#allocation12 + $0x1dc] sm:$0xff]
    %v4869 = vld [vmem:[#allocation12 + $0x1e4] sm:$0xff]
    %v4870 = vld [vmem:[#allocation12 + $0x1ec] sm:$0xff]
    %v4871 = vld [vmem:[#allocation12 + $0x1f4] sm:$0xf]
    %v4872 = vld [vmem:[#allocation12 + $0x1f8] sm:$0xff]
    %v4873 = vld [vmem:[#allocation12 + $0x200] sm:$0xff]
    %v4874 = vld [vmem:[#allocation12 + $0x208] sm:$0xff]
    %v4875 = vld [vmem:[#allocation12 + $0x210] sm:$0xf]
    %v4876 = vld [vmem:[#allocation12 + $0x214] sm:$0xff]
    %v4877 = vld [vmem:[#allocation12 + $0x21c] sm:$0xff]
    %v4878 = vld [vmem:[#allocation12 + $0x224] sm:$0xff]
    %v4879 = vld [vmem:[#allocation12 + $0x22c] sm:$0xf]
    %v4880 = vld [vmem:[#allocation12 + $0x230] sm:$0xff]
    %v4881 = vld [vmem:[#allocation12 + $0x238] sm:$0xff]
    %v4882 = vld [vmem:[#allocation12 + $0x240] sm:$0xff]
    %v4883 = vld [vmem:[#allocation12 + $0x248] sm:$0xf]
    %v4884 = vld [vmem:[#allocation12 + $0x24c] sm:$0xff]
    %v4885 = vld [vmem:[#allocation12 + $0x254] sm:$0xff]
    %v4886 = vld [vmem:[#allocation12 + $0x25c] sm:$0xff]
    %v4887 = vld [vmem:[#allocation12 + $0x264] sm:$0xf]
    %v4888 = vld [vmem:[#allocation12 + $0x268] sm:$0xff]
    %v4889 = vld [vmem:[#allocation12 + $0x270] sm:$0xff]
    %v4890 = vld [vmem:[#allocation12 + $0x278] sm:$0xff]
    %v4891 = vld [vmem:[#allocation12 + $0x280] sm:$0xf]
    %v4892 = vld [vmem:[#allocation12 + $0x284] sm:$0xff]
    %v4893 = vld [vmem:[#allocation12 + $0x28c] sm:$0xff]
    %v4894 = vld [vmem:[#allocation12 + $0x294] sm:$0xff]
    %v4895 = vld [vmem:[#allocation12 + $0x29c] sm:$0xf]
    %v4896 = vld [vmem:[#allocation12 + $0x2a0] sm:$0xff]
    %v4897 = vld [vmem:[#allocation12 + $0x2a8] sm:$0xff]
    %v4898 = vld [vmem:[#allocation12 + $0x2b0] sm:$0xff]
    %v4899 = vld [vmem:[#allocation12 + $0x2b8] sm:$0xf]
    %v4900 = vld [vmem:[#allocation12 + $0x2bc] sm:$0xff]
    %v4901 = vld [vmem:[#allocation12 + $0x2c4] sm:$0xff]
    %v4902 = vld [vmem:[#allocation12 + $0x2cc] sm:$0xff]
    %v4903 = vld [vmem:[#allocation12 + $0x2d4] sm:$0xf]
    %v4904 = vld [vmem:[#allocation12 + $0x2d8] sm:$0xff]
    %v4905 = vld [vmem:[#allocation12 + $0x2e0] sm:$0xff]
    %v4906 = vld [vmem:[#allocation12 + $0x2e8] sm:$0xff]
    %v4907 = vld [vmem:[#allocation12 + $0x2f0] sm:$0xf]
    %v4908 = vld [vmem:[#allocation12 + $0x2f4] sm:$0xff]
    %v4909 = vld [vmem:[#allocation12 + $0x2fc] sm:$0xff]
    %v4910 = vld [vmem:[#allocation12 + $0x304] sm:$0xff]
    %v4911 = vld [vmem:[#allocation12 + $0x30c] sm:$0xf]
    %v4912 = vld [vmem:[#allocation12 + $0x310] sm:$0xff]
    %v4913 = vld [vmem:[#allocation12 + $0x318] sm:$0xff]
    %v4914 = vld [vmem:[#allocation12 + $0x320] sm:$0xff]
    %v4915 = vld [vmem:[#allocation12 + $0x328] sm:$0xf]
    %v4916 = vld [vmem:[#allocation12 + $0x32c] sm:$0xff]
    %v4917 = vld [vmem:[#allocation12 + $0x334] sm:$0xff]
    %v4918 = vld [vmem:[#allocation12 + $0x33c] sm:$0xff]
    %v4919 = vld [vmem:[#allocation12 + $0x344] sm:$0xf]
    %v4920 = vld [vmem:[#allocation12 + $0x348] sm:$0xff]
    %v4921 = vld [vmem:[#allocation12 + $0x350] sm:$0xff]
    %v4922 = vld [vmem:[#allocation12 + $0x358] sm:$0xff]
    %v4923 = vld [vmem:[#allocation12 + $0x360] sm:$0xf]
    %v4924 = vld [vmem:[#allocation12 + $0x364] sm:$0xff]
    %v4925 = vld [vmem:[#allocation12 + $0x36c] sm:$0xff]
    %v4926 = vld [vmem:[#allocation12 + $0x374] sm:$0xff]
    %v4927 = vld [vmem:[#allocation12 + $0x37c] sm:$0xf]
    %v4928 = vld [vmem:[#allocation12 + $0x380] sm:$0xff]
    %v4929 = vld [vmem:[#allocation12 + $0x388] sm:$0xff]
    %v4930 = vld [vmem:[#allocation12 + $0x390] sm:$0xff]
    %v4931 = vld [vmem:[#allocation12 + $0x398] sm:$0xf]
    %v4932 = vld [vmem:[#allocation12 + $0x39c] sm:$0xff]
    %v4933 = vld [vmem:[#allocation12 + $0x3a4] sm:$0xff]
    %v4934 = vld [vmem:[#allocation12 + $0x3ac] sm:$0xff]
    %v4935 = vld [vmem:[#allocation12 + $0x3b4] sm:$0xf]
    %v4936 = vld [vmem:[#allocation12 + $0x3b8] sm:$0xff]
    %v4937 = vld [vmem:[#allocation12 + $0x3c0] sm:$0xff]
    %v4938 = vld [vmem:[#allocation12 + $0x3c8] sm:$0xff]
    %v4939 = vld [vmem:[#allocation12 + $0x3d0] sm:$0xf]
    %v4940 = vld [vmem:[#allocation12 + $0x3d4] sm:$0xff]
    %v4941 = vld [vmem:[#allocation12 + $0x3dc] sm:$0xff]
    %v4942 = vld [vmem:[#allocation12 + $0x3e4] sm:$0xff]
    %v4943 = vld [vmem:[#allocation12 + $0x3ec] sm:$0xf]
    %v4944 = vld [vmem:[#allocation12 + $0x3f0] sm:$0xff]
    %v4945 = vld [vmem:[#allocation12 + $0x3f8] sm:$0xff]
    %v4946 = vld [vmem:[#allocation12 + $0x400] sm:$0xff]
    %v4947 = vld [vmem:[#allocation12 + $0x408] sm:$0xf]
    %v4948 = vld [vmem:[#allocation12 + $0x40c] sm:$0xff]
    %v4949 = vld [vmem:[#allocation12 + $0x414] sm:$0xff]
    %v4950 = vld [vmem:[#allocation12 + $0x41c] sm:$0xff]
    %v4951 = vld [vmem:[#allocation12 + $0x424] sm:$0xf]
    %v4952 = vld [vmem:[#allocation12 + $0x428] sm:$0xff]
    %v4953 = vld [vmem:[#allocation12 + $0x430] sm:$0xff]
    %v4954 = vld [vmem:[#allocation12 + $0x438] sm:$0xff]
    %v4955 = vld [vmem:[#allocation12 + $0x440] sm:$0xf]
    %v4956 = vld [vmem:[#allocation12 + $0x444] sm:$0xff]
    %v4957 = vld [vmem:[#allocation12 + $0x44c] sm:$0xff]
    %v4958 = vld [vmem:[#allocation12 + $0x454] sm:$0xff]
    %v4959 = vld [vmem:[#allocation12 + $0x45c] sm:$0xf]
    %v4960 = vld [vmem:[#allocation12 + $0x460] sm:$0xff]
    %v4961 = vld [vmem:[#allocation12 + $0x468] sm:$0xff]
    %v4962 = vld [vmem:[#allocation12 + $0x470] sm:$0xff]
    %v4963 = vld [vmem:[#allocation12 + $0x478] sm:$0xf]
    %v4964 = vld [vmem:[#allocation12 + $0x47c] sm:$0xff]
    %v4965 = vld [vmem:[#allocation12 + $0x484] sm:$0xff]
    %v4966 = vld [vmem:[#allocation12 + $0x48c] sm:$0xff]
    %v4967 = vld [vmem:[#allocation12 + $0x494] sm:$0xf]
    %v4968 = vld [vmem:[#allocation12 + $0x498] sm:$0xff]
    %v4969 = vld [vmem:[#allocation12 + $0x4a0] sm:$0xff]
    %v4970 = vld [vmem:[#allocation12 + $0x4a8] sm:$0xff]
    %v4971 = vld [vmem:[#allocation12 + $0x4b0] sm:$0xf]
    %v4972 = vld [vmem:[#allocation12 + $0x4b4] sm:$0xff]
    %v4973 = vld [vmem:[#allocation12 + $0x4bc] sm:$0xff]
    %v4974 = vld [vmem:[#allocation12 + $0x4c4] sm:$0xff]
    %v4975 = vld [vmem:[#allocation12 + $0x4cc] sm:$0xf]
    %v4976 = vld [vmem:[#allocation12 + $0x4d0] sm:$0xff]
    %v4977 = vld [vmem:[#allocation12 + $0x4d8] sm:$0xff]
    %v4978 = vld [vmem:[#allocation12 + $0x4e0] sm:$0xff]
    %v4979 = vld [vmem:[#allocation12 + $0x4e8] sm:$0xf]
    %v4980 = vld [vmem:[#allocation12 + $0x4ec] sm:$0xff]
    %v4981 = vld [vmem:[#allocation12 + $0x4f4] sm:$0xff]
    %v4982 = vld [vmem:[#allocation12 + $0x4fc] sm:$0xff]
    %v4983 = vld [vmem:[#allocation12 + $0x504] sm:$0xf]
    %v4984 = vld [vmem:[#allocation12 + $0x508] sm:$0xff]
    %v4985 = vld [vmem:[#allocation12 + $0x510] sm:$0xff]
    %v4986 = vld [vmem:[#allocation12 + $0x518] sm:$0xff]
    %v4987 = vld [vmem:[#allocation12 + $0x520] sm:$0xf]
    %v4988 = vld [vmem:[#allocation12 + $0x524] sm:$0xff]
    %v4989 = vld [vmem:[#allocation12 + $0x52c] sm:$0xff]
    %v4990 = vld [vmem:[#allocation12 + $0x534] sm:$0xff]
    %v4991 = vld [vmem:[#allocation12 + $0x53c] sm:$0xf]
    %v4992 = vld [vmem:[#allocation12 + $0x540] sm:$0xff]
    %v4993 = vld [vmem:[#allocation12 + $0x548] sm:$0xff]
    %v4994 = vld [vmem:[#allocation12 + $0x550] sm:$0xff]
    %v4995 = vld [vmem:[#allocation12 + $0x558] sm:$0xf]
    %v4996 = vld [vmem:[#allocation12 + $0x55c] sm:$0xff]
    %v4997 = vld [vmem:[#allocation12 + $0x564] sm:$0xff]
    %v4998 = vld [vmem:[#allocation12 + $0x56c] sm:$0xff]
    %v4999 = vld [vmem:[#allocation12 + $0x574] sm:$0xf]
    %v5000 = vld [vmem:[#allocation12 + $0x578] sm:$0xff]
    %v5001 = vld [vmem:[#allocation12 + $0x580] sm:$0xff]
    %v5002 = vld [vmem:[#allocation12 + $0x588] sm:$0xff]
    %v5003 = vld [vmem:[#allocation12 + $0x590] sm:$0xf]
    %v5004 = vld [vmem:[#allocation12 + $0x594] sm:$0xff]
    %v5005 = vld [vmem:[#allocation12 + $0x59c] sm:$0xff]
    %v5006 = vld [vmem:[#allocation12 + $0x5a4] sm:$0xff]
    %v5007 = vld [vmem:[#allocation12 + $0x5ac] sm:$0xf]
    %v5008 = vld [vmem:[#allocation12 + $0x5b0] sm:$0xff]
    %v5009 = vld [vmem:[#allocation12 + $0x5b8] sm:$0xff]
    %v5010 = vld [vmem:[#allocation12 + $0x5c0] sm:$0xff]
    %v5011 = vld [vmem:[#allocation12 + $0x5c8] sm:$0xf]
    %v5012 = vld [vmem:[#allocation12 + $0x5cc] sm:$0xff]
    %v5013 = vld [vmem:[#allocation12 + $0x5d4] sm:$0xff]
    %v5014 = vld [vmem:[#allocation12 + $0x5dc] sm:$0xff]
    %v5015 = vld [vmem:[#allocation12 + $0x5e4] sm:$0xf]
    %v5016 = vld [vmem:[#allocation12 + $0x5e8] sm:$0xff]
    %v5017 = vld [vmem:[#allocation12 + $0x5f0] sm:$0xff]
    %v5018 = vld [vmem:[#allocation12 + $0x5f8] sm:$0xff]
    %v5019 = vld [vmem:[#allocation12 + $0x600] sm:$0xf]
    %v5020 = vld [vmem:[#allocation12 + $0x604] sm:$0xff]
    %v5021 = vld [vmem:[#allocation12 + $0x60c] sm:$0xff]
    %v5022 = vld [vmem:[#allocation12 + $0x614] sm:$0xff]
    %v5023 = vld [vmem:[#allocation12 + $0x61c] sm:$0xf]
    %v5024 = vld [vmem:[#allocation12 + $0x620] sm:$0xff]
    %v5025 = vld [vmem:[#allocation12 + $0x628] sm:$0xff]
    %v5026 = vld [vmem:[#allocation12 + $0x630] sm:$0xff]
    %v5027 = vld [vmem:[#allocation12 + $0x638] sm:$0xf]
    %v5028 = vld [vmem:[#allocation12 + $0x63c] sm:$0xff]
    %v5029 = vld [vmem:[#allocation12 + $0x644] sm:$0xff]
    %v5030 = vld [vmem:[#allocation12 + $0x64c] sm:$0xff]
    %v5031 = vld [vmem:[#allocation12 + $0x654] sm:$0xf]
    %v5032 = vld [vmem:[#allocation12 + $0x658] sm:$0xff]
    %v5033 = vld [vmem:[#allocation12 + $0x660] sm:$0xff]
    %v5034 = vld [vmem:[#allocation12 + $0x668] sm:$0xff]
    %v5035 = vld [vmem:[#allocation12 + $0x670] sm:$0xf]
    %v5036 = vld [vmem:[#allocation12 + $0x674] sm:$0xff]
    %v5037 = vld [vmem:[#allocation12 + $0x67c] sm:$0xff]
    %v5038 = vld [vmem:[#allocation12 + $0x684] sm:$0xff]
    %v5039 = vld [vmem:[#allocation12 + $0x68c] sm:$0xf]
    %v5040 = vld [vmem:[#allocation12 + $0x690] sm:$0xff]
    %v5041 = vld [vmem:[#allocation12 + $0x698] sm:$0xff]
    %v5042 = vld [vmem:[#allocation12 + $0x6a0] sm:$0xff]
    %v5043 = vld [vmem:[#allocation12 + $0x6a8] sm:$0xf]
    %v5044 = vld [vmem:[#allocation12 + $0x6ac] sm:$0xff]
    %v5045 = vld [vmem:[#allocation12 + $0x6b4] sm:$0xff]
    %v5046 = vld [vmem:[#allocation12 + $0x6bc] sm:$0xff]
    %v5047 = vld [vmem:[#allocation12 + $0x6c4] sm:$0xf]
    %v5048 = vld [vmem:[#allocation12 + $0x6c8] sm:$0xff]
    %v5049 = vld [vmem:[#allocation12 + $0x6d0] sm:$0xff]
    %v5050 = vld [vmem:[#allocation12 + $0x6d8] sm:$0xff]
    %v5051 = vld [vmem:[#allocation12 + $0x6e0] sm:$0xf]
    %v5052 = vld [vmem:[#allocation12 + $0x6e4] sm:$0xff]
    %v5053 = vld [vmem:[#allocation12 + $0x6ec] sm:$0xff]
    %v5054 = vld [vmem:[#allocation12 + $0x6f4] sm:$0xff]
    %v5055 = vld [vmem:[#allocation12 + $0x6fc] sm:$0xf]
    %v5056 = vld [vmem:[%s15] sm:$0xff]
    %v5058 = vlaneseq
    %v5059 = vshrl.u32 %v5058, 7
    %v5060 = vsub.s32 0, %v5059
    %v5061 = vrot.slane %v5056, %v5060
    %v5062 = vlaneseq
    %v5063 = vshrl.u32 %v5062, 7
    %v5064 = vsub.s32 1, %v5063
    %v5065 = vrot.slane %v5056, %v5064
    %v5066 = vlaneseq
    %v5067 = vshrl.u32 %v5066, 7
    %v5068 = vsub.s32 2, %v5067
    %v5069 = vrot.slane %v5056, %v5068
    %v5070 = vlaneseq
    %v5071 = vshrl.u32 %v5070, 7
    %v5072 = vsub.s32 3, %v5071
    %v5073 = vrot.slane %v5056, %v5072
    %v5074 = vlaneseq
    %v5075 = vshrl.u32 %v5074, 7
    %v5076 = vsub.s32 4, %v5075
    %v5077 = vrot.slane %v5056, %v5076
    %v5078 = vlaneseq
    %v5079 = vshrl.u32 %v5078, 7
    %v5080 = vsub.s32 5, %v5079
    %v5081 = vrot.slane %v5056, %v5080
    %v5082 = vlaneseq
    %v5083 = vshrl.u32 %v5082, 7
    %v5084 = vsub.s32 6, %v5083
    %v5085 = vrot.slane %v5056, %v5084
    %v5349 = vunpack.c.l.b16 %v4800
    %v5350 = vunpack.c.h.b16 %v4800
    %v5351 = vunpack.c.l.b16 %v4801
    %v5352 = vunpack.c.h.b16 %v4801
    %v5353 = vunpack.c.l.b16 %v4802
    %v5354 = vunpack.c.h.b16 %v4802
    %v5355 = vunpack.c.l.b16 %v4803
    %v5356 = vunpack.c.l.b16 %v4804
    %v5357 = vunpack.c.h.b16 %v4804
    %v5358 = vunpack.c.l.b16 %v4805
    %v5359 = vunpack.c.h.b16 %v4805
    %v5360 = vunpack.c.l.b16 %v4806
    %v5361 = vunpack.c.h.b16 %v4806
    %v5362 = vunpack.c.l.b16 %v4807
    %v5363 = vunpack.c.l.b16 %v4808
    %v5364 = vunpack.c.h.b16 %v4808
    %v5365 = vunpack.c.l.b16 %v4809
    %v5366 = vunpack.c.h.b16 %v4809
    %v5367 = vunpack.c.l.b16 %v4810
    %v5368 = vunpack.c.h.b16 %v4810
    %v5369 = vunpack.c.l.b16 %v4811
    %v5370 = vunpack.c.l.b16 %v4812
    %v5371 = vunpack.c.h.b16 %v4812
    %v5372 = vunpack.c.l.b16 %v4813
    %v5373 = vunpack.c.h.b16 %v4813
    %v5374 = vunpack.c.l.b16 %v4814
    %v5375 = vunpack.c.h.b16 %v4814
    %v5376 = vunpack.c.l.b16 %v4815
    %v5377 = vunpack.c.l.b16 %v4816
    %v5378 = vunpack.c.h.b16 %v4816
    %v5379 = vunpack.c.l.b16 %v4817
    %v5380 = vunpack.c.h.b16 %v4817
    %v5381 = vunpack.c.l.b16 %v4818
    %v5382 = vunpack.c.h.b16 %v4818
    %v5383 = vunpack.c.l.b16 %v4819
    %v5384 = vunpack.c.l.b16 %v4820
    %v5385 = vunpack.c.h.b16 %v4820
    %v5386 = vunpack.c.l.b16 %v4821
    %v5387 = vunpack.c.h.b16 %v4821
    %v5388 = vunpack.c.l.b16 %v4822
    %v5389 = vunpack.c.h.b16 %v4822
    %v5390 = vunpack.c.l.b16 %v4823
    %v5391 = vunpack.c.l.b16 %v4824
    %v5392 = vunpack.c.h.b16 %v4824
    %v5393 = vunpack.c.l.b16 %v4825
    %v5394 = vunpack.c.h.b16 %v4825
    %v5395 = vunpack.c.l.b16 %v4826
    %v5396 = vunpack.c.h.b16 %v4826
    %v5397 = vunpack.c.l.b16 %v4827
    %v5398 = vunpack.c.l.b16 %v4828
    %v5399 = vunpack.c.h.b16 %v4828
    %v5400 = vunpack.c.l.b16 %v4829
    %v5401 = vunpack.c.h.b16 %v4829
    %v5402 = vunpack.c.l.b16 %v4830
    %v5403 = vunpack.c.h.b16 %v4830
    %v5404 = vunpack.c.l.b16 %v4831
    %v5405 = vunpack.c.l.b16 %v4832
    %v5406 = vunpack.c.h.b16 %v4832
    %v5407 = vunpack.c.l.b16 %v4833
    %v5408 = vunpack.c.h.b16 %v4833
    %v5409 = vunpack.c.l.b16 %v4834
    %v5410 = vunpack.c.h.b16 %v4834
    %v5411 = vunpack.c.l.b16 %v4835
    %v5412 = vunpack.c.l.b16 %v4836
    %v5413 = vunpack.c.h.b16 %v4836
    %v5414 = vunpack.c.l.b16 %v4837
    %v5415 = vunpack.c.h.b16 %v4837
    %v5416 = vunpack.c.l.b16 %v4838
    %v5417 = vunpack.c.h.b16 %v4838
    %v5418 = vunpack.c.l.b16 %v4839
    %v5419 = vunpack.c.l.b16 %v4840
    %v5420 = vunpack.c.h.b16 %v4840
    %v5421 = vunpack.c.l.b16 %v4841
    %v5422 = vunpack.c.h.b16 %v4841
    %v5423 = vunpack.c.l.b16 %v4842
    %v5424 = vunpack.c.h.b16 %v4842
    %v5425 = vunpack.c.l.b16 %v4843
    %v5426 = vunpack.c.l.b16 %v4844
    %v5427 = vunpack.c.h.b16 %v4844
    %v5428 = vunpack.c.l.b16 %v4845
    %v5429 = vunpack.c.h.b16 %v4845
    %v5430 = vunpack.c.l.b16 %v4846
    %v5431 = vunpack.c.h.b16 %v4846
    %v5432 = vunpack.c.l.b16 %v4847
    %v5433 = vunpack.c.l.b16 %v4848
    %v5434 = vunpack.c.h.b16 %v4848
    %v5435 = vunpack.c.l.b16 %v4849
    %v5436 = vunpack.c.h.b16 %v4849
    %v5437 = vunpack.c.l.b16 %v4850
    %v5438 = vunpack.c.h.b16 %v4850
    %v5439 = vunpack.c.l.b16 %v4851
    %v5440 = vunpack.c.l.b16 %v4852
    %v5441 = vunpack.c.h.b16 %v4852
    %v5442 = vunpack.c.l.b16 %v4853
    %v5443 = vunpack.c.h.b16 %v4853
    %v5444 = vunpack.c.l.b16 %v4854
    %v5445 = vunpack.c.h.b16 %v4854
    %v5446 = vunpack.c.l.b16 %v4855
    %v5447 = vunpack.c.l.b16 %v4856
    %v5448 = vunpack.c.h.b16 %v4856
    %v5449 = vunpack.c.l.b16 %v4857
    %v5450 = vunpack.c.h.b16 %v4857
    %v5451 = vunpack.c.l.b16 %v4858
    %v5452 = vunpack.c.h.b16 %v4858
    %v5453 = vunpack.c.l.b16 %v4859
    %v5454 = vunpack.c.l.b16 %v4860
    %v5455 = vunpack.c.h.b16 %v4860
    %v5456 = vunpack.c.l.b16 %v4861
    %v5457 = vunpack.c.h.b16 %v4861
    %v5458 = vunpack.c.l.b16 %v4862
    %v5459 = vunpack.c.h.b16 %v4862
    %v5460 = vunpack.c.l.b16 %v4863
    %v5461 = vunpack.c.l.b16 %v4864
    %v5462 = vunpack.c.h.b16 %v4864
    %v5463 = vunpack.c.l.b16 %v4865
    %v5464 = vunpack.c.h.b16 %v4865
    %v5465 = vunpack.c.l.b16 %v4866
    %v5466 = vunpack.c.h.b16 %v4866
    %v5467 = vunpack.c.l.b16 %v4867
    %v5468 = vunpack.c.l.b16 %v4868
    %v5469 = vunpack.c.h.b16 %v4868
    %v5470 = vunpack.c.l.b16 %v4869
    %v5471 = vunpack.c.h.b16 %v4869
    %v5472 = vunpack.c.l.b16 %v4870
    %v5473 = vunpack.c.h.b16 %v4870
    %v5474 = vunpack.c.l.b16 %v4871
    %v5475 = vunpack.c.l.b16 %v4872
    %v5476 = vunpack.c.h.b16 %v4872
    %v5477 = vunpack.c.l.b16 %v4873
    %v5478 = vunpack.c.h.b16 %v4873
    %v5479 = vunpack.c.l.b16 %v4874
    %v5480 = vunpack.c.h.b16 %v4874
    %v5481 = vunpack.c.l.b16 %v4875
    %v5482 = vunpack.c.l.b16 %v4876
    %v5483 = vunpack.c.h.b16 %v4876
    %v5484 = vunpack.c.l.b16 %v4877
    %v5485 = vunpack.c.h.b16 %v4877
    %v5486 = vunpack.c.l.b16 %v4878
    %v5487 = vunpack.c.h.b16 %v4878
    %v5488 = vunpack.c.l.b16 %v4879
    %v5489 = vunpack.c.l.b16 %v4880
    %v5490 = vunpack.c.h.b16 %v4880
    %v5491 = vunpack.c.l.b16 %v4881
    %v5492 = vunpack.c.h.b16 %v4881
    %v5493 = vunpack.c.l.b16 %v4882
    %v5494 = vunpack.c.h.b16 %v4882
    %v5495 = vunpack.c.l.b16 %v4883
    %v5496 = vunpack.c.l.b16 %v4884
    %v5497 = vunpack.c.h.b16 %v4884
    %v5498 = vunpack.c.l.b16 %v4885
    %v5499 = vunpack.c.h.b16 %v4885
    %v5500 = vunpack.c.l.b16 %v4886
    %v5501 = vunpack.c.h.b16 %v4886
    %v5502 = vunpack.c.l.b16 %v4887
    %v5503 = vunpack.c.l.b16 %v4888
    %v5504 = vunpack.c.h.b16 %v4888
    %v5505 = vunpack.c.l.b16 %v4889
    %v5506 = vunpack.c.h.b16 %v4889
    %v5507 = vunpack.c.l.b16 %v4890
    %v5508 = vunpack.c.h.b16 %v4890
    %v5509 = vunpack.c.l.b16 %v4891
    %v5510 = vunpack.c.l.b16 %v4892
    %v5511 = vunpack.c.h.b16 %v4892
    %v5512 = vunpack.c.l.b16 %v4893
    %v5513 = vunpack.c.h.b16 %v4893
    %v5514 = vunpack.c.l.b16 %v4894
    %v5515 = vunpack.c.h.b16 %v4894
    %v5516 = vunpack.c.l.b16 %v4895
    %v5517 = vunpack.c.l.b16 %v4896
    %v5518 = vunpack.c.h.b16 %v4896
    %v5519 = vunpack.c.l.b16 %v4897
    %v5520 = vunpack.c.h.b16 %v4897
    %v5521 = vunpack.c.l.b16 %v4898
    %v5522 = vunpack.c.h.b16 %v4898
    %v5523 = vunpack.c.l.b16 %v4899
    %v5524 = vunpack.c.l.b16 %v4900
    %v5525 = vunpack.c.h.b16 %v4900
    %v5526 = vunpack.c.l.b16 %v4901
    %v5527 = vunpack.c.h.b16 %v4901
    %v5528 = vunpack.c.l.b16 %v4902
    %v5529 = vunpack.c.h.b16 %v4902
    %v5530 = vunpack.c.l.b16 %v4903
    %v5531 = vunpack.c.l.b16 %v4904
    %v5532 = vunpack.c.h.b16 %v4904
    %v5533 = vunpack.c.l.b16 %v4905
    %v5534 = vunpack.c.h.b16 %v4905
    %v5535 = vunpack.c.l.b16 %v4906
    %v5536 = vunpack.c.h.b16 %v4906
    %v5537 = vunpack.c.l.b16 %v4907
    %v5538 = vunpack.c.l.b16 %v4908
    %v5539 = vunpack.c.h.b16 %v4908
    %v5540 = vunpack.c.l.b16 %v4909
    %v5541 = vunpack.c.h.b16 %v4909
    %v5542 = vunpack.c.l.b16 %v4910
    %v5543 = vunpack.c.h.b16 %v4910
    %v5544 = vunpack.c.l.b16 %v4911
    %v5545 = vunpack.c.l.b16 %v4912
    %v5546 = vunpack.c.h.b16 %v4912
    %v5547 = vunpack.c.l.b16 %v4913
    %v5548 = vunpack.c.h.b16 %v4913
    %v5549 = vunpack.c.l.b16 %v4914
    %v5550 = vunpack.c.h.b16 %v4914
    %v5551 = vunpack.c.l.b16 %v4915
    %v5552 = vunpack.c.l.b16 %v4916
    %v5553 = vunpack.c.h.b16 %v4916
    %v5554 = vunpack.c.l.b16 %v4917
    %v5555 = vunpack.c.h.b16 %v4917
    %v5556 = vunpack.c.l.b16 %v4918
    %v5557 = vunpack.c.h.b16 %v4918
    %v5558 = vunpack.c.l.b16 %v4919
    %v5559 = vunpack.c.l.b16 %v4920
    %v5560 = vunpack.c.h.b16 %v4920
    %v5561 = vunpack.c.l.b16 %v4921
    %v5562 = vunpack.c.h.b16 %v4921
    %v5563 = vunpack.c.l.b16 %v4922
    %v5564 = vunpack.c.h.b16 %v4922
    %v5565 = vunpack.c.l.b16 %v4923
    %v5566 = vunpack.c.l.b16 %v4924
    %v5567 = vunpack.c.h.b16 %v4924
    %v5568 = vunpack.c.l.b16 %v4925
    %v5569 = vunpack.c.h.b16 %v4925
    %v5570 = vunpack.c.l.b16 %v4926
    %v5571 = vunpack.c.h.b16 %v4926
    %v5572 = vunpack.c.l.b16 %v4927
    %v5573 = vunpack.c.l.b16 %v4928
    %v5574 = vunpack.c.h.b16 %v4928
    %v5575 = vunpack.c.l.b16 %v4929
    %v5576 = vunpack.c.h.b16 %v4929
    %v5577 = vunpack.c.l.b16 %v4930
    %v5578 = vunpack.c.h.b16 %v4930
    %v5579 = vunpack.c.l.b16 %v4931
    %v5580 = vunpack.c.l.b16 %v4932
    %v5581 = vunpack.c.h.b16 %v4932
    %v5582 = vunpack.c.l.b16 %v4933
    %v5583 = vunpack.c.h.b16 %v4933
    %v5584 = vunpack.c.l.b16 %v4934
    %v5585 = vunpack.c.h.b16 %v4934
    %v5586 = vunpack.c.l.b16 %v4935
    %v5587 = vunpack.c.l.b16 %v4936
    %v5588 = vunpack.c.h.b16 %v4936
    %v5589 = vunpack.c.l.b16 %v4937
    %v5590 = vunpack.c.h.b16 %v4937
    %v5591 = vunpack.c.l.b16 %v4938
    %v5592 = vunpack.c.h.b16 %v4938
    %v5593 = vunpack.c.l.b16 %v4939
    %v5594 = vunpack.c.l.b16 %v4940
    %v5595 = vunpack.c.h.b16 %v4940
    %v5596 = vunpack.c.l.b16 %v4941
    %v5597 = vunpack.c.h.b16 %v4941
    %v5598 = vunpack.c.l.b16 %v4942
    %v5599 = vunpack.c.h.b16 %v4942
    %v5600 = vunpack.c.l.b16 %v4943
    %v5601 = vunpack.c.l.b16 %v4944
    %v5602 = vunpack.c.h.b16 %v4944
    %v5603 = vunpack.c.l.b16 %v4945
    %v5604 = vunpack.c.h.b16 %v4945
    %v5605 = vunpack.c.l.b16 %v4946
    %v5606 = vunpack.c.h.b16 %v4946
    %v5607 = vunpack.c.l.b16 %v4947
    %v5608 = vunpack.c.l.b16 %v4948
    %v5609 = vunpack.c.h.b16 %v4948
    %v5610 = vunpack.c.l.b16 %v4949
    %v5611 = vunpack.c.h.b16 %v4949
    %v5612 = vunpack.c.l.b16 %v4950
    %v5613 = vunpack.c.h.b16 %v4950
    %v5614 = vunpack.c.l.b16 %v4951
    %v5615 = vunpack.c.l.b16 %v4952
    %v5616 = vunpack.c.h.b16 %v4952
    %v5617 = vunpack.c.l.b16 %v4953
    %v5618 = vunpack.c.h.b16 %v4953
    %v5619 = vunpack.c.l.b16 %v4954
    %v5620 = vunpack.c.h.b16 %v4954
    %v5621 = vunpack.c.l.b16 %v4955
    %v5622 = vunpack.c.l.b16 %v4956
    %v5623 = vunpack.c.h.b16 %v4956
    %v5624 = vunpack.c.l.b16 %v4957
    %v5625 = vunpack.c.h.b16 %v4957
    %v5626 = vunpack.c.l.b16 %v4958
    %v5627 = vunpack.c.h.b16 %v4958
    %v5628 = vunpack.c.l.b16 %v4959
    %v5629 = vunpack.c.l.b16 %v4960
    %v5630 = vunpack.c.h.b16 %v4960
    %v5631 = vunpack.c.l.b16 %v4961
    %v5632 = vunpack.c.h.b16 %v4961
    %v5633 = vunpack.c.l.b16 %v4962
    %v5634 = vunpack.c.h.b16 %v4962
    %v5635 = vunpack.c.l.b16 %v4963
    %v5636 = vunpack.c.l.b16 %v4964
    %v5637 = vunpack.c.h.b16 %v4964
    %v5638 = vunpack.c.l.b16 %v4965
    %v5639 = vunpack.c.h.b16 %v4965
    %v5640 = vunpack.c.l.b16 %v4966
    %v5641 = vunpack.c.h.b16 %v4966
    %v5642 = vunpack.c.l.b16 %v4967
    %v5643 = vunpack.c.l.b16 %v4968
    %v5644 = vunpack.c.h.b16 %v4968
    %v5645 = vunpack.c.l.b16 %v4969
    %v5646 = vunpack.c.h.b16 %v4969
    %v5647 = vunpack.c.l.b16 %v4970
    %v5648 = vunpack.c.h.b16 %v4970
    %v5649 = vunpack.c.l.b16 %v4971
    %v5650 = vunpack.c.l.b16 %v4972
    %v5651 = vunpack.c.h.b16 %v4972
    %v5652 = vunpack.c.l.b16 %v4973
    %v5653 = vunpack.c.h.b16 %v4973
    %v5654 = vunpack.c.l.b16 %v4974
    %v5655 = vunpack.c.h.b16 %v4974
    %v5656 = vunpack.c.l.b16 %v4975
    %v5657 = vunpack.c.l.b16 %v4976
    %v5658 = vunpack.c.h.b16 %v4976
    %v5659 = vunpack.c.l.b16 %v4977
    %v5660 = vunpack.c.h.b16 %v4977
    %v5661 = vunpack.c.l.b16 %v4978
    %v5662 = vunpack.c.h.b16 %v4978
    %v5663 = vunpack.c.l.b16 %v4979
    %v5664 = vunpack.c.l.b16 %v4980
    %v5665 = vunpack.c.h.b16 %v4980
    %v5666 = vunpack.c.l.b16 %v4981
    %v5667 = vunpack.c.h.b16 %v4981
    %v5668 = vunpack.c.l.b16 %v4982
    %v5669 = vunpack.c.h.b16 %v4982
    %v5670 = vunpack.c.l.b16 %v4983
    %v5671 = vunpack.c.l.b16 %v4984
    %v5672 = vunpack.c.h.b16 %v4984
    %v5673 = vunpack.c.l.b16 %v4985
    %v5674 = vunpack.c.h.b16 %v4985
    %v5675 = vunpack.c.l.b16 %v4986
    %v5676 = vunpack.c.h.b16 %v4986
    %v5677 = vunpack.c.l.b16 %v4987
    %v5678 = vunpack.c.l.b16 %v4988
    %v5679 = vunpack.c.h.b16 %v4988
    %v5680 = vunpack.c.l.b16 %v4989
    %v5681 = vunpack.c.h.b16 %v4989
    %v5682 = vunpack.c.l.b16 %v4990
    %v5683 = vunpack.c.h.b16 %v4990
    %v5684 = vunpack.c.l.b16 %v4991
    %v5685 = vunpack.c.l.b16 %v4992
    %v5686 = vunpack.c.h.b16 %v4992
    %v5687 = vunpack.c.l.b16 %v4993
    %v5688 = vunpack.c.h.b16 %v4993
    %v5689 = vunpack.c.l.b16 %v4994
    %v5690 = vunpack.c.h.b16 %v4994
    %v5691 = vunpack.c.l.b16 %v4995
    %v5692 = vunpack.c.l.b16 %v4996
    %v5693 = vunpack.c.h.b16 %v4996
    %v5694 = vunpack.c.l.b16 %v4997
    %v5695 = vunpack.c.h.b16 %v4997
    %v5696 = vunpack.c.l.b16 %v4998
    %v5697 = vunpack.c.h.b16 %v4998
    %v5698 = vunpack.c.l.b16 %v4999
    %v5699 = vunpack.c.l.b16 %v5000
    %v5700 = vunpack.c.h.b16 %v5000
    %v5701 = vunpack.c.l.b16 %v5001
    %v5702 = vunpack.c.h.b16 %v5001
    %v5703 = vunpack.c.l.b16 %v5002
    %v5704 = vunpack.c.h.b16 %v5002
    %v5705 = vunpack.c.l.b16 %v5003
    %v5706 = vunpack.c.l.b16 %v5004
    %v5707 = vunpack.c.h.b16 %v5004
    %v5708 = vunpack.c.l.b16 %v5005
    %v5709 = vunpack.c.h.b16 %v5005
    %v5710 = vunpack.c.l.b16 %v5006
    %v5711 = vunpack.c.h.b16 %v5006
    %v5712 = vunpack.c.l.b16 %v5007
    %v5713 = vunpack.c.l.b16 %v5008
    %v5714 = vunpack.c.h.b16 %v5008
    %v5715 = vunpack.c.l.b16 %v5009
    %v5716 = vunpack.c.h.b16 %v5009
    %v5717 = vunpack.c.l.b16 %v5010
    %v5718 = vunpack.c.h.b16 %v5010
    %v5719 = vunpack.c.l.b16 %v5011
    %v5720 = vunpack.c.l.b16 %v5012
    %v5721 = vunpack.c.h.b16 %v5012
    %v5722 = vunpack.c.l.b16 %v5013
    %v5723 = vunpack.c.h.b16 %v5013
    %v5724 = vunpack.c.l.b16 %v5014
    %v5725 = vunpack.c.h.b16 %v5014
    %v5726 = vunpack.c.l.b16 %v5015
    %v5727 = vunpack.c.l.b16 %v5016
    %v5728 = vunpack.c.h.b16 %v5016
    %v5729 = vunpack.c.l.b16 %v5017
    %v5730 = vunpack.c.h.b16 %v5017
    %v5731 = vunpack.c.l.b16 %v5018
    %v5732 = vunpack.c.h.b16 %v5018
    %v5733 = vunpack.c.l.b16 %v5019
    %v5734 = vunpack.c.l.b16 %v5020
    %v5735 = vunpack.c.h.b16 %v5020
    %v5736 = vunpack.c.l.b16 %v5021
    %v5737 = vunpack.c.h.b16 %v5021
    %v5738 = vunpack.c.l.b16 %v5022
    %v5739 = vunpack.c.h.b16 %v5022
    %v5740 = vunpack.c.l.b16 %v5023
    %v5741 = vunpack.c.l.b16 %v5024
    %v5742 = vunpack.c.h.b16 %v5024
    %v5743 = vunpack.c.l.b16 %v5025
    %v5744 = vunpack.c.h.b16 %v5025
    %v5745 = vunpack.c.l.b16 %v5026
    %v5746 = vunpack.c.h.b16 %v5026
    %v5747 = vunpack.c.l.b16 %v5027
    %v5748 = vunpack.c.l.b16 %v5028
    %v5749 = vunpack.c.h.b16 %v5028
    %v5750 = vunpack.c.l.b16 %v5029
    %v5751 = vunpack.c.h.b16 %v5029
    %v5752 = vunpack.c.l.b16 %v5030
    %v5753 = vunpack.c.h.b16 %v5030
    %v5754 = vunpack.c.l.b16 %v5031
    %v5755 = vunpack.c.l.b16 %v5032
    %v5756 = vunpack.c.h.b16 %v5032
    %v5757 = vunpack.c.l.b16 %v5033
    %v5758 = vunpack.c.h.b16 %v5033
    %v5759 = vunpack.c.l.b16 %v5034
    %v5760 = vunpack.c.h.b16 %v5034
    %v5761 = vunpack.c.l.b16 %v5035
    %v5762 = vunpack.c.l.b16 %v5036
    %v5763 = vunpack.c.h.b16 %v5036
    %v5764 = vunpack.c.l.b16 %v5037
    %v5765 = vunpack.c.h.b16 %v5037
    %v5766 = vunpack.c.l.b16 %v5038
    %v5767 = vunpack.c.h.b16 %v5038
    %v5768 = vunpack.c.l.b16 %v5039
    %v5769 = vunpack.c.l.b16 %v5040
    %v5770 = vunpack.c.h.b16 %v5040
    %v5771 = vunpack.c.l.b16 %v5041
    %v5772 = vunpack.c.h.b16 %v5041
    %v5773 = vunpack.c.l.b16 %v5042
    %v5774 = vunpack.c.h.b16 %v5042
    %v5775 = vunpack.c.l.b16 %v5043
    %v5776 = vunpack.c.l.b16 %v5044
    %v5777 = vunpack.c.h.b16 %v5044
    %v5778 = vunpack.c.l.b16 %v5045
    %v5779 = vunpack.c.h.b16 %v5045
    %v5780 = vunpack.c.l.b16 %v5046
    %v5781 = vunpack.c.h.b16 %v5046
    %v5782 = vunpack.c.l.b16 %v5047
    %v5783 = vunpack.c.l.b16 %v5048
    %v5784 = vunpack.c.h.b16 %v5048
    %v5785 = vunpack.c.l.b16 %v5049
    %v5786 = vunpack.c.h.b16 %v5049
    %v5787 = vunpack.c.l.b16 %v5050
    %v5788 = vunpack.c.h.b16 %v5050
    %v5789 = vunpack.c.l.b16 %v5051
    %v5790 = vunpack.c.l.b16 %v5052
    %v5791 = vunpack.c.h.b16 %v5052
    %v5792 = vunpack.c.l.b16 %v5053
    %v5793 = vunpack.c.h.b16 %v5053
    %v5794 = vunpack.c.l.b16 %v5054
    %v5795 = vunpack.c.h.b16 %v5054
    %v5796 = vunpack.c.l.b16 %v5055
    %v5797 = vpack.c.b16 %v5356, %v5349
    %v5798 = vpack.c.b16 %v5357, %v5350
    %v5799 = vpack.c.b16 %v5358, %v5351
    %v5800 = vpack.c.b16 %v5359, %v5352
    %v5801 = vpack.c.b16 %v5360, %v5353
    %v5802 = vpack.c.b16 %v5361, %v5354
    %v5803 = vpack.c.b16 %v5362, %v5355
    %v5804 = vpack.c.b16 %v5370, %v5363
    %v5805 = vpack.c.b16 %v5371, %v5364
    %v5806 = vpack.c.b16 %v5372, %v5365
    %v5807 = vpack.c.b16 %v5373, %v5366
    %v5808 = vpack.c.b16 %v5374, %v5367
    %v5809 = vpack.c.b16 %v5375, %v5368
    %v5810 = vpack.c.b16 %v5376, %v5369
    %v5811 = vpack.c.b16 %v5384, %v5377
    %v5812 = vpack.c.b16 %v5385, %v5378
    %v5813 = vpack.c.b16 %v5386, %v5379
    %v5814 = vpack.c.b16 %v5387, %v5380
    %v5815 = vpack.c.b16 %v5388, %v5381
    %v5816 = vpack.c.b16 %v5389, %v5382
    %v5817 = vpack.c.b16 %v5390, %v5383
    %v5818 = vpack.c.b16 %v5398, %v5391
    %v5819 = vpack.c.b16 %v5399, %v5392
    %v5820 = vpack.c.b16 %v5400, %v5393
    %v5821 = vpack.c.b16 %v5401, %v5394
    %v5822 = vpack.c.b16 %v5402, %v5395
    %v5823 = vpack.c.b16 %v5403, %v5396
    %v5824 = vpack.c.b16 %v5404, %v5397
    %v5825 = vpack.c.b16 %v5412, %v5405
    %v5826 = vpack.c.b16 %v5413, %v5406
    %v5827 = vpack.c.b16 %v5414, %v5407
    %v5828 = vpack.c.b16 %v5415, %v5408
    %v5829 = vpack.c.b16 %v5416, %v5409
    %v5830 = vpack.c.b16 %v5417, %v5410
    %v5831 = vpack.c.b16 %v5418, %v5411
    %v5832 = vpack.c.b16 %v5426, %v5419
    %v5833 = vpack.c.b16 %v5427, %v5420
    %v5834 = vpack.c.b16 %v5428, %v5421
    %v5835 = vpack.c.b16 %v5429, %v5422
    %v5836 = vpack.c.b16 %v5430, %v5423
    %v5837 = vpack.c.b16 %v5431, %v5424
    %v5838 = vpack.c.b16 %v5432, %v5425
    %v5839 = vpack.c.b16 %v5440, %v5433
    %v5840 = vpack.c.b16 %v5441, %v5434
    %v5841 = vpack.c.b16 %v5442, %v5435
    %v5842 = vpack.c.b16 %v5443, %v5436
    %v5843 = vpack.c.b16 %v5444, %v5437
    %v5844 = vpack.c.b16 %v5445, %v5438
    %v5845 = vpack.c.b16 %v5446, %v5439
    %v5846 = vpack.c.b16 %v5454, %v5447
    %v5847 = vpack.c.b16 %v5455, %v5448
    %v5848 = vpack.c.b16 %v5456, %v5449
    %v5849 = vpack.c.b16 %v5457, %v5450
    %v5850 = vpack.c.b16 %v5458, %v5451
    %v5851 = vpack.c.b16 %v5459, %v5452
    %v5852 = vpack.c.b16 %v5460, %v5453
    %v5853 = vpack.c.b16 %v5468, %v5461
    %v5854 = vpack.c.b16 %v5469, %v5462
    %v5855 = vpack.c.b16 %v5470, %v5463
    %v5856 = vpack.c.b16 %v5471, %v5464
    %v5857 = vpack.c.b16 %v5472, %v5465
    %v5858 = vpack.c.b16 %v5473, %v5466
    %v5859 = vpack.c.b16 %v5474, %v5467
    %v5860 = vpack.c.b16 %v5482, %v5475
    %v5861 = vpack.c.b16 %v5483, %v5476
    %v5862 = vpack.c.b16 %v5484, %v5477
    %v5863 = vpack.c.b16 %v5485, %v5478
    %v5864 = vpack.c.b16 %v5486, %v5479
    %v5865 = vpack.c.b16 %v5487, %v5480
    %v5866 = vpack.c.b16 %v5488, %v5481
    %v5867 = vpack.c.b16 %v5496, %v5489
    %v5868 = vpack.c.b16 %v5497, %v5490
    %v5869 = vpack.c.b16 %v5498, %v5491
    %v5870 = vpack.c.b16 %v5499, %v5492
    %v5871 = vpack.c.b16 %v5500, %v5493
    %v5872 = vpack.c.b16 %v5501, %v5494
    %v5873 = vpack.c.b16 %v5502, %v5495
    %v5874 = vpack.c.b16 %v5510, %v5503
    %v5875 = vpack.c.b16 %v5511, %v5504
    %v5876 = vpack.c.b16 %v5512, %v5505
    %v5877 = vpack.c.b16 %v5513, %v5506
    %v5878 = vpack.c.b16 %v5514, %v5507
    %v5879 = vpack.c.b16 %v5515, %v5508
    %v5880 = vpack.c.b16 %v5516, %v5509
    %v5881 = vpack.c.b16 %v5524, %v5517
    %v5882 = vpack.c.b16 %v5525, %v5518
    %v5883 = vpack.c.b16 %v5526, %v5519
    %v5884 = vpack.c.b16 %v5527, %v5520
    %v5885 = vpack.c.b16 %v5528, %v5521
    %v5886 = vpack.c.b16 %v5529, %v5522
    %v5887 = vpack.c.b16 %v5530, %v5523
    %v5888 = vpack.c.b16 %v5538, %v5531
    %v5889 = vpack.c.b16 %v5539, %v5532
    %v5890 = vpack.c.b16 %v5540, %v5533
    %v5891 = vpack.c.b16 %v5541, %v5534
    %v5892 = vpack.c.b16 %v5542, %v5535
    %v5893 = vpack.c.b16 %v5543, %v5536
    %v5894 = vpack.c.b16 %v5544, %v5537
    %v5895 = vpack.c.b16 %v5552, %v5545
    %v5896 = vpack.c.b16 %v5553, %v5546
    %v5897 = vpack.c.b16 %v5554, %v5547
    %v5898 = vpack.c.b16 %v5555, %v5548
    %v5899 = vpack.c.b16 %v5556, %v5549
    %v5900 = vpack.c.b16 %v5557, %v5550
    %v5901 = vpack.c.b16 %v5558, %v5551
    %v5902 = vpack.c.b16 %v5566, %v5559
    %v5903 = vpack.c.b16 %v5567, %v5560
    %v5904 = vpack.c.b16 %v5568, %v5561
    %v5905 = vpack.c.b16 %v5569, %v5562
    %v5906 = vpack.c.b16 %v5570, %v5563
    %v5907 = vpack.c.b16 %v5571, %v5564
    %v5908 = vpack.c.b16 %v5572, %v5565
    %v5909 = vpack.c.b16 %v5580, %v5573
    %v5910 = vpack.c.b16 %v5581, %v5574
    %v5911 = vpack.c.b16 %v5582, %v5575
    %v5912 = vpack.c.b16 %v5583, %v5576
    %v5913 = vpack.c.b16 %v5584, %v5577
    %v5914 = vpack.c.b16 %v5585, %v5578
    %v5915 = vpack.c.b16 %v5586, %v5579
    %v5916 = vpack.c.b16 %v5594, %v5587
    %v5917 = vpack.c.b16 %v5595, %v5588
    %v5918 = vpack.c.b16 %v5596, %v5589
    %v5919 = vpack.c.b16 %v5597, %v5590
    %v5920 = vpack.c.b16 %v5598, %v5591
    %v5921 = vpack.c.b16 %v5599, %v5592
    %v5922 = vpack.c.b16 %v5600, %v5593
    %v5923 = vpack.c.b16 %v5608, %v5601
    %v5924 = vpack.c.b16 %v5609, %v5602
    %v5925 = vpack.c.b16 %v5610, %v5603
    %v5926 = vpack.c.b16 %v5611, %v5604
    %v5927 = vpack.c.b16 %v5612, %v5605
    %v5928 = vpack.c.b16 %v5613, %v5606
    %v5929 = vpack.c.b16 %v5614, %v5607
    %v5930 = vpack.c.b16 %v5622, %v5615
    %v5931 = vpack.c.b16 %v5623, %v5616
    %v5932 = vpack.c.b16 %v5624, %v5617
    %v5933 = vpack.c.b16 %v5625, %v5618
    %v5934 = vpack.c.b16 %v5626, %v5619
    %v5935 = vpack.c.b16 %v5627, %v5620
    %v5936 = vpack.c.b16 %v5628, %v5621
    %v5937 = vpack.c.b16 %v5636, %v5629
    %v5938 = vpack.c.b16 %v5637, %v5630
    %v5939 = vpack.c.b16 %v5638, %v5631
    %v5940 = vpack.c.b16 %v5639, %v5632
    %v5941 = vpack.c.b16 %v5640, %v5633
    %v5942 = vpack.c.b16 %v5641, %v5634
    %v5943 = vpack.c.b16 %v5642, %v5635
    %v5944 = vpack.c.b16 %v5650, %v5643
    %v5945 = vpack.c.b16 %v5651, %v5644
    %v5946 = vpack.c.b16 %v5652, %v5645
    %v5947 = vpack.c.b16 %v5653, %v5646
    %v5948 = vpack.c.b16 %v5654, %v5647
    %v5949 = vpack.c.b16 %v5655, %v5648
    %v5950 = vpack.c.b16 %v5656, %v5649
    %v5951 = vpack.c.b16 %v5664, %v5657
    %v5952 = vpack.c.b16 %v5665, %v5658
    %v5953 = vpack.c.b16 %v5666, %v5659
    %v5954 = vpack.c.b16 %v5667, %v5660
    %v5955 = vpack.c.b16 %v5668, %v5661
    %v5956 = vpack.c.b16 %v5669, %v5662
    %v5957 = vpack.c.b16 %v5670, %v5663
    %v5958 = vpack.c.b16 %v5678, %v5671
    %v5959 = vpack.c.b16 %v5679, %v5672
    %v5960 = vpack.c.b16 %v5680, %v5673
    %v5961 = vpack.c.b16 %v5681, %v5674
    %v5962 = vpack.c.b16 %v5682, %v5675
    %v5963 = vpack.c.b16 %v5683, %v5676
    %v5964 = vpack.c.b16 %v5684, %v5677
    %v5965 = vpack.c.b16 %v5692, %v5685
    %v5966 = vpack.c.b16 %v5693, %v5686
    %v5967 = vpack.c.b16 %v5694, %v5687
    %v5968 = vpack.c.b16 %v5695, %v5688
    %v5969 = vpack.c.b16 %v5696, %v5689
    %v5970 = vpack.c.b16 %v5697, %v5690
    %v5971 = vpack.c.b16 %v5698, %v5691
    %v5972 = vpack.c.b16 %v5706, %v5699
    %v5973 = vpack.c.b16 %v5707, %v5700
    %v5974 = vpack.c.b16 %v5708, %v5701
    %v5975 = vpack.c.b16 %v5709, %v5702
    %v5976 = vpack.c.b16 %v5710, %v5703
    %v5977 = vpack.c.b16 %v5711, %v5704
    %v5978 = vpack.c.b16 %v5712, %v5705
    %v5979 = vpack.c.b16 %v5720, %v5713
    %v5980 = vpack.c.b16 %v5721, %v5714
    %v5981 = vpack.c.b16 %v5722, %v5715
    %v5982 = vpack.c.b16 %v5723, %v5716
    %v5983 = vpack.c.b16 %v5724, %v5717
    %v5984 = vpack.c.b16 %v5725, %v5718
    %v5985 = vpack.c.b16 %v5726, %v5719
    %v5986 = vpack.c.b16 %v5734, %v5727
    %v5987 = vpack.c.b16 %v5735, %v5728
    %v5988 = vpack.c.b16 %v5736, %v5729
    %v5989 = vpack.c.b16 %v5737, %v5730
    %v5990 = vpack.c.b16 %v5738, %v5731
    %v5991 = vpack.c.b16 %v5739, %v5732
    %v5992 = vpack.c.b16 %v5740, %v5733
    %v5993 = vpack.c.b16 %v5748, %v5741
    %v5994 = vpack.c.b16 %v5749, %v5742
    %v5995 = vpack.c.b16 %v5750, %v5743
    %v5996 = vpack.c.b16 %v5751, %v5744
    %v5997 = vpack.c.b16 %v5752, %v5745
    %v5998 = vpack.c.b16 %v5753, %v5746
    %v5999 = vpack.c.b16 %v5754, %v5747
    %v6000 = vpack.c.b16 %v5762, %v5755
    %v6001 = vpack.c.b16 %v5763, %v5756
    %v6002 = vpack.c.b16 %v5764, %v5757
    %v6003 = vpack.c.b16 %v5765, %v5758
    %v6004 = vpack.c.b16 %v5766, %v5759
    %v6005 = vpack.c.b16 %v5767, %v5760
    %v6006 = vpack.c.b16 %v5768, %v5761
    %v6007 = vpack.c.b16 %v5776, %v5769
    %v6008 = vpack.c.b16 %v5777, %v5770
    %v6009 = vpack.c.b16 %v5778, %v5771
    %v6010 = vpack.c.b16 %v5779, %v5772
    %v6011 = vpack.c.b16 %v5780, %v5773
    %v6012 = vpack.c.b16 %v5781, %v5774
    %v6013 = vpack.c.b16 %v5782, %v5775
    %v6014 = vpack.c.b16 %v5790, %v5783
    %v6015 = vpack.c.b16 %v5791, %v5784
    %v6016 = vpack.c.b16 %v5792, %v5785
    %v6017 = vpack.c.b16 %v5793, %v5786
    %v6018 = vpack.c.b16 %v5794, %v5787
    %v6019 = vpack.c.b16 %v5795, %v5788
    %v6020 = vpack.c.b16 %v5796, %v5789
    %6245 = vmatprep.subr.bf16.mxu0 %v5798
    %6246 = vmatpush1.bf16.msra.mxu0 %v5797
    %6247 = vmatprep.subr.bf16.mxu0 %v5805
    %6248 = vmatpush1.bf16.msra.mxu0 %v5804
    %6249 = vmatprep.subr.bf16.mxu0 %v5812
    %6250 = vmatpush1.bf16.msra.mxu0 %v5811
    %6251 = vmatprep.subr.bf16.mxu0 %v5819
    %6252 = vmatpush1.bf16.msra.mxu0 %v5818
    %6253 = vmatprep.subr.bf16.mxu0 %v5826
    %6254 = vmatpush1.bf16.msra.mxu0 %v5825
    %6255 = vmatprep.subr.bf16.mxu0 %v5833
    %6256 = vmatpush1.bf16.msra.mxu0 %v5832
    %6257 = vmatprep.subr.bf16.mxu0 %v5840
    %6258 = vmatpush1.bf16.msra.mxu0 %v5839
    %6259 = vmatprep.subr.bf16.mxu0 %v5847
    %6260 = vmatpush1.bf16.msra.mxu0 %v5846
    %6261 = vmatprep.subr.bf16.mxu0 %v5854
    %6262 = vmatpush1.bf16.msra.mxu0 %v5853
    %6263 = vmatprep.subr.bf16.mxu0 %v5861
    %6264 = vmatpush1.bf16.msra.mxu0 %v5860
    %6265 = vmatprep.subr.bf16.mxu0 %v5868
    %6266 = vmatpush1.bf16.msra.mxu0 %v5867
    %6267 = vmatprep.subr.bf16.mxu0 %v5875
    %6268 = vmatpush1.bf16.msra.mxu0 %v5874
    %6269 = vmatprep.subr.bf16.mxu0 %v5882
    %6270 = vmatpush1.bf16.msra.mxu0 %v5881
    %6271 = vmatprep.subr.bf16.mxu0 %v5889
    %6272 = vmatpush1.bf16.msra.mxu0 %v5888
    %6273 = vmatprep.subr.bf16.mxu0 %v5896
    %6274 = vmatpush1.bf16.msra.mxu0 %v5895
    %6275 = vmatprep.subr.bf16.mxu0 %v5903
    %6276 = vmatpush1.bf16.msra.mxu0 %v5902
    %6277 = vmatprep.mubr.bf16.mxu0 %v4797
    %6278 = vmatmul.mubr.bf16.gmra.mrb[0].mxu0 %v4796
    %v6279 = vpop.f32.mrb[0].mxu0
    %v6280 = vadd.f32 %v5061, %v6279
    %v6281 = vpop.f32.mrb[0].mxu0
    %v6282 = vadd.f32 %v5065, %v6281
    %v6283 = vpop.f32.mrb[0].mxu0
    %v6284 = vpop.f32.mrb[0].mxu0
    %6285 = vdwg.mxu0
    %6286 = vmatprep.subr.bf16.mxu0 %v5910
    %6287 = vmatpush1.bf16.msra.mxu0 %v5909
    %6288 = vmatprep.subr.bf16.mxu0 %v5917
    %6289 = vmatpush1.bf16.msra.mxu0 %v5916
    %6290 = vmatprep.subr.bf16.mxu0 %v5924
    %6291 = vmatpush1.bf16.msra.mxu0 %v5923
    %6292 = vmatprep.subr.bf16.mxu0 %v5931
    %6293 = vmatpush1.bf16.msra.mxu0 %v5930
    %6294 = vmatprep.subr.bf16.mxu0 %v5938
    %6295 = vmatpush1.bf16.msra.mxu0 %v5937
    %6296 = vmatprep.subr.bf16.mxu0 %v5945
    %6297 = vmatpush1.bf16.msra.mxu0 %v5944
    %6298 = vmatprep.subr.bf16.mxu0 %v5952
    %6299 = vmatpush1.bf16.msra.mxu0 %v5951
    %6300 = vmatprep.subr.bf16.mxu0 %v5959
    %6301 = vmatpush1.bf16.msra.mxu0 %v5958
    %6302 = vmatprep.subr.bf16.mxu0 %v5966
    %6303 = vmatpush1.bf16.msra.mxu0 %v5965
    %6304 = vmatprep.subr.bf16.mxu0 %v5973
    %6305 = vmatpush1.bf16.msra.mxu0 %v5972
    %6306 = vmatprep.subr.bf16.mxu0 %v5980
    %6307 = vmatpush1.bf16.msra.mxu0 %v5979
    %6308 = vmatprep.subr.bf16.mxu0 %v5987
    %6309 = vmatpush1.bf16.msra.mxu0 %v5986
    %6310 = vmatprep.subr.bf16.mxu0 %v5994
    %6311 = vmatpush1.bf16.msra.mxu0 %v5993
    %6312 = vmatprep.subr.bf16.mxu0 %v6001
    %6313 = vmatpush1.bf16.msra.mxu0 %v6000
    %6314 = vmatprep.subr.bf16.mxu0 %v6008
    %6315 = vmatpush1.bf16.msra.mxu0 %v6007
    %6316 = vmatprep.subr.bf16.mxu0 %v6015
    %6317 = vmatpush1.bf16.msra.mxu0 %v6014
    %6318 = vmatprep.mubr.bf16.mxu0 %v4799
    %6319 = vmatmul.mubr.bf16.gmra.mrb[0].mxu0 %v4798
    %v6320 = vpop.f32.mrb[0].mxu0
    %v6321 = vadd.f32 %v6280, %v6320
    %v6322 = vpop.f32.mrb[0].mxu0
    %v6323 = vadd.f32 %v6282, %v6322
    %v6324 = vpop.f32.mrb[0].mxu0
    %v6325 = vpop.f32.mrb[0].mxu0
    %6326 = vdwg.mxu0
    %6327 = vmatprep.subr.bf16.mxu0 %v5800
    %6328 = vmatpush1.bf16.msra.mxu0 %v5799
    %6329 = vmatprep.subr.bf16.mxu0 %v5807
    %6330 = vmatpush1.bf16.msra.mxu0 %v5806
    %6331 = vmatprep.subr.bf16.mxu0 %v5814
    %6332 = vmatpush1.bf16.msra.mxu0 %v5813
    %6333 = vmatprep.subr.bf16.mxu0 %v5821
    %6334 = vmatpush1.bf16.msra.mxu0 %v5820
    %6335 = vmatprep.subr.bf16.mxu0 %v5828
    %6336 = vmatpush1.bf16.msra.mxu0 %v5827
    %6337 = vmatprep.subr.bf16.mxu0 %v5835
    %6338 = vmatpush1.bf16.msra.mxu0 %v5834
    %6339 = vmatprep.subr.bf16.mxu0 %v5842
    %6340 = vmatpush1.bf16.msra.mxu0 %v5841
    %6341 = vmatprep.subr.bf16.mxu0 %v5849
    %6342 = vmatpush1.bf16.msra.mxu0 %v5848
    %6343 = vmatprep.subr.bf16.mxu0 %v5856
    %6344 = vmatpush1.bf16.msra.mxu0 %v5855
    %6345 = vmatprep.subr.bf16.mxu0 %v5863
    %6346 = vmatpush1.bf16.msra.mxu0 %v5862
    %6347 = vmatprep.subr.bf16.mxu0 %v5870
    %6348 = vmatpush1.bf16.msra.mxu0 %v5869
    %6349 = vmatprep.subr.bf16.mxu0 %v5877
    %6350 = vmatpush1.bf16.msra.mxu0 %v5876
    %6351 = vmatprep.subr.bf16.mxu0 %v5884
    %6352 = vmatpush1.bf16.msra.mxu0 %v5883
    %6353 = vmatprep.subr.bf16.mxu0 %v5891
    %6354 = vmatpush1.bf16.msra.mxu0 %v5890
    %6355 = vmatprep.subr.bf16.mxu0 %v5898
    %6356 = vmatpush1.bf16.msra.mxu0 %v5897
    %6357 = vmatprep.subr.bf16.mxu0 %v5905
    %6358 = vmatpush1.bf16.msra.mxu0 %v5904
    %6359 = vmatprep.mubr.bf16.mxu0 %v4797
    %6360 = vmatmul.mubr.bf16.gmra.mrb[0].mxu0 %v4796
    %v6361 = vpop.f32.mrb[0].mxu0
    %v6362 = vadd.f32 %v5069, %v6361
    %v6363 = vpop.f32.mrb[0].mxu0
    %v6364 = vadd.f32 %v5073, %v6363
    %v6365 = vpop.f32.mrb[0].mxu0
    %v6366 = vpop.f32.mrb[0].mxu0
    %6367 = vdwg.mxu0
    %6368 = vmatprep.subr.bf16.mxu0 %v5912
    %6369 = vmatpush1.bf16.msra.mxu0 %v5911
    %6370 = vmatprep.subr.bf16.mxu0 %v5919
    %6371 = vmatpush1.bf16.msra.mxu0 %v5918
    %6372 = vmatprep.subr.bf16.mxu0 %v5926
    %6373 = vmatpush1.bf16.msra.mxu0 %v5925
    %6374 = vmatprep.subr.bf16.mxu0 %v5933
    %6375 = vmatpush1.bf16.msra.mxu0 %v5932
    %6376 = vmatprep.subr.bf16.mxu0 %v5940
    %6377 = vmatpush1.bf16.msra.mxu0 %v5939
    %6378 = vmatprep.subr.bf16.mxu0 %v5947
    %6379 = vmatpush1.bf16.msra.mxu0 %v5946
    %6380 = vmatprep.subr.bf16.mxu0 %v5954
    %6381 = vmatpush1.bf16.msra.mxu0 %v5953
    %6382 = vmatprep.subr.bf16.mxu0 %v5961
    %6383 = vmatpush1.bf16.msra.mxu0 %v5960
    %6384 = vmatprep.subr.bf16.mxu0 %v5968
    %6385 = vmatpush1.bf16.msra.mxu0 %v5967
    %6386 = vmatprep.subr.bf16.mxu0 %v5975
    %6387 = vmatpush1.bf16.msra.mxu0 %v5974
    %6388 = vmatprep.subr.bf16.mxu0 %v5982
    %6389 = vmatpush1.bf16.msra.mxu0 %v5981
    %6390 = vmatprep.subr.bf16.mxu0 %v5989
    %6391 = vmatpush1.bf16.msra.mxu0 %v5988
    %6392 = vmatprep.subr.bf16.mxu0 %v5996
    %6393 = vmatpush1.bf16.msra.mxu0 %v5995
    %6394 = vmatprep.subr.bf16.mxu0 %v6003
    %6395 = vmatpush1.bf16.msra.mxu0 %v6002
    %6396 = vmatprep.subr.bf16.mxu0 %v6010
    %6397 = vmatpush1.bf16.msra.mxu0 %v6009
    %6398 = vmatprep.subr.bf16.mxu0 %v6017
    %6399 = vmatpush1.bf16.msra.mxu0 %v6016
    %6400 = vmatprep.mubr.bf16.mxu0 %v4799
    %6401 = vmatmul.mubr.bf16.gmra.mrb[0].mxu0 %v4798
    %v6402 = vpop.f32.mrb[0].mxu0
    %v6403 = vadd.f32 %v6362, %v6402
    %v6404 = vpop.f32.mrb[0].mxu0
    %v6405 = vadd.f32 %v6364, %v6404
    %v6406 = vpop.f32.mrb[0].mxu0
    %v6407 = vpop.f32.mrb[0].mxu0
    %6408 = vdwg.mxu0
    %6409 = vmatprep.subr.bf16.mxu0 %v5802
    %6410 = vmatpush1.bf16.msra.mxu0 %v5801
    %6411 = vmatprep.subr.bf16.mxu0 %v5809
    %6412 = vmatpush1.bf16.msra.mxu0 %v5808
    %6413 = vmatprep.subr.bf16.mxu0 %v5816
    %6414 = vmatpush1.bf16.msra.mxu0 %v5815
    %6415 = vmatprep.subr.bf16.mxu0 %v5823
    %6416 = vmatpush1.bf16.msra.mxu0 %v5822
    %6417 = vmatprep.subr.bf16.mxu0 %v5830
    %6418 = vmatpush1.bf16.msra.mxu0 %v5829
    %6419 = vmatprep.subr.bf16.mxu0 %v5837
    %6420 = vmatpush1.bf16.msra.mxu0 %v5836
    %6421 = vmatprep.subr.bf16.mxu0 %v5844
    %6422 = vmatpush1.bf16.msra.mxu0 %v5843
    %6423 = vmatprep.subr.bf16.mxu0 %v5851
    %6424 = vmatpush1.bf16.msra.mxu0 %v5850
    %6425 = vmatprep.subr.bf16.mxu0 %v5858
    %6426 = vmatpush1.bf16.msra.mxu0 %v5857
    %6427 = vmatprep.subr.bf16.mxu0 %v5865
    %6428 = vmatpush1.bf16.msra.mxu0 %v5864
    %6429 = vmatprep.subr.bf16.mxu0 %v5872
    %6430 = vmatpush1.bf16.msra.mxu0 %v5871
    %6431 = vmatprep.subr.bf16.mxu0 %v5879
    %6432 = vmatpush1.bf16.msra.mxu0 %v5878
    %6433 = vmatprep.subr.bf16.mxu0 %v5886
    %6434 = vmatpush1.bf16.msra.mxu0 %v5885
    %6435 = vmatprep.subr.bf16.mxu0 %v5893
    %6436 = vmatpush1.bf16.msra.mxu0 %v5892
    %6437 = vmatprep.subr.bf16.mxu0 %v5900
    %6438 = vmatpush1.bf16.msra.mxu0 %v5899
    %6439 = vmatprep.subr.bf16.mxu0 %v5907
    %6440 = vmatpush1.bf16.msra.mxu0 %v5906
    %6441 = vmatprep.mubr.bf16.mxu0 %v4797
    %6442 = vmatmul.mubr.bf16.gmra.mrb[0].mxu0 %v4796
    %v6443 = vpop.f32.mrb[0].mxu0
    %v6444 = vadd.f32 %v5077, %v6443
    %v6445 = vpop.f32.mrb[0].mxu0
    %v6446 = vadd.f32 %v5081, %v6445
    %v6447 = vpop.f32.mrb[0].mxu0
    %v6448 = vpop.f32.mrb[0].mxu0
    %6449 = vdwg.mxu0
    %6450 = vmatprep.subr.bf16.mxu0 %v5914
    %6451 = vmatpush1.bf16.msra.mxu0 %v5913
    %6452 = vmatprep.subr.bf16.mxu0 %v5921
    %6453 = vmatpush1.bf16.msra.mxu0 %v5920
    %6454 = vmatprep.subr.bf16.mxu0 %v5928
    %6455 = vmatpush1.bf16.msra.mxu0 %v5927
    %6456 = vmatprep.subr.bf16.mxu0 %v5935
    %6457 = vmatpush1.bf16.msra.mxu0 %v5934
    %6458 = vmatprep.subr.bf16.mxu0 %v5942
    %6459 = vmatpush1.bf16.msra.mxu0 %v5941
    %6460 = vmatprep.subr.bf16.mxu0 %v5949
    %6461 = vmatpush1.bf16.msra.mxu0 %v5948
    %6462 = vmatprep.subr.bf16.mxu0 %v5956
    %6463 = vmatpush1.bf16.msra.mxu0 %v5955
    %6464 = vmatprep.subr.bf16.mxu0 %v5963
    %6465 = vmatpush1.bf16.msra.mxu0 %v5962
    %6466 = vmatprep.subr.bf16.mxu0 %v5970
    %6467 = vmatpush1.bf16.msra.mxu0 %v5969
    %6468 = vmatprep.subr.bf16.mxu0 %v5977
    %6469 = vmatpush1.bf16.msra.mxu0 %v5976
    %6470 = vmatprep.subr.bf16.mxu0 %v5984
    %6471 = vmatpush1.bf16.msra.mxu0 %v5983
    %6472 = vmatprep.subr.bf16.mxu0 %v5991
    %6473 = vmatpush1.bf16.msra.mxu0 %v5990
    %6474 = vmatprep.subr.bf16.mxu0 %v5998
    %6475 = vmatpush1.bf16.msra.mxu0 %v5997
    %6476 = vmatprep.subr.bf16.mxu0 %v6005
    %6477 = vmatpush1.bf16.msra.mxu0 %v6004
    %6478 = vmatprep.subr.bf16.mxu0 %v6012
    %6479 = vmatpush1.bf16.msra.mxu0 %v6011
    %6480 = vmatprep.subr.bf16.mxu0 %v6019
    %6481 = vmatpush1.bf16.msra.mxu0 %v6018
    %6482 = vmatprep.mubr.bf16.mxu0 %v4799
    %6483 = vmatmul.mubr.bf16.gmra.mrb[0].mxu0 %v4798
    %v6484 = vpop.f32.mrb[0].mxu0
    %v6485 = vadd.f32 %v6444, %v6484
    %v6486 = vpop.f32.mrb[0].mxu0
    %v6487 = vadd.f32 %v6446, %v6486
    %v6488 = vpop.f32.mrb[0].mxu0
    %v6489 = vpop.f32.mrb[0].mxu0
    %6490 = vdwg.mxu0
    %6491 = vmatprep.subr.bf16.mxu0 0
    %6492 = vmatpush1.bf16.msra.mxu0 %v5803
    %6493 = vmatprep.subr.bf16.mxu0 0
    %6494 = vmatpush1.bf16.msra.mxu0 %v5810
    %6495 = vmatprep.subr.bf16.mxu0 0
    %6496 = vmatpush1.bf16.msra.mxu0 %v5817
    %6497 = vmatprep.subr.bf16.mxu0 0
    %6498 = vmatpush1.bf16.msra.mxu0 %v5824
    %6499 = vmatprep.subr.bf16.mxu0 0
    %6500 = vmatpush1.bf16.msra.mxu0 %v5831
    %6501 = vmatprep.subr.bf16.mxu0 0
    %6502 = vmatpush1.bf16.msra.mxu0 %v5838
    %6503 = vmatprep.subr.bf16.mxu0 0
    %6504 = vmatpush1.bf16.msra.mxu0 %v5845
    %6505 = vmatprep.subr.bf16.mxu0 0
    %6506 = vmatpush1.bf16.msra.mxu0 %v5852
    %6507 = vmatprep.subr.bf16.mxu0 0
    %6508 = vmatpush1.bf16.msra.mxu0 %v5859
    %6509 = vmatprep.subr.bf16.mxu0 0
    %6510 = vmatpush1.bf16.msra.mxu0 %v5866
    %6511 = vmatprep.subr.bf16.mxu0 0
    %6512 = vmatpush1.bf16.msra.mxu0 %v5873
    %6513 = vmatprep.subr.bf16.mxu0 0
    %6514 = vmatpush1.bf16.msra.mxu0 %v5880
    %6515 = vmatprep.subr.bf16.mxu0 0
    %6516 = vmatpush1.bf16.msra.mxu0 %v5887
    %6517 = vmatprep.subr.bf16.mxu0 0
    %6518 = vmatpush1.bf16.msra.mxu0 %v5894
    %6519 = vmatprep.subr.bf16.mxu0 0
    %6520 = vmatpush1.bf16.msra.mxu0 %v5901
    %6521 = vmatprep.subr.bf16.mxu0 0
    %6522 = vmatpush1.bf16.msra.mxu0 %v5908
    %6523 = vmatprep.mubr.bf16.mxu0 %v4797
    %6524 = vmatmul.mubr.bf16.gmra.mrb[0].mxu0 %v4796
    %v6525 = vpop.f32.mrb[0].mxu0
    %v6526 = vadd.f32 %v5085, %v6525
    %v6527 = vpop.f32.mrb[0].mxu0
    %v6528 = vpop.f32.mrb[0].mxu0
    %v6529 = vpop.f32.mrb[0].mxu0
    %6530 = vdwg.mxu0
    %6531 = vmatprep.subr.bf16.mxu0 0
    %6532 = vmatpush1.bf16.msra.mxu0 %v5915
    %6533 = vmatprep.subr.bf16.mxu0 0
    %6534 = vmatpush1.bf16.msra.mxu0 %v5922
    %6535 = vmatprep.subr.bf16.mxu0 0
    %6536 = vmatpush1.bf16.msra.mxu0 %v5929
    %6537 = vmatprep.subr.bf16.mxu0 0
    %6538 = vmatpush1.bf16.msra.mxu0 %v5936
    %6539 = vmatprep.subr.bf16.mxu0 0
    %6540 = vmatpush1.bf16.msra.mxu0 %v5943
    %6541 = vmatprep.subr.bf16.mxu0 0
    %6542 = vmatpush1.bf16.msra.mxu0 %v5950
    %6543 = vmatprep.subr.bf16.mxu0 0
    %6544 = vmatpush1.bf16.msra.mxu0 %v5957
    %6545 = vmatprep.subr.bf16.mxu0 0
    %6546 = vmatpush1.bf16.msra.mxu0 %v5964
    %6547 = vmatprep.subr.bf16.mxu0 0
    %6548 = vmatpush1.bf16.msra.mxu0 %v5971
    %6549 = vmatprep.subr.bf16.mxu0 0
    %6550 = vmatpush1.bf16.msra.mxu0 %v5978
    %6551 = vmatprep.subr.bf16.mxu0 0
    %6552 = vmatpush1.bf16.msra.mxu0 %v5985
    %6553 = vmatprep.subr.bf16.mxu0 0
    %6554 = vmatpush1.bf16.msra.mxu0 %v5992
    %6555 = vmatprep.subr.bf16.mxu0 0
    %6556 = vmatpush1.bf16.msra.mxu0 %v5999
    %6557 = vmatprep.subr.bf16.mxu0 0
    %6558 = vmatpush1.bf16.msra.mxu0 %v6006
    %6559 = vmatprep.subr.bf16.mxu0 0
    %6560 = vmatpush1.bf16.msra.mxu0 %v6013
    %6561 = vmatprep.subr.bf16.mxu0 0
    %6562 = vmatpush1.bf16.msra.mxu0 %v6020
    %6563 = vmatprep.mubr.bf16.mxu0 %v4799
    %6564 = vmatmul.mubr.bf16.gmra.mrb[0].mxu0 %v4798
    %v6565 = vpop.f32.mrb[0].mxu0
    %v6566 = vadd.f32 %v6526, %v6565
    %v6567 = vpop.f32.mrb[0].mxu0
    %v6568 = vpop.f32.mrb[0].mxu0
    %v6569 = vpop.f32.mrb[0].mxu0
    %6570 = vdwg.mxu0
    %v6571 = vsub.f32 0.0, %v6321
    %v6572 = vsub.f32 0.0, %v6323
    %v6573 = vsub.f32 0.0, %v6403
    %v6574 = vsub.f32 0.0, %v6405
    %v6575 = vsub.f32 0.0, %v6485
    %v6576 = vsub.f32 0.0, %v6487
    %v6577 = vsub.f32 0.0, %v6566
    %v6578 = vmul.f32 %v6571, 1.442695
    %v6579 = vpow.pop %v6578
    %v6580 = vmul.f32 %v6572, 1.442695
    %v6581 = vpow.pop %v6580
    %v6582 = vmul.f32 %v6573, 1.442695
    %v6583 = vpow.pop %v6582
    %v6584 = vmul.f32 %v6574, 1.442695
    %v6585 = vpow.pop %v6584
    %v6586 = vmul.f32 %v6575, 1.442695
    %v6587 = vpow.pop %v6586
    %v6588 = vmul.f32 %v6576, 1.442695
    %v6589 = vpow.pop %v6588
    %v6590 = vmul.f32 %v6577, 1.442695
    %v6591 = vpow.pop %v6590
    %v6592 = vadd.f32 %v6579, 1.0
    %v6593 = vadd.f32 %v6581, 1.0
    %v6594 = vadd.f32 %v6583, 1.0
    %v6595 = vadd.f32 %v6585, 1.0
    %v6596 = vadd.f32 %v6587, 1.0
    %v6597 = vadd.f32 %v6589, 1.0
    %v6598 = vadd.f32 %v6591, 1.0
    %v6599 = vrcp.pop %v6592
    %v6600 = vmul.f32 1.0, %v6599
    %v6601 = vrcp.pop %v6593
    %v6602 = vmul.f32 1.0, %v6601
    %v6603 = vrcp.pop %v6594
    %v6604 = vmul.f32 1.0, %v6603
    %v6605 = vrcp.pop %v6595
    %v6606 = vmul.f32 1.0, %v6605
    %v6607 = vrcp.pop %v6596
    %v6608 = vmul.f32 1.0, %v6607
    %v6609 = vrcp.pop %v6597
    %v6610 = vmul.f32 1.0, %v6609
    %v6611 = vrcp.pop %v6598
    %v6612 = vmul.f32 1.0, %v6611
    %6613 = vst [vmem:[%s16] sm:$0xff] %v6600
    %6614 = vst [vmem:[%s16 + $0x8] sm:$0xff] %v6602
    %6615 = vst [vmem:[%s16 + $0x10] sm:$0xff] %v6604
    %6616 = vst [vmem:[%s16 + $0x18] sm:$0xff] %v6606
    %6617 = vst [vmem:[%s16 + $0x20] sm:$0xff] %v6608
    %6618 = vst [vmem:[%s16 + $0x28] sm:$0xff] %v6610
    %6619 = vst [vmem:[%s16 + $0x30] sm:$0xff] %v6612
    // Predicated region
    $region94: #{vae_forward.1} parent=1 // pred_check
      _
    $region95: #{vae_forward.1} parent=1 // pred_check_branch
      %6621 = sbr.rel (0) target = $region97
    $region96: #{vae_forward.1} parent=1 // pred_region
      _
    $region97: #{vae_forward.1} parent=1 // pred_fallthru
      _
    // Predicated region
    $region98: #{vae_forward.1} parent=1 // pred_check
      _
    $region99: #{vae_forward.1} parent=1 // pred_check_branch
      %6623 = sbr.rel (0) target = $region101
    $region100: #{vae_forward.1} parent=1 // pred_region
      _
    $region101: #{vae_forward.1} parent=1 // pred_fallthru
      _
    // Predicated region
    $region102: #{vae_forward.1} parent=1 // pred_check
      _
    $region103: #{vae_forward.1} parent=1 // pred_check_branch
      %6625 = sbr.rel (0) target = $region105
    $region104: #{vae_forward.1} parent=1 // pred_region
      _
    $region105: #{vae_forward.1} parent=1 // pred_fallthru
      _
    // Predicated region
    $region106: #{vae_forward.1} parent=1 // pred_check
      _
    $region107: #{vae_forward.1} parent=1 // pred_check_branch
      %6627 = sbr.rel (0) target = $region109
    $region108: #{vae_forward.1} parent=1 // pred_region
      _
    $region109: #{vae_forward.1} parent=1 // pred_fallthru
      _
    // Predicated region
    $region110: #{vae_forward.1} parent=1 // pred_check
      _
    $region111: #{vae_forward.1} parent=1 // pred_check_branch
      %6629 = sbr.rel (0) target = $region113
    $region112: #{vae_forward.1} parent=1 // pred_region
      _
    $region113: #{vae_forward.1} parent=1 // pred_fallthru
      _
    // Predicated region
    $region114: #{vae_forward.1} parent=1 // pred_check
      _
    $region115: #{vae_forward.1} parent=1 // pred_check_branch
      %6631 = sbr.rel (0) target = $region117
    $region116: #{vae_forward.1} parent=1 // pred_region
      _
    $region117: #{vae_forward.1} parent=1 // pred_fallthru
      _
    %6632 = vsyncpa [#allocation3], 1
    %6633 = vsyncpa [#allocation5], 1
    %6634 = vsyncpa [#allocation8], 1
    %6635 = vsyncpa [#allocation11], 1

</llo_original>
